<compile_context>
chip_gen: v6e
topology: v6e:2x2x1
jax: 0.10.0
libtpu: 0.0.40
codegen_flags: <defaults>
</compile_context>

<pallas_src>
import numpy as np
import jax
import jax.numpy as jnp
from jax.experimental import pallas as pl
from jax.experimental.pallas import tpu as pltpu

ACT_DTYPE = jnp.bfloat16            # storage dtype for activations & weights
_EPS = 1e-5                         # nn.InstanceNorm2d default eps
_MiB = 1024 * 1024


# ----------------------------------------------------------------------------
# Generation-aware VMEM limit (v7x: 64 MiB physical, v5e/v6e: 128 MiB)
# ----------------------------------------------------------------------------
_VMEM_LIMIT_CACHE = [None]


def _vmem_limit_bytes():
    if _VMEM_LIMIT_CACHE[0] is None:
        try:
            cap = int(pltpu.get_tpu_info().vmem_capacity_bytes)
        except Exception:
            cap = 64 * _MiB          # conservative default, safe on all gens
        _VMEM_LIMIT_CACHE[0] = int(max(min(cap, 128 * _MiB) - 16 * _MiB,
                                       32 * _MiB))
    return _VMEM_LIMIT_CACHE[0]


# ----------------------------------------------------------------------------
# Static (host-side) tables for bilinear x2 upsample, align_corners=True
# ----------------------------------------------------------------------------
def _interp_taps(n_in):
    """Per-output-index 2-tap interpolation (PyTorch align_corners=True)."""
    n_out = 2 * n_in
    if n_in == 1:
        lo = np.zeros(n_out, np.int64)
        return lo, lo.copy(), np.ones(n_out), np.zeros(n_out)
    o = np.arange(n_out, dtype=np.float64)
    src = o * (n_in - 1) / (n_out - 1)
    lo = np.minimum(np.floor(src).astype(np.int64), n_in - 1)
    hi = np.minimum(lo + 1, n_in - 1)
    frac = src - lo
    return lo, hi, 1.0 - frac, frac


def _upsample_pad_matrix(n_in):
    """(2*n_in + 2, n_in) matrix: rows 1..2n apply the bilinear x2 interp,
    rows 0 and 2n+1 are zero so the result is already zero-padded for the
    following SAME 3x3 conv."""
    lo, hi, wlo, whi = _interp_taps(n_in)
    n_out = 2 * n_in
    m = np.zeros((n_out + 2, n_in), np.float32)
    for p in range(n_out):
        m[p + 1, lo[p]] += wlo[p]
        m[p + 1, hi[p]] += whi[p]
    return jnp.asarray(m).astype(ACT_DTYPE)


# ----------------------------------------------------------------------------
# In-kernel helpers (operate on VMEM values)
# ----------------------------------------------------------------------------
def _pad_hw1(x):
    """Zero-pad a (H, W, C) value by 1 on both spatial dims (SAME 3x3 conv)."""
    H, W, C = x.shape
    zr = jnp.zeros((1, W, C), x.dtype)
    x = jnp.concatenate([zr, x, zr], axis=0)           # pad H (major dim)
    zc = jnp.zeros((H + 2, 1, C), x.dtype)
    return jnp.concatenate([zc, x, zc], axis=1)        # pad W (sublane dim)


def _conv3x3(xp, w_ref):
    """SAME 3x3 conv as 3 MXU matmuls (one per kernel row, K = 3*C), accumulated
    in f32. Avoids materializing a (H*W, 9*C) im2col buffer. Weight ref layout
    is (9*C, Cout) with tap order (ky, kx, c) (HWIO reshaped on the host)."""
    Hp, Wp, C = xp.shape
    H, W = Hp - 2, Wp - 2
    acc = None
    for ky in range(3):
        cols = jnp.concatenate(
            [xp[ky:ky + H, dx:dx + W, :] for dx in range(3)],
            axis=-1).reshape(H * W, 3 * C)
        part = jnp.dot(cols, w_ref[pl.ds(ky * 3 * C, 3 * C), :],
                       preferred_element_type=jnp.float32)
        acc = part if acc is None else acc + part
    return acc


def _inorm_lrelu(acc):
    """InstanceNorm2d(affine=False, eps=1e-5) + LeakyReLU(0.01).
    acc: (H*W, C) float32 for one sample (full spatial plane)."""
    mean = jnp.mean(acc, axis=0, keepdims=True)
    mean_sq = jnp.mean(acc * acc, axis=0, keepdims=True)
    var = jnp.maximum(mean_sq - mean * mean, 0.0)      # clamp f32 cancellation
    y = (acc - mean) * jax.lax.rsqrt(var + _EPS)
    return jnp.where(y > 0, y, 0.01 * y)


# ----------------------------------------------------------------------------
# Fused per-level kernel: upsample -> upconv -> (concat) conv1 -> conv2 [-> score]
# ----------------------------------------------------------------------------
def _make_level_kernel(h, w, with_score, optimized):
    H, W = 2 * h, 2 * w                                # spatial after upsample
    if not optimized:
        lo, hi, wlo, whi = _interp_taps(h)

    def kernel(x_ref, enc_ref, mh_ref, mw_ref, wup_ref, wc1e_ref, wc1u_ref,
               wc2_ref, *rest):
        if with_score:
            ws_ref, bs_ref, o_ref, f_ref = rest
        else:
            (o_ref,) = rest

        xv = x_ref[0]                                  # (h, w, Cin) bf16
        cin = xv.shape[-1]
        mw = mw_ref[...]                               # (2w+2, w)  W-interp + pad

        # ---- bilinear x2 upsample (align_corners=True), entirely in VMEM ----
        if optimized:
            mh = mh_ref[...]                           # (2h+2, h)  H-interp + pad
            # W direction: one batched MXU matmul (batch = h input rows).
            t = jnp.einsum('hpw,hwc->hpc',
                           jnp.broadcast_to(mw, (h,) + mw.shape), xv,
                           preferred_element_type=jnp.float32)   # (h, W+2, Cin)
            # H direction: one 2-D matmul over the flattened (W+2)*Cin columns.
            t = t.astype(ACT_DTYPE).reshape(h, (W + 2) * cin)
            up2d = jnp.dot(mh, t, preferred_element_type=jnp.float32)
            up_pad = up2d.astype(ACT_DTYPE).reshape(H + 2, W + 2, cin)
        else:
            # Conservative path (validated constructs only).
            trows = [jnp.dot(mw, xv[r], preferred_element_type=jnp.float32)
                     for r in range(h)]                # h x (2w+2, Cin) f32
            zrow = jnp.zeros_like(trows[0])
            rows = [zrow]
            for o in range(H):
                rows.append(float(wlo[o]) * trows[int(lo[o])] +
                            float(whi[o]) * trows[int(hi[o])])
            rows.append(zrow)
            up_pad = jnp.stack(rows, axis=0).astype(ACT_DTYPE)   # (H+2, W+2, Cin)

        # ---- upconv: 3x3 conv + IN + LeakyReLU (input already zero-padded) ----
        up = _inorm_lrelu(_conv3x3(up_pad, wup_ref))   # (H*W, Cup) f32
        up3 = up.reshape(H, W, up.shape[-1]).astype(ACT_DTYPE)

        # ---- conv1 on cat([enc, up], channel) without materializing the concat ----
        enc = enc_ref[0]                               # (H, W, Cenc) bf16
        acc1 = (_conv3x3(_pad_hw1(enc), wc1e_ref) +
                _conv3x3(_pad_hw1(up3), wc1u_ref))
        h1 = _inorm_lrelu(acc1)
        h1_3 = h1.reshape(H, W, h1.shape[-1]).astype(ACT_DTYPE)

        # ---- conv2 ----
        h2 = _inorm_lrelu(_conv3x3(_pad_hw1(h1_3), wc2_ref))     # (H*W, Cout) f32
        cout = h2.shape[-1]
        if optimized:
            # lane-dense store (unmasked vst); host reshapes to NHWC for free.
            o_ref[...] = h2.astype(o_ref.dtype).reshape(1, H, W * cout)
        else:
            o_ref[...] = h2.reshape(1, H, W, cout).astype(o_ref.dtype)

        # ---- last level: fused 1x1 score conv + tanh ----
        if with_score:
            s = jnp.dot(h2.astype(ACT_DTYPE), ws_ref[...],
                        preferred_element_type=jnp.float32) + bs_ref[...]
            s = jnp.tanh(s)
            oc = s.shape[-1]
            if optimized:
                f_ref[...] = s.astype(f_ref.dtype).reshape(1, H, W * oc)
            else:
                f_ref[...] = s.reshape(1, H, W, oc).astype(f_ref.dtype)

    return kernel


def _decoder_level_impl(x, enc, lp, score_w, score_b, optimized):
    with_score = score_w is not None
    N, h, w, cin = x.shape
    ne, H, W, cenc = enc.shape
    assert ne == N and (H, W) == (2 * h, 2 * w)
    wup, wc1e, wc1u, wc2 = lp['up_w9'], lp['c1_w9_enc'], lp['c1_w9_up'], lp['c2_w9']
    cup = wup.shape[-1]
    cout = wc2.shape[-1]
    mh = _upsample_pad_matrix(h)                       # (2h+2, h) bf16
    mw = _upsample_pad_matrix(w)                       # (2w+2, w) bf16

    def wspec(shape):
        # Grid-invariant blocks: single-buffer to halve their VMEM footprint.
        if optimized:
            return pl.BlockSpec(shape, lambda n: (0, 0),
                                pipeline_mode=pl.Buffered(1))
        return pl.BlockSpec(shape, lambda n: (0, 0))

    kernel = _make_level_kernel(h, w, with_score, optimized)

    in_arrays = [x, enc, mh, mw, wup, wc1e, wc1u, wc2]
    in_specs = [
        pl.BlockSpec((1, h, w, cin), lambda n: (n, 0, 0, 0)),
        pl.BlockSpec((1, H, W, cenc), lambda n: (n, 0, 0, 0)),
        wspec(mh.shape), wspec(mw.shape), wspec(wup.shape),
        wspec(wc1e.shape), wspec(wc1u.shape), wspec(wc2.shape),
    ]

    # Advisory cost estimate (matmul flops + transcendentals + HBM bytes).
    flops = N * (2 * h * (W + 2) * w * cin               # W interp
                 + 2 * (H + 2) * h * (W + 2) * cin       # H interp
                 + 2 * H * W * 9 * cin * cup             # upconv
                 + 2 * H * W * 9 * cin * cout            # conv1 (enc + up)
                 + 2 * H * W * 9 * cout * cout)          # conv2
    transcendentals = N * 3 * (cup + 2 * cout)           # rsqrt per IN channel

    if with_score:
        oc = score_w.shape[-1]
        in_arrays += [score_w, score_b]
        in_specs += [wspec(score_w.shape), wspec(score_b.shape)]
        flops += N * 2 * H * W * cout * oc
        transcendentals += N * H * W * oc                # tanh
        if optimized:
            out_shape = (jax.ShapeDtypeStruct((N, H, W * cout), ACT_DTYPE),
                         jax.ShapeDtypeStruct((N, H, W * oc), ACT_DTYPE))
            out_specs = (pl.BlockSpec((1, H, W * cout), lambda n: (n, 0, 0)),
                         pl.BlockSpec((1, H, W * oc), lambda n: (n, 0, 0)))
        else:
            out_shape = (jax.ShapeDtypeStruct((N, H, W, cout), ACT_DTYPE),
                         jax.ShapeDtypeStruct((N, H, W, oc), ACT_DTYPE))
            out_specs = (pl.BlockSpec((1, H, W, cout), lambda n: (n, 0, 0, 0)),
                         pl.BlockSpec((1, H, W, oc), lambda n: (n, 0, 0, 0)))
        out_bytes = (N * H * W * cout + N * H * W * oc) * 2
    else:
        if optimized:
            out_shape = jax.ShapeDtypeStruct((N, H, W * cout), ACT_DTYPE)
            out_specs = pl.BlockSpec((1, H, W * cout), lambda n: (n, 0, 0))
        else:
            out_shape = jax.ShapeDtypeStruct((N, H, W, cout), ACT_DTYPE)
            out_specs = pl.BlockSpec((1, H, W, cout), lambda n: (n, 0, 0, 0))
        out_bytes = N * H * W * cout * 2

    bytes_accessed = out_bytes + sum(
        int(a.size) * jnp.dtype(a.dtype).itemsize for a in in_arrays)

    res = pl.pallas_call(
        kernel,
        out_shape=out_shape,
        grid=(N,),
        in_specs=in_specs,
        out_specs=out_specs,
        compiler_params=pltpu.CompilerParams(
            dimension_semantics=("parallel",),
            vmem_limit_bytes=_vmem_limit_bytes()),
        cost_estimate=pl.CostEstimate(
            flops=int(flops),
            transcendentals=int(transcendentals),
            bytes_accessed=int(bytes_accessed)),
    )(*in_arrays)

    if with_score:
        o2d, f2d = res
        return (o2d.reshape(N, H, W, cout),
                f2d.reshape(N, H, W, score_w.shape[-1]))
    return res.reshape(N, H, W, cout)


def decoder_level(x, enc, lp, score_w=None, score_b=None):
    """One UNetDecoder level: UNetUpSamplingBlock.forward_concat + UNetConvBlock
    (+ fused score/tanh when score_w is given). x: (N, h, w, Cin) bf16,
    enc: (N, 2h, 2w, Cenc) bf16."""
    try:
        return _decoder_level_impl(x, enc, lp, score_w, score_b, optimized=True)
    except Exception:
        # Fall back to the conservative variant if this jax/Mosaic build
        # rejects Buffered(1) or the lane-dense/matrix-upsample reshapes.
        return _decoder_level_impl(x, enc, lp, score_w, score_b, optimized=False)


# ----------------------------------------------------------------------------
# Parameters & forward
# ----------------------------------------------------------------------------
def init_decoder_params(key, feature_maps, levels, out_channels):
    params = {}
    scale = 0.1
    for i in range(levels):
        cin = 2 ** (levels - i) * feature_maps
        cout = 2 ** (levels - i - 1) * feature_maps
        cenc = cout                                    # skip-connection channels
        key, k0, k1, k2 = jax.random.split(key, 4)
        up_w = scale * jax.random.normal(k0, (3, 3, cin, cout), jnp.float32)
        c1_w = scale * jax.random.normal(k1, (3, 3, cin, cout), jnp.float32)
        c2_w = scale * jax.random.normal(k2, (3, 3, cout, cout), jnp.float32)
        # NOTE: conv biases (bias=True in PyTorch) are dropped: a per-channel
        # constant added before InstanceNorm(affine=False) cancels exactly.
        params['level%d' % i] = {
            'up_w9': up_w.reshape(9 * cin, cout).astype(ACT_DTYPE),
            'c1_w9_enc': c1_w[:, :, :cenc, :].reshape(9 * cenc, cout).astype(ACT_DTYPE),
            'c1_w9_up': c1_w[:, :, cenc:, :].reshape(9 * (cin - cenc), cout).astype(ACT_DTYPE),
            'c2_w9': c2_w.reshape(9 * cout, cout).astype(ACT_DTYPE),
        }
    key, ks0, ks1 = jax.random.split(key, 3)
    params['score_w'] = (scale * jax.random.normal(
        ks0, (feature_maps, out_channels), jnp.float32)).astype(ACT_DTYPE)
    params['score_b'] = scale * jax.random.normal(
        ks1, (1, out_channels), jnp.float32)
    return params


def unet_decoder_forward(params, inputs, encoder_outputs, levels):
    enc = list(encoder_outputs)[::-1]                  # encoder_outputs.reverse()
    decoder_outputs = []
    outputs = inputs
    final = None
    for i in range(levels):
        p = params['level%d' % i]
        if i == levels - 1:
            outputs, final = decoder_level(
                outputs, enc[i], p,
                score_w=params['score_w'], score_b=params['score_b'])
        else:
            outputs = decoder_level(outputs, enc[i], p)
        decoder_outputs.append(outputs)
    return decoder_outputs, final


# ----------------------------------------------------------------------------
if __name__ == "__main__":
    feature_maps = 8
    levels = 2
    out_channels = 4
    N = 2
    H0 = W0 = 4                                        # bottleneck spatial size

    key = jax.random.PRNGKey(0)
    keys = jax.random.split(key, 2 + levels)
    kp, kx = keys[0], keys[1]
    ke = [keys[2 + l] for l in range(levels)]

    params = init_decoder_params(kp, feature_maps, levels, out_channels)

    # Bottleneck input: (N, H0, W0, 2^levels * fm)  [NCHW (2, 32, 4, 4) in PyTorch]
    inputs = jax.random.normal(
        kx, (N, H0, W0, 2 ** levels * feature_maps), jnp.float32).astype(ACT_DTYPE)

    # Encoder skip outputs, shallow -> deep (as an encoder would produce them).
    encoder_outputs = []
    for l in range(levels):
        c = 2 ** l * feature_maps
        s = H0 * 2 ** (levels - l)
        encoder_outputs.append(
            jax.random.normal(ke[l], (N, s, s, c), jnp.float32).astype(ACT_DTYPE))

    decoder_outputs, final = unet_decoder_forward(
        params, inputs, encoder_outputs, levels)

    for d in decoder_outputs:
        jax.block_until_ready(d)
    final = jax.block_until_ready(final)

    assert final.shape == (N, H0 * 2 ** levels, W0 * 2 ** levels, out_channels)
    assert decoder_outputs[-1].shape == (
        N, H0 * 2 ** levels, W0 * 2 ** levels, feature_maps)
    assert decoder_outputs[0].shape == (
        N, 2 * H0, 2 * W0, 2 ** (levels - 1) * feature_maps)
    assert bool(jnp.all(jnp.isfinite(final.astype(jnp.float32))))
    assert bool(jnp.all(jnp.abs(final.astype(jnp.float32)) <= 1.0))  # tanh range
    print("KERNEL_OK")
</pallas_src>

<mosaic_0001>
module attributes {stable_mosaic.version = 11 : i64} {
  func.func @kernel(%arg0: i32, %arg1: memref<1x4x4x32xbf16, #tpu.memory_space<vmem>>, %arg2: memref<1x8x8x16xbf16, #tpu.memory_space<vmem>>, %arg3: memref<10x4xbf16, #tpu.memory_space<vmem>>, %arg4: memref<10x4xbf16, #tpu.memory_space<vmem>>, %arg5: memref<288x16xbf16, #tpu.memory_space<vmem>>, %arg6: memref<144x16xbf16, #tpu.memory_space<vmem>>, %arg7: memref<144x16xbf16, #tpu.memory_space<vmem>>, %arg8: memref<144x16xbf16, #tpu.memory_space<vmem>>, %arg9: memref<1x8x128xbf16, #tpu.memory_space<vmem>>) attributes {dimension_semantics = [#tpu.dimension_semantics<parallel>], iteration_bounds = array<i64: 2>, scalar_prefetch = 0 : i64, scratch_operands = 0 : i64, tpu.core_type = #tpu.core_type<tc>, window_params = [{transform_indices = @transform_0, window_bounds = array<i64: 1, 4, 4, 32>}, {transform_indices = @transform_1, window_bounds = array<i64: 1, 8, 8, 16>}, {pipeline_mode = #tpu.pipeline_mode<synchronous>, transform_indices = @transform_2, window_bounds = array<i64: 10, 4>}, {pipeline_mode = #tpu.pipeline_mode<synchronous>, transform_indices = @transform_3, window_bounds = array<i64: 10, 4>}, {pipeline_mode = #tpu.pipeline_mode<synchronous>, transform_indices = @transform_4, window_bounds = array<i64: 288, 16>}, {pipeline_mode = #tpu.pipeline_mode<synchronous>, transform_indices = @transform_5, window_bounds = array<i64: 144, 16>}, {pipeline_mode = #tpu.pipeline_mode<synchronous>, transform_indices = @transform_6, window_bounds = array<i64: 144, 16>}, {pipeline_mode = #tpu.pipeline_mode<synchronous>, transform_indices = @transform_7, window_bounds = array<i64: 144, 16>}, {transform_indices = @transform_8, window_bounds = array<i64: 1, 8, 128>}]} {
    %c0 = arith.constant 0 : index
    %c0_0 = arith.constant 0 : index
    %c0_1 = arith.constant 0 : index
    %c0_2 = arith.constant 0 : index
    %0 = vector.load %arg1[%c0, %c0_0, %c0_1, %c0_2] : memref<1x4x4x32xbf16, #tpu.memory_space<vmem>>, vector<1x4x4x32xbf16>
    %1 = vector.shape_cast %0 : vector<1x4x4x32xbf16> to vector<4x4x32xbf16>
    %c0_3 = arith.constant 0 : index
    %c0_4 = arith.constant 0 : index
    %2 = vector.load %arg4[%c0_3, %c0_4] : memref<10x4xbf16, #tpu.memory_space<vmem>>, vector<10x4xbf16>
    %c0_5 = arith.constant 0 : index
    %c0_6 = arith.constant 0 : index
    %3 = vector.load %arg3[%c0_5, %c0_6] : memref<10x4xbf16, #tpu.memory_space<vmem>>, vector<10x4xbf16>
    %4 = vector.shape_cast %2 : vector<10x4xbf16> to vector<1x10x4xbf16>
    %5 = vector.broadcast %4 : vector<1x10x4xbf16> to vector<4x10x4xbf16>
    "tpu.trace_start"() <{level = 10 : i32, message = "hpw,hwc->hpc"}> : () -> ()
    %cst = arith.constant dense<0.000000e+00> : vector<4x10x32xf32>
    %6 = tpu.matmul %5, %1, %cst {dimension_numbers = #tpu.dot_dimension_numbers<[2], [1], [1], [2], [0, 0, 0, 1, 1, 2], [0], [0]>} : vector<4x10x4xbf16>, vector<4x4x32xbf16>, vector<4x10x32xf32> -> vector<4x10x32xf32>
    "tpu.trace_stop"() : () -> ()
    %7 = arith.truncf %6 : vector<4x10x32xf32> to vector<4x10x32xbf16>
    %8 = vector.shape_cast %7 : vector<4x10x32xbf16> to vector<4x320xbf16>
    %cst_7 = arith.constant dense<0.000000e+00> : vector<10x320xf32>
    %9 = tpu.matmul %3, %8, %cst_7 {dimension_numbers = #tpu.dot_dimension_numbers<[1], [0], [0], [1], [0, 0, 1, 1], [], []>} : vector<10x4xbf16>, vector<4x320xbf16>, vector<10x320xf32> -> vector<10x320xf32>
    %10 = arith.truncf %9 : vector<10x320xf32> to vector<10x320xbf16>
    %11 = vector.shape_cast %10 : vector<10x320xbf16> to vector<10x10x32xbf16>
    %12 = vector.extract_strided_slice %11 {offsets = [0, 0, 0], sizes = [8, 8, 32], strides = [1, 1, 1]} : vector<10x10x32xbf16> to vector<8x8x32xbf16>
    %13 = vector.extract_strided_slice %11 {offsets = [0, 1, 0], sizes = [8, 8, 32], strides = [1, 1, 1]} : vector<10x10x32xbf16> to vector<8x8x32xbf16>
    %14 = vector.extract_strided_slice %11 {offsets = [0, 2, 0], sizes = [8, 8, 32], strides = [1, 1, 1]} : vector<10x10x32xbf16> to vector<8x8x32xbf16>
    %15 = tpu.concatenate %12, %13, %14 in 2 : vector<8x8x32xbf16>, vector<8x8x32xbf16>, vector<8x8x32xbf16> -> vector<8x8x96xbf16>
    %16 = vector.shape_cast %15 : vector<8x8x96xbf16> to vector<64x96xbf16>
    %c0_8 = arith.constant 0 : index
    %c0_9 = arith.constant 0 : index
    %17 = vector.load %arg5[%c0_8, %c0_9] : memref<288x16xbf16, #tpu.memory_space<vmem>>, vector<96x16xbf16>
    %cst_10 = arith.constant dense<0.000000e+00> : vector<64x16xf32>
    %18 = tpu.matmul %16, %17, %cst_10 {dimension_numbers = #tpu.dot_dimension_numbers<[1], [0], [0], [1], [0, 0, 1, 1], [], []>} : vector<64x96xbf16>, vector<96x16xbf16>, vector<64x16xf32> -> vector<64x16xf32>
    %19 = vector.extract_strided_slice %11 {offsets = [1, 0, 0], sizes = [8, 8, 32], strides = [1, 1, 1]} : vector<10x10x32xbf16> to vector<8x8x32xbf16>
    %20 = vector.extract_strided_slice %11 {offsets = [1, 1, 0], sizes = [8, 8, 32], strides = [1, 1, 1]} : vector<10x10x32xbf16> to vector<8x8x32xbf16>
    %21 = vector.extract_strided_slice %11 {offsets = [1, 2, 0], sizes = [8, 8, 32], strides = [1, 1, 1]} : vector<10x10x32xbf16> to vector<8x8x32xbf16>
    %22 = tpu.concatenate %19, %20, %21 in 2 : vector<8x8x32xbf16>, vector<8x8x32xbf16>, vector<8x8x32xbf16> -> vector<8x8x96xbf16>
    %23 = vector.shape_cast %22 : vector<8x8x96xbf16> to vector<64x96xbf16>
    %c96 = arith.constant 96 : index
    %c0_11 = arith.constant 0 : index
    %24 = vector.load %arg5[%c96, %c0_11] : memref<288x16xbf16, #tpu.memory_space<vmem>>, vector<96x16xbf16>
    %cst_12 = arith.constant dense<0.000000e+00> : vector<64x16xf32>
    %25 = tpu.matmul %23, %24, %cst_12 {dimension_numbers = #tpu.dot_dimension_numbers<[1], [0], [0], [1], [0, 0, 1, 1], [], []>} : vector<64x96xbf16>, vector<96x16xbf16>, vector<64x16xf32> -> vector<64x16xf32>
    %26 = arith.addf %18, %25 : vector<64x16xf32>
    %27 = vector.extract_strided_slice %11 {offsets = [2, 0, 0], sizes = [8, 8, 32], strides = [1, 1, 1]} : vector<10x10x32xbf16> to vector<8x8x32xbf16>
    %28 = vector.extract_strided_slice %11 {offsets = [2, 1, 0], sizes = [8, 8, 32], strides = [1, 1, 1]} : vector<10x10x32xbf16> to vector<8x8x32xbf16>
    %29 = vector.extract_strided_slice %11 {offsets = [2, 2, 0], sizes = [8, 8, 32], strides = [1, 1, 1]} : vector<10x10x32xbf16> to vector<8x8x32xbf16>
    %30 = tpu.concatenate %27, %28, %29 in 2 : vector<8x8x32xbf16>, vector<8x8x32xbf16>, vector<8x8x32xbf16> -> vector<8x8x96xbf16>
    %31 = vector.shape_cast %30 : vector<8x8x96xbf16> to vector<64x96xbf16>
    %c192 = arith.constant 192 : index
    %c0_13 = arith.constant 0 : index
    %32 = vector.load %arg5[%c192, %c0_13] : memref<288x16xbf16, #tpu.memory_space<vmem>>, vector<96x16xbf16>
    %cst_14 = arith.constant dense<0.000000e+00> : vector<64x16xf32>
    %33 = tpu.matmul %31, %32, %cst_14 {dimension_numbers = #tpu.dot_dimension_numbers<[1], [0], [0], [1], [0, 0, 1, 1], [], []>} : vector<64x96xbf16>, vector<96x16xbf16>, vector<64x16xf32> -> vector<64x16xf32>
    %34 = arith.addf %26, %33 : vector<64x16xf32>
    %cst_15 = arith.constant dense<0.000000e+00> : vector<16xf32>
    %35 = vector.multi_reduction <add>, %34, %cst_15 [0] : vector<64x16xf32> to vector<16xf32>
    %36 = vector.shape_cast %35 : vector<16xf32> to vector<1x16xf32>
    %cst_16 = arith.constant 6.400000e+01 : f32
    %37 = vector.broadcast %cst_16 : f32 to vector<1x16xf32>
    %38 = arith.divf %36, %37 : vector<1x16xf32>
    %39 = arith.mulf %34, %34 : vector<64x16xf32>
    %cst_17 = arith.constant dense<0.000000e+00> : vector<16xf32>
    %40 = vector.multi_reduction <add>, %39, %cst_17 [0] : vector<64x16xf32> to vector<16xf32>
    %41 = vector.shape_cast %40 : vector<16xf32> to vector<1x16xf32>
    %cst_18 = arith.constant 6.400000e+01 : f32
    %42 = vector.broadcast %cst_18 : f32 to vector<1x16xf32>
    %43 = arith.divf %41, %42 : vector<1x16xf32>
    %44 = arith.mulf %38, %38 : vector<1x16xf32>
    %45 = arith.subf %43, %44 : vector<1x16xf32>
    %cst_19 = arith.constant 0.000000e+00 : f32
    %46 = vector.broadcast %cst_19 : f32 to vector<1x16xf32>
    %47 = arith.maximumf %45, %46 : vector<1x16xf32>
    %48 = vector.broadcast %38 : vector<1x16xf32> to vector<64x16xf32>
    %49 = arith.subf %34, %48 : vector<64x16xf32>
    %cst_20 = arith.constant 9.99999974E-6 : f32
    %50 = vector.broadcast %cst_20 : f32 to vector<1x16xf32>
    %51 = arith.addf %47, %50 : vector<1x16xf32>
    %52 = math.rsqrt %51 : vector<1x16xf32>
    %53 = vector.broadcast %52 : vector<1x16xf32> to vector<64x16xf32>
    %54 = arith.mulf %49, %53 : vector<64x16xf32>
    %cst_21 = arith.constant 0.000000e+00 : f32
    %55 = vector.broadcast %cst_21 : f32 to vector<64x16xf32>
    %56 = arith.cmpf ogt, %54, %55 : vector<64x16xf32>
    %cst_22 = arith.constant 0.00999999977 : f32
    %57 = vector.broadcast %cst_22 : f32 to vector<64x16xf32>
    %58 = arith.mulf %57, %54 : vector<64x16xf32>
    %59 = arith.select %56, %54, %58 : vector<64x16xi1>, vector<64x16xf32>
    %60 = vector.shape_cast %59 : vector<64x16xf32> to vector<8x8x16xf32>
    %61 = arith.truncf %60 : vector<8x8x16xf32> to vector<8x8x16xbf16>
    %c0_23 = arith.constant 0 : index
    %c0_24 = arith.constant 0 : index
    %c0_25 = arith.constant 0 : index
    %c0_26 = arith.constant 0 : index
    %62 = vector.load %arg2[%c0_23, %c0_24, %c0_25, %c0_26] : memref<1x8x8x16xbf16, #tpu.memory_space<vmem>>, vector<1x8x8x16xbf16>
    %63 = vector.shape_cast %62 : vector<1x8x8x16xbf16> to vector<8x8x16xbf16>
    %cst_27 = arith.constant 0.000000e+00 : bf16
    %64 = vector.broadcast %cst_27 : bf16 to vector<1x8x16xbf16>
    %65 = tpu.concatenate %64, %63, %64 in 0 : vector<1x8x16xbf16>, vector<8x8x16xbf16>, vector<1x8x16xbf16> -> vector<10x8x16xbf16>
    %cst_28 = arith.constant 0.000000e+00 : bf16
    %66 = vector.broadcast %cst_28 : bf16 to vector<10x1x16xbf16>
    %67 = tpu.concatenate %66, %65, %66 in 1 : vector<10x1x16xbf16>, vector<10x8x16xbf16>, vector<10x1x16xbf16> -> vector<10x10x16xbf16>
    %68 = vector.extract_strided_slice %67 {offsets = [0, 0, 0], sizes = [8, 8, 16], strides = [1, 1, 1]} : vector<10x10x16xbf16> to vector<8x8x16xbf16>
    %69 = vector.extract_strided_slice %67 {offsets = [0, 1, 0], sizes = [8, 8, 16], strides = [1, 1, 1]} : vector<10x10x16xbf16> to vector<8x8x16xbf16>
    %70 = vector.extract_strided_slice %67 {offsets = [0, 2, 0], sizes = [8, 8, 16], strides = [1, 1, 1]} : vector<10x10x16xbf16> to vector<8x8x16xbf16>
    %71 = tpu.concatenate %68, %69, %70 in 2 : vector<8x8x16xbf16>, vector<8x8x16xbf16>, vector<8x8x16xbf16> -> vector<8x8x48xbf16>
    %72 = vector.shape_cast %71 : vector<8x8x48xbf16> to vector<64x48xbf16>
    %c0_29 = arith.constant 0 : index
    %c0_30 = arith.constant 0 : index
    %73 = vector.load %arg6[%c0_29, %c0_30] : memref<144x16xbf16, #tpu.memory_space<vmem>>, vector<48x16xbf16>
    %cst_31 = arith.constant dense<0.000000e+00> : vector<64x16xf32>
    %74 = tpu.matmul %72, %73, %cst_31 {dimension_numbers = #tpu.dot_dimension_numbers<[1], [0], [0], [1], [0, 0, 1, 1], [], []>} : vector<64x48xbf16>, vector<48x16xbf16>, vector<64x16xf32> -> vector<64x16xf32>
    %75 = vector.extract_strided_slice %67 {offsets = [1, 0, 0], sizes = [8, 8, 16], strides = [1, 1, 1]} : vector<10x10x16xbf16> to vector<8x8x16xbf16>
    %76 = vector.extract_strided_slice %67 {offsets = [1, 1, 0], sizes = [8, 8, 16], strides = [1, 1, 1]} : vector<10x10x16xbf16> to vector<8x8x16xbf16>
    %77 = vector.extract_strided_slice %67 {offsets = [1, 2, 0], sizes = [8, 8, 16], strides = [1, 1, 1]} : vector<10x10x16xbf16> to vector<8x8x16xbf16>
    %78 = tpu.concatenate %75, %76, %77 in 2 : vector<8x8x16xbf16>, vector<8x8x16xbf16>, vector<8x8x16xbf16> -> vector<8x8x48xbf16>
    %79 = vector.shape_cast %78 : vector<8x8x48xbf16> to vector<64x48xbf16>
    %c48 = arith.constant 48 : index
    %c0_32 = arith.constant 0 : index
    %80 = vector.load %arg6[%c48, %c0_32] : memref<144x16xbf16, #tpu.memory_space<vmem>>, vector<48x16xbf16>
    %cst_33 = arith.constant dense<0.000000e+00> : vector<64x16xf32>
    %81 = tpu.matmul %79, %80, %cst_33 {dimension_numbers = #tpu.dot_dimension_numbers<[1], [0], [0], [1], [0, 0, 1, 1], [], []>} : vector<64x48xbf16>, vector<48x16xbf16>, vector<64x16xf32> -> vector<64x16xf32>
    %82 = arith.addf %74, %81 : vector<64x16xf32>
    %83 = vector.extract_strided_slice %67 {offsets = [2, 0, 0], sizes = [8, 8, 16], strides = [1, 1, 1]} : vector<10x10x16xbf16> to vector<8x8x16xbf16>
    %84 = vector.extract_strided_slice %67 {offsets = [2, 1, 0], sizes = [8, 8, 16], strides = [1, 1, 1]} : vector<10x10x16xbf16> to vector<8x8x16xbf16>
    %85 = vector.extract_strided_slice %67 {offsets = [2, 2, 0], sizes = [8, 8, 16], strides = [1, 1, 1]} : vector<10x10x16xbf16> to vector<8x8x16xbf16>
    %86 = tpu.concatenate %83, %84, %85 in 2 : vector<8x8x16xbf16>, vector<8x8x16xbf16>, vector<8x8x16xbf16> -> vector<8x8x48xbf16>
    %87 = vector.shape_cast %86 : vector<8x8x48xbf16> to vector<64x48xbf16>
    %c96_34 = arith.constant 96 : index
    %c0_35 = arith.constant 0 : index
    %88 = vector.load %arg6[%c96_34, %c0_35] : memref<144x16xbf16, #tpu.memory_space<vmem>>, vector<48x16xbf16>
    %cst_36 = arith.constant dense<0.000000e+00> : vector<64x16xf32>
    %89 = tpu.matmul %87, %88, %cst_36 {dimension_numbers = #tpu.dot_dimension_numbers<[1], [0], [0], [1], [0, 0, 1, 1], [], []>} : vector<64x48xbf16>, vector<48x16xbf16>, vector<64x16xf32> -> vector<64x16xf32>
    %90 = arith.addf %82, %89 : vector<64x16xf32>
    %cst_37 = arith.constant 0.000000e+00 : bf16
    %91 = vector.broadcast %cst_37 : bf16 to vector<1x8x16xbf16>
    %92 = tpu.concatenate %91, %61, %91 in 0 : vector<1x8x16xbf16>, vector<8x8x16xbf16>, vector<1x8x16xbf16> -> vector<10x8x16xbf16>
    %cst_38 = arith.constant 0.000000e+00 : bf16
    %93 = vector.broadcast %cst_38 : bf16 to vector<10x1x16xbf16>
    %94 = tpu.concatenate %93, %92, %93 in 1 : vector<10x1x16xbf16>, vector<10x8x16xbf16>, vector<10x1x16xbf16> -> vector<10x10x16xbf16>
    %95 = vector.extract_strided_slice %94 {offsets = [0, 0, 0], sizes = [8, 8, 16], strides = [1, 1, 1]} : vector<10x10x16xbf16> to vector<8x8x16xbf16>
    %96 = vector.extract_strided_slice %94 {offsets = [0, 1, 0], sizes = [8, 8, 16], strides = [1, 1, 1]} : vector<10x10x16xbf16> to vector<8x8x16xbf16>
    %97 = vector.extract_strided_slice %94 {offsets = [0, 2, 0], sizes = [8, 8, 16], strides = [1, 1, 1]} : vector<10x10x16xbf16> to vector<8x8x16xbf16>
    %98 = tpu.concatenate %95, %96, %97 in 2 : vector<8x8x16xbf16>, vector<8x8x16xbf16>, vector<8x8x16xbf16> -> vector<8x8x48xbf16>
    %99 = vector.shape_cast %98 : vector<8x8x48xbf16> to vector<64x48xbf16>
    %c0_39 = arith.constant 0 : index
    %c0_40 = arith.constant 0 : index
    %100 = vector.load %arg7[%c0_39, %c0_40] : memref<144x16xbf16, #tpu.memory_space<vmem>>, vector<48x16xbf16>
    %cst_41 = arith.constant dense<0.000000e+00> : vector<64x16xf32>
    %101 = tpu.matmul %99, %100, %cst_41 {dimension_numbers = #tpu.dot_dimension_numbers<[1], [0], [0], [1], [0, 0, 1, 1], [], []>} : vector<64x48xbf16>, vector<48x16xbf16>, vector<64x16xf32> -> vector<64x16xf32>
    %102 = vector.extract_strided_slice %94 {offsets = [1, 0, 0], sizes = [8, 8, 16], strides = [1, 1, 1]} : vector<10x10x16xbf16> to vector<8x8x16xbf16>
    %103 = vector.extract_strided_slice %94 {offsets = [1, 1, 0], sizes = [8, 8, 16], strides = [1, 1, 1]} : vector<10x10x16xbf16> to vector<8x8x16xbf16>
    %104 = vector.extract_strided_slice %94 {offsets = [1, 2, 0], sizes = [8, 8, 16], strides = [1, 1, 1]} : vector<10x10x16xbf16> to vector<8x8x16xbf16>
    %105 = tpu.concatenate %102, %103, %104 in 2 : vector<8x8x16xbf16>, vector<8x8x16xbf16>, vector<8x8x16xbf16> -> vector<8x8x48xbf16>
    %106 = vector.shape_cast %105 : vector<8x8x48xbf16> to vector<64x48xbf16>
    %c48_42 = arith.constant 48 : index
    %c0_43 = arith.constant 0 : index
    %107 = vector.load %arg7[%c48_42, %c0_43] : memref<144x16xbf16, #tpu.memory_space<vmem>>, vector<48x16xbf16>
    %cst_44 = arith.constant dense<0.000000e+00> : vector<64x16xf32>
    %108 = tpu.matmul %106, %107, %cst_44 {dimension_numbers = #tpu.dot_dimension_numbers<[1], [0], [0], [1], [0, 0, 1, 1], [], []>} : vector<64x48xbf16>, vector<48x16xbf16>, vector<64x16xf32> -> vector<64x16xf32>
    %109 = arith.addf %101, %108 : vector<64x16xf32>
    %110 = vector.extract_strided_slice %94 {offsets = [2, 0, 0], sizes = [8, 8, 16], strides = [1, 1, 1]} : vector<10x10x16xbf16> to vector<8x8x16xbf16>
    %111 = vector.extract_strided_slice %94 {offsets = [2, 1, 0], sizes = [8, 8, 16], strides = [1, 1, 1]} : vector<10x10x16xbf16> to vector<8x8x16xbf16>
    %112 = vector.extract_strided_slice %94 {offsets = [2, 2, 0], sizes = [8, 8, 16], strides = [1, 1, 1]} : vector<10x10x16xbf16> to vector<8x8x16xbf16>
    %113 = tpu.concatenate %110, %111, %112 in 2 : vector<8x8x16xbf16>, vector<8x8x16xbf16>, vector<8x8x16xbf16> -> vector<8x8x48xbf16>
    %114 = vector.shape_cast %113 : vector<8x8x48xbf16> to vector<64x48xbf16>
    %c96_45 = arith.constant 96 : index
    %c0_46 = arith.constant 0 : index
    %115 = vector.load %arg7[%c96_45, %c0_46] : memref<144x16xbf16, #tpu.memory_space<vmem>>, vector<48x16xbf16>
    %cst_47 = arith.constant dense<0.000000e+00> : vector<64x16xf32>
    %116 = tpu.matmul %114, %115, %cst_47 {dimension_numbers = #tpu.dot_dimension_numbers<[1], [0], [0], [1], [0, 0, 1, 1], [], []>} : vector<64x48xbf16>, vector<48x16xbf16>, vector<64x16xf32> -> vector<64x16xf32>
    %117 = arith.addf %109, %116 : vector<64x16xf32>
    %118 = arith.addf %90, %117 : vector<64x16xf32>
    %cst_48 = arith.constant dense<0.000000e+00> : vector<16xf32>
    %119 = vector.multi_reduction <add>, %118, %cst_48 [0] : vector<64x16xf32> to vector<16xf32>
    %120 = vector.shape_cast %119 : vector<16xf32> to vector<1x16xf32>
    %cst_49 = arith.constant 6.400000e+01 : f32
    %121 = vector.broadcast %cst_49 : f32 to vector<1x16xf32>
    %122 = arith.divf %120, %121 : vector<1x16xf32>
    %123 = arith.mulf %118, %118 : vector<64x16xf32>
    %cst_50 = arith.constant dense<0.000000e+00> : vector<16xf32>
    %124 = vector.multi_reduction <add>, %123, %cst_50 [0] : vector<64x16xf32> to vector<16xf32>
    %125 = vector.shape_cast %124 : vector<16xf32> to vector<1x16xf32>
    %cst_51 = arith.constant 6.400000e+01 : f32
    %126 = vector.broadcast %cst_51 : f32 to vector<1x16xf32>
    %127 = arith.divf %125, %126 : vector<1x16xf32>
    %128 = arith.mulf %122, %122 : vector<1x16xf32>
    %129 = arith.subf %127, %128 : vector<1x16xf32>
    %cst_52 = arith.constant 0.000000e+00 : f32
    %130 = vector.broadcast %cst_52 : f32 to vector<1x16xf32>
    %131 = arith.maximumf %129, %130 : vector<1x16xf32>
    %132 = vector.broadcast %122 : vector<1x16xf32> to vector<64x16xf32>
    %133 = arith.subf %118, %132 : vector<64x16xf32>
    %cst_53 = arith.constant 9.99999974E-6 : f32
    %134 = vector.broadcast %cst_53 : f32 to vector<1x16xf32>
    %135 = arith.addf %131, %134 : vector<1x16xf32>
    %136 = math.rsqrt %135 : vector<1x16xf32>
    %137 = vector.broadcast %136 : vector<1x16xf32> to vector<64x16xf32>
    %138 = arith.mulf %133, %137 : vector<64x16xf32>
    %cst_54 = arith.constant 0.000000e+00 : f32
    %139 = vector.broadcast %cst_54 : f32 to vector<64x16xf32>
    %140 = arith.cmpf ogt, %138, %139 : vector<64x16xf32>
    %cst_55 = arith.constant 0.00999999977 : f32
    %141 = vector.broadcast %cst_55 : f32 to vector<64x16xf32>
    %142 = arith.mulf %141, %138 : vector<64x16xf32>
    %143 = arith.select %140, %138, %142 : vector<64x16xi1>, vector<64x16xf32>
    %144 = vector.shape_cast %143 : vector<64x16xf32> to vector<8x8x16xf32>
    %145 = arith.truncf %144 : vector<8x8x16xf32> to vector<8x8x16xbf16>
    %cst_56 = arith.constant 0.000000e+00 : bf16
    %146 = vector.broadcast %cst_56 : bf16 to vector<1x8x16xbf16>
    %147 = tpu.concatenate %146, %145, %146 in 0 : vector<1x8x16xbf16>, vector<8x8x16xbf16>, vector<1x8x16xbf16> -> vector<10x8x16xbf16>
    %cst_57 = arith.constant 0.000000e+00 : bf16
    %148 = vector.broadcast %cst_57 : bf16 to vector<10x1x16xbf16>
    %149 = tpu.concatenate %148, %147, %148 in 1 : vector<10x1x16xbf16>, vector<10x8x16xbf16>, vector<10x1x16xbf16> -> vector<10x10x16xbf16>
    %150 = vector.extract_strided_slice %149 {offsets = [0, 0, 0], sizes = [8, 8, 16], strides = [1, 1, 1]} : vector<10x10x16xbf16> to vector<8x8x16xbf16>
    %151 = vector.extract_strided_slice %149 {offsets = [0, 1, 0], sizes = [8, 8, 16], strides = [1, 1, 1]} : vector<10x10x16xbf16> to vector<8x8x16xbf16>
    %152 = vector.extract_strided_slice %149 {offsets = [0, 2, 0], sizes = [8, 8, 16], strides = [1, 1, 1]} : vector<10x10x16xbf16> to vector<8x8x16xbf16>
    %153 = tpu.concatenate %150, %151, %152 in 2 : vector<8x8x16xbf16>, vector<8x8x16xbf16>, vector<8x8x16xbf16> -> vector<8x8x48xbf16>
    %154 = vector.shape_cast %153 : vector<8x8x48xbf16> to vector<64x48xbf16>
    %c0_58 = arith.constant 0 : index
    %c0_59 = arith.constant 0 : index
    %155 = vector.load %arg8[%c0_58, %c0_59] : memref<144x16xbf16, #tpu.memory_space<vmem>>, vector<48x16xbf16>
    %cst_60 = arith.constant dense<0.000000e+00> : vector<64x16xf32>
    %156 = tpu.matmul %154, %155, %cst_60 {dimension_numbers = #tpu.dot_dimension_numbers<[1], [0], [0], [1], [0, 0, 1, 1], [], []>} : vector<64x48xbf16>, vector<48x16xbf16>, vector<64x16xf32> -> vector<64x16xf32>
    %157 = vector.extract_strided_slice %149 {offsets = [1, 0, 0], sizes = [8, 8, 16], strides = [1, 1, 1]} : vector<10x10x16xbf16> to vector<8x8x16xbf16>
    %158 = vector.extract_strided_slice %149 {offsets = [1, 1, 0], sizes = [8, 8, 16], strides = [1, 1, 1]} : vector<10x10x16xbf16> to vector<8x8x16xbf16>
    %159 = vector.extract_strided_slice %149 {offsets = [1, 2, 0], sizes = [8, 8, 16], strides = [1, 1, 1]} : vector<10x10x16xbf16> to vector<8x8x16xbf16>
    %160 = tpu.concatenate %157, %158, %159 in 2 : vector<8x8x16xbf16>, vector<8x8x16xbf16>, vector<8x8x16xbf16> -> vector<8x8x48xbf16>
    %161 = vector.shape_cast %160 : vector<8x8x48xbf16> to vector<64x48xbf16>
    %c48_61 = arith.constant 48 : index
    %c0_62 = arith.constant 0 : index
    %162 = vector.load %arg8[%c48_61, %c0_62] : memref<144x16xbf16, #tpu.memory_space<vmem>>, vector<48x16xbf16>
    %cst_63 = arith.constant dense<0.000000e+00> : vector<64x16xf32>
    %163 = tpu.matmul %161, %162, %cst_63 {dimension_numbers = #tpu.dot_dimension_numbers<[1], [0], [0], [1], [0, 0, 1, 1], [], []>} : vector<64x48xbf16>, vector<48x16xbf16>, vector<64x16xf32> -> vector<64x16xf32>
    %164 = arith.addf %156, %163 : vector<64x16xf32>
    %165 = vector.extract_strided_slice %149 {offsets = [2, 0, 0], sizes = [8, 8, 16], strides = [1, 1, 1]} : vector<10x10x16xbf16> to vector<8x8x16xbf16>
    %166 = vector.extract_strided_slice %149 {offsets = [2, 1, 0], sizes = [8, 8, 16], strides = [1, 1, 1]} : vector<10x10x16xbf16> to vector<8x8x16xbf16>
    %167 = vector.extract_strided_slice %149 {offsets = [2, 2, 0], sizes = [8, 8, 16], strides = [1, 1, 1]} : vector<10x10x16xbf16> to vector<8x8x16xbf16>
    %168 = tpu.concatenate %165, %166, %167 in 2 : vector<8x8x16xbf16>, vector<8x8x16xbf16>, vector<8x8x16xbf16> -> vector<8x8x48xbf16>
    %169 = vector.shape_cast %168 : vector<8x8x48xbf16> to vector<64x48xbf16>
    %c96_64 = arith.constant 96 : index
    %c0_65 = arith.constant 0 : index
    %170 = vector.load %arg8[%c96_64, %c0_65] : memref<144x16xbf16, #tpu.memory_space<vmem>>, vector<48x16xbf16>
    %cst_66 = arith.constant dense<0.000000e+00> : vector<64x16xf32>
    %171 = tpu.matmul %169, %170, %cst_66 {dimension_numbers = #tpu.dot_dimension_numbers<[1], [0], [0], [1], [0, 0, 1, 1], [], []>} : vector<64x48xbf16>, vector<48x16xbf16>, vector<64x16xf32> -> vector<64x16xf32>
    %172 = arith.addf %164, %171 : vector<64x16xf32>
    %cst_67 = arith.constant dense<0.000000e+00> : vector<16xf32>
    %173 = vector.multi_reduction <add>, %172, %cst_67 [0] : vector<64x16xf32> to vector<16xf32>
    %174 = vector.shape_cast %173 : vector<16xf32> to vector<1x16xf32>
    %cst_68 = arith.constant 6.400000e+01 : f32
    %175 = vector.broadcast %cst_68 : f32 to vector<1x16xf32>
    %176 = arith.divf %174, %175 : vector<1x16xf32>
    %177 = arith.mulf %172, %172 : vector<64x16xf32>
    %cst_69 = arith.constant dense<0.000000e+00> : vector<16xf32>
    %178 = vector.multi_reduction <add>, %177, %cst_69 [0] : vector<64x16xf32> to vector<16xf32>
    %179 = vector.shape_cast %178 : vector<16xf32> to vector<1x16xf32>
    %cst_70 = arith.constant 6.400000e+01 : f32
    %180 = vector.broadcast %cst_70 : f32 to vector<1x16xf32>
    %181 = arith.divf %179, %180 : vector<1x16xf32>
    %182 = arith.mulf %176, %176 : vector<1x16xf32>
    %183 = arith.subf %181, %182 : vector<1x16xf32>
    %cst_71 = arith.constant 0.000000e+00 : f32
    %184 = vector.broadcast %cst_71 : f32 to vector<1x16xf32>
    %185 = arith.maximumf %183, %184 : vector<1x16xf32>
    %186 = vector.broadcast %176 : vector<1x16xf32> to vector<64x16xf32>
    %187 = arith.subf %172, %186 : vector<64x16xf32>
    %cst_72 = arith.constant 9.99999974E-6 : f32
    %188 = vector.broadcast %cst_72 : f32 to vector<1x16xf32>
    %189 = arith.addf %185, %188 : vector<1x16xf32>
    %190 = math.rsqrt %189 : vector<1x16xf32>
    %191 = vector.broadcast %190 : vector<1x16xf32> to vector<64x16xf32>
    %192 = arith.mulf %187, %191 : vector<64x16xf32>
    %cst_73 = arith.constant 0.000000e+00 : f32
    %193 = vector.broadcast %cst_73 : f32 to vector<64x16xf32>
    %194 = arith.cmpf ogt, %192, %193 : vector<64x16xf32>
    %cst_74 = arith.constant 0.00999999977 : f32
    %195 = vector.broadcast %cst_74 : f32 to vector<64x16xf32>
    %196 = arith.mulf %195, %192 : vector<64x16xf32>
    %197 = arith.select %194, %192, %196 : vector<64x16xi1>, vector<64x16xf32>
    %198 = arith.truncf %197 : vector<64x16xf32> to vector<64x16xbf16>
    %199 = vector.shape_cast %198 : vector<64x16xbf16> to vector<1x8x128xbf16>
    %c0_75 = arith.constant 0 : index
    %c0_76 = arith.constant 0 : index
    %c0_77 = arith.constant 0 : index
    %200 = vector.load %arg9[%c0_75, %c0_76, %c0_77] : memref<1x8x128xbf16, #tpu.memory_space<vmem>>, vector<1x8x128xbf16>
    tpu.vector_store %arg9[%c0_75, %c0_76, %c0_77], %199 {strides = array<i32>} : memref<1x8x128xbf16, #tpu.memory_space<vmem>>, vector<1x8x128xbf16>,
    return
  }
  func.func @transform_0(%arg0: i32) -> (i32, i32, i32, i32) {
    %c0_i32 = arith.constant 0 : i32
    %c0_i32_0 = arith.constant 0 : i32
    %c0_i32_1 = arith.constant 0 : i32
    %c0_i32_2 = arith.constant 0 : i32
    return %arg0, %c0_i32, %c0_i32_0, %c0_i32_1 : i32, i32, i32, i32
  }
  func.func @transform_1(%arg0: i32) -> (i32, i32, i32, i32) {
    %c0_i32 = arith.constant 0 : i32
    %c0_i32_0 = arith.constant 0 : i32
    %c0_i32_1 = arith.constant 0 : i32
    %c0_i32_2 = arith.constant 0 : i32
    return %arg0, %c0_i32, %c0_i32_0, %c0_i32_1 : i32, i32, i32, i32
  }
  func.func @transform_2(%arg0: i32) -> (i32, i32) {
    %c0_i32 = arith.constant 0 : i32
    %c0_i32_0 = arith.constant 0 : i32
    %c0_i32_1 = arith.constant 0 : i32
    return %c0_i32, %c0_i32_0 : i32, i32
  }
  func.func @transform_3(%arg0: i32) -> (i32, i32) {
    %c0_i32 = arith.constant 0 : i32
    %c0_i32_0 = arith.constant 0 : i32
    %c0_i32_1 = arith.constant 0 : i32
    return %c0_i32, %c0_i32_0 : i32, i32
  }
  func.func @transform_4(%arg0: i32) -> (i32, i32) {
    %c0_i32 = arith.constant 0 : i32
    %c0_i32_0 = arith.constant 0 : i32
    %c0_i32_1 = arith.constant 0 : i32
    return %c0_i32, %c0_i32_0 : i32, i32
  }
  func.func @transform_5(%arg0: i32) -> (i32, i32) {
    %c0_i32 = arith.constant 0 : i32
    %c0_i32_0 = arith.constant 0 : i32
    %c0_i32_1 = arith.constant 0 : i32
    return %c0_i32, %c0_i32_0 : i32, i32
  }
  func.func @transform_6(%arg0: i32) -> (i32, i32) {
    %c0_i32 = arith.constant 0 : i32
    %c0_i32_0 = arith.constant 0 : i32
    %c0_i32_1 = arith.constant 0 : i32
    return %c0_i32, %c0_i32_0 : i32, i32
  }
  func.func @transform_7(%arg0: i32) -> (i32, i32) {
    %c0_i32 = arith.constant 0 : i32
    %c0_i32_0 = arith.constant 0 : i32
    %c0_i32_1 = arith.constant 0 : i32
    return %c0_i32, %c0_i32_0 : i32, i32
  }
  func.func @transform_8(%arg0: i32) -> (i32, i32, i32) {
    %c0_i32 = arith.constant 0 : i32
    %c0_i32_0 = arith.constant 0 : i32
    %c0_i32_1 = arith.constant 0 : i32
    return %arg0, %c0_i32, %c0_i32_0 : i32, i32, i32
  }
}

module attributes {stable_mosaic.version = 11 : i64} {
  func.func @kernel(%arg0: i32, %arg1: memref<1x4x4x32xbf16, #tpu.memory_space<vmem>>, %arg2: memref<1x8x8x16xbf16, #tpu.memory_space<vmem>>, %arg3: memref<10x4xbf16, #tpu.memory_space<vmem>>, %arg4: memref<10x4xbf16, #tpu.memory_space<vmem>>, %arg5: memref<288x16xbf16, #tpu.memory_space<vmem>>, %arg6: memref<144x16xbf16, #tpu.memory_space<vmem>>, %arg7: memref<144x16xbf16, #tpu.memory_space<vmem>>, %arg8: memref<144x16xbf16, #tpu.memory_space<vmem>>, %arg9: memref<1x8x8x16xbf16, #tpu.memory_space<vmem>>) attributes {dimension_semantics = [#tpu.dimension_semantics<parallel>], iteration_bounds = array<i64: 2>, scalar_prefetch = 0 : i64, scratch_operands = 0 : i64, tpu.core_type = #tpu.core_type<tc>, window_params = [{transform_indices = @transform_0, window_bounds = array<i64: 1, 4, 4, 32>}, {transform_indices = @transform_1, window_bounds = array<i64: 1, 8, 8, 16>}, {pipeline_mode = #tpu.pipeline_mode<synchronous>, transform_indices = @transform_2, window_bounds = array<i64: 10, 4>}, {pipeline_mode = #tpu.pipeline_mode<synchronous>, transform_indices = @transform_3, window_bounds = array<i64: 10, 4>}, {pipeline_mode = #tpu.pipeline_mode<synchronous>, transform_indices = @transform_4, window_bounds = array<i64: 288, 16>}, {pipeline_mode = #tpu.pipeline_mode<synchronous>, transform_indices = @transform_5, window_bounds = array<i64: 144, 16>}, {pipeline_mode = #tpu.pipeline_mode<synchronous>, transform_indices = @transform_6, window_bounds = array<i64: 144, 16>}, {pipeline_mode = #tpu.pipeline_mode<synchronous>, transform_indices = @transform_7, window_bounds = array<i64: 144, 16>}, {transform_indices = @transform_8, window_bounds = array<i64: 1, 8, 8, 16>}]} {
    %c0 = arith.constant 0 : index
    %c0_0 = arith.constant 0 : index
    %c0_1 = arith.constant 0 : index
    %c0_2 = arith.constant 0 : index
    %0 = vector.load %arg1[%c0, %c0_0, %c0_1, %c0_2] : memref<1x4x4x32xbf16, #tpu.memory_space<vmem>>, vector<1x4x4x32xbf16>
    %1 = vector.shape_cast %0 : vector<1x4x4x32xbf16> to vector<4x4x32xbf16>
    %c0_3 = arith.constant 0 : index
    %c0_4 = arith.constant 0 : index
    %2 = vector.load %arg4[%c0_3, %c0_4] : memref<10x4xbf16, #tpu.memory_space<vmem>>, vector<10x4xbf16>
    %3 = vector.extract_strided_slice %1 {offsets = [0, 0, 0], sizes = [1, 4, 32], strides = [1, 1, 1]} : vector<4x4x32xbf16> to vector<1x4x32xbf16>
    %4 = vector.shape_cast %3 : vector<1x4x32xbf16> to vector<4x32xbf16>
    %cst = arith.constant dense<0.000000e+00> : vector<10x32xf32>
    %5 = tpu.matmul %2, %4, %cst {dimension_numbers = #tpu.dot_dimension_numbers<[1], [0], [0], [1], [0, 0, 1, 1], [], []>} : vector<10x4xbf16>, vector<4x32xbf16>, vector<10x32xf32> -> vector<10x32xf32>
    %6 = vector.extract_strided_slice %1 {offsets = [1, 0, 0], sizes = [1, 4, 32], strides = [1, 1, 1]} : vector<4x4x32xbf16> to vector<1x4x32xbf16>
    %7 = vector.shape_cast %6 : vector<1x4x32xbf16> to vector<4x32xbf16>
    %cst_5 = arith.constant dense<0.000000e+00> : vector<10x32xf32>
    %8 = tpu.matmul %2, %7, %cst_5 {dimension_numbers = #tpu.dot_dimension_numbers<[1], [0], [0], [1], [0, 0, 1, 1], [], []>} : vector<10x4xbf16>, vector<4x32xbf16>, vector<10x32xf32> -> vector<10x32xf32>
    %9 = vector.extract_strided_slice %1 {offsets = [2, 0, 0], sizes = [1, 4, 32], strides = [1, 1, 1]} : vector<4x4x32xbf16> to vector<1x4x32xbf16>
    %10 = vector.shape_cast %9 : vector<1x4x32xbf16> to vector<4x32xbf16>
    %cst_6 = arith.constant dense<0.000000e+00> : vector<10x32xf32>
    %11 = tpu.matmul %2, %10, %cst_6 {dimension_numbers = #tpu.dot_dimension_numbers<[1], [0], [0], [1], [0, 0, 1, 1], [], []>} : vector<10x4xbf16>, vector<4x32xbf16>, vector<10x32xf32> -> vector<10x32xf32>
    %12 = vector.extract_strided_slice %1 {offsets = [3, 0, 0], sizes = [1, 4, 32], strides = [1, 1, 1]} : vector<4x4x32xbf16> to vector<1x4x32xbf16>
    %13 = vector.shape_cast %12 : vector<1x4x32xbf16> to vector<4x32xbf16>
    %cst_7 = arith.constant dense<0.000000e+00> : vector<10x32xf32>
    %14 = tpu.matmul %2, %13, %cst_7 {dimension_numbers = #tpu.dot_dimension_numbers<[1], [0], [0], [1], [0, 0, 1, 1], [], []>} : vector<10x4xbf16>, vector<4x32xbf16>, vector<10x32xf32> -> vector<10x32xf32>
    %cst_8 = arith.constant 0.000000e+00 : f32
    %15 = vector.broadcast %cst_8 : f32 to vector<10x32xf32>
    %cst_9 = arith.constant 1.000000e+00 : f32
    %16 = vector.broadcast %cst_9 : f32 to vector<10x32xf32>
    %17 = arith.mulf %16, %5 : vector<10x32xf32>
    %cst_10 = arith.constant 0.000000e+00 : f32
    %18 = vector.broadcast %cst_10 : f32 to vector<10x32xf32>
    %19 = arith.mulf %18, %8 : vector<10x32xf32>
    %20 = arith.addf %17, %19 : vector<10x32xf32>
    %cst_11 = arith.constant 0.571428597 : f32
    %21 = vector.broadcast %cst_11 : f32 to vector<10x32xf32>
    %22 = arith.mulf %21, %5 : vector<10x32xf32>
    %cst_12 = arith.constant 0.428571433 : f32
    %23 = vector.broadcast %cst_12 : f32 to vector<10x32xf32>
    %24 = arith.mulf %23, %8 : vector<10x32xf32>
    %25 = arith.addf %22, %24 : vector<10x32xf32>
    %cst_13 = arith.constant 0.142857149 : f32
    %26 = vector.broadcast %cst_13 : f32 to vector<10x32xf32>
    %27 = arith.mulf %26, %5 : vector<10x32xf32>
    %cst_14 = arith.constant 0.857142865 : f32
    %28 = vector.broadcast %cst_14 : f32 to vector<10x32xf32>
    %29 = arith.mulf %28, %8 : vector<10x32xf32>
    %30 = arith.addf %27, %29 : vector<10x32xf32>
    %cst_15 = arith.constant 0.714285731 : f32
    %31 = vector.broadcast %cst_15 : f32 to vector<10x32xf32>
    %32 = arith.mulf %31, %8 : vector<10x32xf32>
    %cst_16 = arith.constant 0.285714298 : f32
    %33 = vector.broadcast %cst_16 : f32 to vector<10x32xf32>
    %34 = arith.mulf %33, %11 : vector<10x32xf32>
    %35 = arith.addf %32, %34 : vector<10x32xf32>
    %cst_17 = arith.constant 0.285714298 : f32
    %36 = vector.broadcast %cst_17 : f32 to vector<10x32xf32>
    %37 = arith.mulf %36, %8 : vector<10x32xf32>
    %cst_18 = arith.constant 0.714285731 : f32
    %38 = vector.broadcast %cst_18 : f32 to vector<10x32xf32>
    %39 = arith.mulf %38, %11 : vector<10x32xf32>
    %40 = arith.addf %37, %39 : vector<10x32xf32>
    %cst_19 = arith.constant 0.857142865 : f32
    %41 = vector.broadcast %cst_19 : f32 to vector<10x32xf32>
    %42 = arith.mulf %41, %11 : vector<10x32xf32>
    %cst_20 = arith.constant 0.142857149 : f32
    %43 = vector.broadcast %cst_20 : f32 to vector<10x32xf32>
    %44 = arith.mulf %43, %14 : vector<10x32xf32>
    %45 = arith.addf %42, %44 : vector<10x32xf32>
    %cst_21 = arith.constant 0.428571433 : f32
    %46 = vector.broadcast %cst_21 : f32 to vector<10x32xf32>
    %47 = arith.mulf %46, %11 : vector<10x32xf32>
    %cst_22 = arith.constant 0.571428597 : f32
    %48 = vector.broadcast %cst_22 : f32 to vector<10x32xf32>
    %49 = arith.mulf %48, %14 : vector<10x32xf32>
    %50 = arith.addf %47, %49 : vector<10x32xf32>
    %cst_23 = arith.constant 1.000000e+00 : f32
    %51 = vector.broadcast %cst_23 : f32 to vector<10x32xf32>
    %52 = arith.mulf %51, %14 : vector<10x32xf32>
    %cst_24 = arith.constant 0.000000e+00 : f32
    %53 = vector.broadcast %cst_24 : f32 to vector<10x32xf32>
    %54 = arith.mulf %53, %14 : vector<10x32xf32>
    %55 = arith.addf %52, %54 : vector<10x32xf32>
    %56 = vector.shape_cast %15 : vector<10x32xf32> to vector<1x10x32xf32>
    %57 = vector.shape_cast %20 : vector<10x32xf32> to vector<1x10x32xf32>
    %58 = vector.shape_cast %25 : vector<10x32xf32> to vector<1x10x32xf32>
    %59 = vector.shape_cast %30 : vector<10x32xf32> to vector<1x10x32xf32>
    %60 = vector.shape_cast %35 : vector<10x32xf32> to vector<1x10x32xf32>
    %61 = vector.shape_cast %40 : vector<10x32xf32> to vector<1x10x32xf32>
    %62 = vector.shape_cast %45 : vector<10x32xf32> to vector<1x10x32xf32>
    %63 = vector.shape_cast %50 : vector<10x32xf32> to vector<1x10x32xf32>
    %64 = vector.shape_cast %55 : vector<10x32xf32> to vector<1x10x32xf32>
    %65 = vector.shape_cast %15 : vector<10x32xf32> to vector<1x10x32xf32>
    %66 = tpu.concatenate %56, %57, %58, %59, %60, %61, %62, %63, %64, %65 in 0 : vector<1x10x32xf32>, vector<1x10x32xf32>, vector<1x10x32xf32>, vector<1x10x32xf32>, vector<1x10x32xf32>, vector<1x10x32xf32>, vector<1x10x32xf32>, vector<1x10x32xf32>, vector<1x10x32xf32>, vector<1x10x32xf32> -> vector<10x10x32xf32>
    %67 = arith.truncf %66 : vector<10x10x32xf32> to vector<10x10x32xbf16>
    %68 = vector.extract_strided_slice %67 {offsets = [0, 0, 0], sizes = [8, 8, 32], strides = [1, 1, 1]} : vector<10x10x32xbf16> to vector<8x8x32xbf16>
    %69 = vector.extract_strided_slice %67 {offsets = [0, 1, 0], sizes = [8, 8, 32], strides = [1, 1, 1]} : vector<10x10x32xbf16> to vector<8x8x32xbf16>
    %70 = vector.extract_strided_slice %67 {offsets = [0, 2, 0], sizes = [8, 8, 32], strides = [1, 1, 1]} : vector<10x10x32xbf16> to vector<8x8x32xbf16>
    %71 = tpu.concatenate %68, %69, %70 in 2 : vector<8x8x32xbf16>, vector<8x8x32xbf16>, vector<8x8x32xbf16> -> vector<8x8x96xbf16>
    %72 = vector.shape_cast %71 : vector<8x8x96xbf16> to vector<64x96xbf16>
    %c0_25 = arith.constant 0 : index
    %c0_26 = arith.constant 0 : index
    %73 = vector.load %arg5[%c0_25, %c0_26] : memref<288x16xbf16, #tpu.memory_space<vmem>>, vector<96x16xbf16>
    %cst_27 = arith.constant dense<0.000000e+00> : vector<64x16xf32>
    %74 = tpu.matmul %72, %73, %cst_27 {dimension_numbers = #tpu.dot_dimension_numbers<[1], [0], [0], [1], [0, 0, 1, 1], [], []>} : vector<64x96xbf16>, vector<96x16xbf16>, vector<64x16xf32> -> vector<64x16xf32>
    %75 = vector.extract_strided_slice %67 {offsets = [1, 0, 0], sizes = [8, 8, 32], strides = [1, 1, 1]} : vector<10x10x32xbf16> to vector<8x8x32xbf16>
    %76 = vector.extract_strided_slice %67 {offsets = [1, 1, 0], sizes = [8, 8, 32], strides = [1, 1, 1]} : vector<10x10x32xbf16> to vector<8x8x32xbf16>
    %77 = vector.extract_strided_slice %67 {offsets = [1, 2, 0], sizes = [8, 8, 32], strides = [1, 1, 1]} : vector<10x10x32xbf16> to vector<8x8x32xbf16>
    %78 = tpu.concatenate %75, %76, %77 in 2 : vector<8x8x32xbf16>, vector<8x8x32xbf16>, vector<8x8x32xbf16> -> vector<8x8x96xbf16>
    %79 = vector.shape_cast %78 : vector<8x8x96xbf16> to vector<64x96xbf16>
    %c96 = arith.constant 96 : index
    %c0_28 = arith.constant 0 : index
    %80 = vector.load %arg5[%c96, %c0_28] : memref<288x16xbf16, #tpu.memory_space<vmem>>, vector<96x16xbf16>
    %cst_29 = arith.constant dense<0.000000e+00> : vector<64x16xf32>
    %81 = tpu.matmul %79, %80, %cst_29 {dimension_numbers = #tpu.dot_dimension_numbers<[1], [0], [0], [1], [0, 0, 1, 1], [], []>} : vector<64x96xbf16>, vector<96x16xbf16>, vector<64x16xf32> -> vector<64x16xf32>
    %82 = arith.addf %74, %81 : vector<64x16xf32>
    %83 = vector.extract_strided_slice %67 {offsets = [2, 0, 0], sizes = [8, 8, 32], strides = [1, 1, 1]} : vector<10x10x32xbf16> to vector<8x8x32xbf16>
    %84 = vector.extract_strided_slice %67 {offsets = [2, 1, 0], sizes = [8, 8, 32], strides = [1, 1, 1]} : vector<10x10x32xbf16> to vector<8x8x32xbf16>
    %85 = vector.extract_strided_slice %67 {offsets = [2, 2, 0], sizes = [8, 8, 32], strides = [1, 1, 1]} : vector<10x10x32xbf16> to vector<8x8x32xbf16>
    %86 = tpu.concatenate %83, %84, %85 in 2 : vector<8x8x32xbf16>, vector<8x8x32xbf16>, vector<8x8x32xbf16> -> vector<8x8x96xbf16>
    %87 = vector.shape_cast %86 : vector<8x8x96xbf16> to vector<64x96xbf16>
    %c192 = arith.constant 192 : index
    %c0_30 = arith.constant 0 : index
    %88 = vector.load %arg5[%c192, %c0_30] : memref<288x16xbf16, #tpu.memory_space<vmem>>, vector<96x16xbf16>
    %cst_31 = arith.constant dense<0.000000e+00> : vector<64x16xf32>
    %89 = tpu.matmul %87, %88, %cst_31 {dimension_numbers = #tpu.dot_dimension_numbers<[1], [0], [0], [1], [0, 0, 1, 1], [], []>} : vector<64x96xbf16>, vector<96x16xbf16>, vector<64x16xf32> -> vector<64x16xf32>
    %90 = arith.addf %82, %89 : vector<64x16xf32>
    %cst_32 = arith.constant dense<0.000000e+00> : vector<16xf32>
    %91 = vector.multi_reduction <add>, %90, %cst_32 [0] : vector<64x16xf32> to vector<16xf32>
    %92 = vector.shape_cast %91 : vector<16xf32> to vector<1x16xf32>
    %cst_33 = arith.constant 6.400000e+01 : f32
    %93 = vector.broadcast %cst_33 : f32 to vector<1x16xf32>
    %94 = arith.divf %92, %93 : vector<1x16xf32>
    %95 = arith.mulf %90, %90 : vector<64x16xf32>
    %cst_34 = arith.constant dense<0.000000e+00> : vector<16xf32>
    %96 = vector.multi_reduction <add>, %95, %cst_34 [0] : vector<64x16xf32> to vector<16xf32>
    %97 = vector.shape_cast %96 : vector<16xf32> to vector<1x16xf32>
    %cst_35 = arith.constant 6.400000e+01 : f32
    %98 = vector.broadcast %cst_35 : f32 to vector<1x16xf32>
    %99 = arith.divf %97, %98 : vector<1x16xf32>
    %100 = arith.mulf %94, %94 : vector<1x16xf32>
    %101 = arith.subf %99, %100 : vector<1x16xf32>
    %cst_36 = arith.constant 0.000000e+00 : f32
    %102 = vector.broadcast %cst_36 : f32 to vector<1x16xf32>
    %103 = arith.maximumf %101, %102 : vector<1x16xf32>
    %104 = vector.broadcast %94 : vector<1x16xf32> to vector<64x16xf32>
    %105 = arith.subf %90, %104 : vector<64x16xf32>
    %cst_37 = arith.constant 9.99999974E-6 : f32
    %106 = vector.broadcast %cst_37 : f32 to vector<1x16xf32>
    %107 = arith.addf %103, %106 : vector<1x16xf32>
    %108 = math.rsqrt %107 : vector<1x16xf32>
    %109 = vector.broadcast %108 : vector<1x16xf32> to vector<64x16xf32>
    %110 = arith.mulf %105, %109 : vector<64x16xf32>
    %cst_38 = arith.constant 0.000000e+00 : f32
    %111 = vector.broadcast %cst_38 : f32 to vector<64x16xf32>
    %112 = arith.cmpf ogt, %110, %111 : vector<64x16xf32>
    %cst_39 = arith.constant 0.00999999977 : f32
    %113 = vector.broadcast %cst_39 : f32 to vector<64x16xf32>
    %114 = arith.mulf %113, %110 : vector<64x16xf32>
    %115 = arith.select %112, %110, %114 : vector<64x16xi1>, vector<64x16xf32>
    %116 = vector.shape_cast %115 : vector<64x16xf32> to vector<8x8x16xf32>
    %117 = arith.truncf %116 : vector<8x8x16xf32> to vector<8x8x16xbf16>
    %c0_40 = arith.constant 0 : index
    %c0_41 = arith.constant 0 : index
    %c0_42 = arith.constant 0 : index
    %c0_43 = arith.constant 0 : index
    %118 = vector.load %arg2[%c0_40, %c0_41, %c0_42, %c0_43] : memref<1x8x8x16xbf16, #tpu.memory_space<vmem>>, vector<1x8x8x16xbf16>
    %119 = vector.shape_cast %118 : vector<1x8x8x16xbf16> to vector<8x8x16xbf16>
    %cst_44 = arith.constant 0.000000e+00 : bf16
    %120 = vector.broadcast %cst_44 : bf16 to vector<1x8x16xbf16>
    %121 = tpu.concatenate %120, %119, %120 in 0 : vector<1x8x16xbf16>, vector<8x8x16xbf16>, vector<1x8x16xbf16> -> vector<10x8x16xbf16>
    %cst_45 = arith.constant 0.000000e+00 : bf16
    %122 = vector.broadcast %cst_45 : bf16 to vector<10x1x16xbf16>
    %123 = tpu.concatenate %122, %121, %122 in 1 : vector<10x1x16xbf16>, vector<10x8x16xbf16>, vector<10x1x16xbf16> -> vector<10x10x16xbf16>
    %124 = vector.extract_strided_slice %123 {offsets = [0, 0, 0], sizes = [8, 8, 16], strides = [1, 1, 1]} : vector<10x10x16xbf16> to vector<8x8x16xbf16>
    %125 = vector.extract_strided_slice %123 {offsets = [0, 1, 0], sizes = [8, 8, 16], strides = [1, 1, 1]} : vector<10x10x16xbf16> to vector<8x8x16xbf16>
    %126 = vector.extract_strided_slice %123 {offsets = [0, 2, 0], sizes = [8, 8, 16], strides = [1, 1, 1]} : vector<10x10x16xbf16> to vector<8x8x16xbf16>
    %127 = tpu.concatenate %124, %125, %126 in 2 : vector<8x8x16xbf16>, vector<8x8x16xbf16>, vector<8x8x16xbf16> -> vector<8x8x48xbf16>
    %128 = vector.shape_cast %127 : vector<8x8x48xbf16> to vector<64x48xbf16>
    %c0_46 = arith.constant 0 : index
    %c0_47 = arith.constant 0 : index
    %129 = vector.load %arg6[%c0_46, %c0_47] : memref<144x16xbf16, #tpu.memory_space<vmem>>, vector<48x16xbf16>
    %cst_48 = arith.constant dense<0.000000e+00> : vector<64x16xf32>
    %130 = tpu.matmul %128, %129, %cst_48 {dimension_numbers = #tpu.dot_dimension_numbers<[1], [0], [0], [1], [0, 0, 1, 1], [], []>} : vector<64x48xbf16>, vector<48x16xbf16>, vector<64x16xf32> -> vector<64x16xf32>
    %131 = vector.extract_strided_slice %123 {offsets = [1, 0, 0], sizes = [8, 8, 16], strides = [1, 1, 1]} : vector<10x10x16xbf16> to vector<8x8x16xbf16>
    %132 = vector.extract_strided_slice %123 {offsets = [1, 1, 0], sizes = [8, 8, 16], strides = [1, 1, 1]} : vector<10x10x16xbf16> to vector<8x8x16xbf16>
    %133 = vector.extract_strided_slice %123 {offsets = [1, 2, 0], sizes = [8, 8, 16], strides = [1, 1, 1]} : vector<10x10x16xbf16> to vector<8x8x16xbf16>
    %134 = tpu.concatenate %131, %132, %133 in 2 : vector<8x8x16xbf16>, vector<8x8x16xbf16>, vector<8x8x16xbf16> -> vector<8x8x48xbf16>
    %135 = vector.shape_cast %134 : vector<8x8x48xbf16> to vector<64x48xbf16>
    %c48 = arith.constant 48 : index
    %c0_49 = arith.constant 0 : index
    %136 = vector.load %arg6[%c48, %c0_49] : memref<144x16xbf16, #tpu.memory_space<vmem>>, vector<48x16xbf16>
    %cst_50 = arith.constant dense<0.000000e+00> : vector<64x16xf32>
    %137 = tpu.matmul %135, %136, %cst_50 {dimension_numbers = #tpu.dot_dimension_numbers<[1], [0], [0], [1], [0, 0, 1, 1], [], []>} : vector<64x48xbf16>, vector<48x16xbf16>, vector<64x16xf32> -> vector<64x16xf32>
    %138 = arith.addf %130, %137 : vector<64x16xf32>
    %139 = vector.extract_strided_slice %123 {offsets = [2, 0, 0], sizes = [8, 8, 16], strides = [1, 1, 1]} : vector<10x10x16xbf16> to vector<8x8x16xbf16>
    %140 = vector.extract_strided_slice %123 {offsets = [2, 1, 0], sizes = [8, 8, 16], strides = [1, 1, 1]} : vector<10x10x16xbf16> to vector<8x8x16xbf16>
    %141 = vector.extract_strided_slice %123 {offsets = [2, 2, 0], sizes = [8, 8, 16], strides = [1, 1, 1]} : vector<10x10x16xbf16> to vector<8x8x16xbf16>
    %142 = tpu.concatenate %139, %140, %141 in 2 : vector<8x8x16xbf16>, vector<8x8x16xbf16>, vector<8x8x16xbf16> -> vector<8x8x48xbf16>
    %143 = vector.shape_cast %142 : vector<8x8x48xbf16> to vector<64x48xbf16>
    %c96_51 = arith.constant 96 : index
    %c0_52 = arith.constant 0 : index
    %144 = vector.load %arg6[%c96_51, %c0_52] : memref<144x16xbf16, #tpu.memory_space<vmem>>, vector<48x16xbf16>
    %cst_53 = arith.constant dense<0.000000e+00> : vector<64x16xf32>
    %145 = tpu.matmul %143, %144, %cst_53 {dimension_numbers = #tpu.dot_dimension_numbers<[1], [0], [0], [1], [0, 0, 1, 1], [], []>} : vector<64x48xbf16>, vector<48x16xbf16>, vector<64x16xf32> -> vector<64x16xf32>
    %146 = arith.addf %138, %145 : vector<64x16xf32>
    %cst_54 = arith.constant 0.000000e+00 : bf16
    %147 = vector.broadcast %cst_54 : bf16 to vector<1x8x16xbf16>
    %148 = tpu.concatenate %147, %117, %147 in 0 : vector<1x8x16xbf16>, vector<8x8x16xbf16>, vector<1x8x16xbf16> -> vector<10x8x16xbf16>
    %cst_55 = arith.constant 0.000000e+00 : bf16
    %149 = vector.broadcast %cst_55 : bf16 to vector<10x1x16xbf16>
    %150 = tpu.concatenate %149, %148, %149 in 1 : vector<10x1x16xbf16>, vector<10x8x16xbf16>, vector<10x1x16xbf16> -> vector<10x10x16xbf16>
    %151 = vector.extract_strided_slice %150 {offsets = [0, 0, 0], sizes = [8, 8, 16], strides = [1, 1, 1]} : vector<10x10x16xbf16> to vector<8x8x16xbf16>
    %152 = vector.extract_strided_slice %150 {offsets = [0, 1, 0], sizes = [8, 8, 16], strides = [1, 1, 1]} : vector<10x10x16xbf16> to vector<8x8x16xbf16>
    %153 = vector.extract_strided_slice %150 {offsets = [0, 2, 0], sizes = [8, 8, 16], strides = [1, 1, 1]} : vector<10x10x16xbf16> to vector<8x8x16xbf16>
    %154 = tpu.concatenate %151, %152, %153 in 2 : vector<8x8x16xbf16>, vector<8x8x16xbf16>, vector<8x8x16xbf16> -> vector<8x8x48xbf16>
    %155 = vector.shape_cast %154 : vector<8x8x48xbf16> to vector<64x48xbf16>
    %c0_56 = arith.constant 0 : index
    %c0_57 = arith.constant 0 : index
    %156 = vector.load %arg7[%c0_56, %c0_57] : memref<144x16xbf16, #tpu.memory_space<vmem>>, vector<48x16xbf16>
    %cst_58 = arith.constant dense<0.000000e+00> : vector<64x16xf32>
    %157 = tpu.matmul %155, %156, %cst_58 {dimension_numbers = #tpu.dot_dimension_numbers<[1], [0], [0], [1], [0, 0, 1, 1], [], []>} : vector<64x48xbf16>, vector<48x16xbf16>, vector<64x16xf32> -> vector<64x16xf32>
    %158 = vector.extract_strided_slice %150 {offsets = [1, 0, 0], sizes = [8, 8, 16], strides = [1, 1, 1]} : vector<10x10x16xbf16> to vector<8x8x16xbf16>
    %159 = vector.extract_strided_slice %150 {offsets = [1, 1, 0], sizes = [8, 8, 16], strides = [1, 1, 1]} : vector<10x10x16xbf16> to vector<8x8x16xbf16>
    %160 = vector.extract_strided_slice %150 {offsets = [1, 2, 0], sizes = [8, 8, 16], strides = [1, 1, 1]} : vector<10x10x16xbf16> to vector<8x8x16xbf16>
    %161 = tpu.concatenate %158, %159, %160 in 2 : vector<8x8x16xbf16>, vector<8x8x16xbf16>, vector<8x8x16xbf16> -> vector<8x8x48xbf16>
    %162 = vector.shape_cast %161 : vector<8x8x48xbf16> to vector<64x48xbf16>
    %c48_59 = arith.constant 48 : index
    %c0_60 = arith.constant 0 : index
    %163 = vector.load %arg7[%c48_59, %c0_60] : memref<144x16xbf16, #tpu.memory_space<vmem>>, vector<48x16xbf16>
    %cst_61 = arith.constant dense<0.000000e+00> : vector<64x16xf32>
    %164 = tpu.matmul %162, %163, %cst_61 {dimension_numbers = #tpu.dot_dimension_numbers<[1], [0], [0], [1], [0, 0, 1, 1], [], []>} : vector<64x48xbf16>, vector<48x16xbf16>, vector<64x16xf32> -> vector<64x16xf32>
    %165 = arith.addf %157, %164 : vector<64x16xf32>
    %166 = vector.extract_strided_slice %150 {offsets = [2, 0, 0], sizes = [8, 8, 16], strides = [1, 1, 1]} : vector<10x10x16xbf16> to vector<8x8x16xbf16>
    %167 = vector.extract_strided_slice %150 {offsets = [2, 1, 0], sizes = [8, 8, 16], strides = [1, 1, 1]} : vector<10x10x16xbf16> to vector<8x8x16xbf16>
    %168 = vector.extract_strided_slice %150 {offsets = [2, 2, 0], sizes = [8, 8, 16], strides = [1, 1, 1]} : vector<10x10x16xbf16> to vector<8x8x16xbf16>
    %169 = tpu.concatenate %166, %167, %168 in 2 : vector<8x8x16xbf16>, vector<8x8x16xbf16>, vector<8x8x16xbf16> -> vector<8x8x48xbf16>
    %170 = vector.shape_cast %169 : vector<8x8x48xbf16> to vector<64x48xbf16>
    %c96_62 = arith.constant 96 : index
    %c0_63 = arith.constant 0 : index
    %171 = vector.load %arg7[%c96_62, %c0_63] : memref<144x16xbf16, #tpu.memory_space<vmem>>, vector<48x16xbf16>
    %cst_64 = arith.constant dense<0.000000e+00> : vector<64x16xf32>
    %172 = tpu.matmul %170, %171, %cst_64 {dimension_numbers = #tpu.dot_dimension_numbers<[1], [0], [0], [1], [0, 0, 1, 1], [], []>} : vector<64x48xbf16>, vector<48x16xbf16>, vector<64x16xf32> -> vector<64x16xf32>
    %173 = arith.addf %165, %172 : vector<64x16xf32>
    %174 = arith.addf %146, %173 : vector<64x16xf32>
    %cst_65 = arith.constant dense<0.000000e+00> : vector<16xf32>
    %175 = vector.multi_reduction <add>, %174, %cst_65 [0] : vector<64x16xf32> to vector<16xf32>
    %176 = vector.shape_cast %175 : vector<16xf32> to vector<1x16xf32>
    %cst_66 = arith.constant 6.400000e+01 : f32
    %177 = vector.broadcast %cst_66 : f32 to vector<1x16xf32>
    %178 = arith.divf %176, %177 : vector<1x16xf32>
    %179 = arith.mulf %174, %174 : vector<64x16xf32>
    %cst_67 = arith.constant dense<0.000000e+00> : vector<16xf32>
    %180 = vector.multi_reduction <add>, %179, %cst_67 [0] : vector<64x16xf32> to vector<16xf32>
    %181 = vector.shape_cast %180 : vector<16xf32> to vector<1x16xf32>
    %cst_68 = arith.constant 6.400000e+01 : f32
    %182 = vector.broadcast %cst_68 : f32 to vector<1x16xf32>
    %183 = arith.divf %181, %182 : vector<1x16xf32>
    %184 = arith.mulf %178, %178 : vector<1x16xf32>
    %185 = arith.subf %183, %184 : vector<1x16xf32>
    %cst_69 = arith.constant 0.000000e+00 : f32
    %186 = vector.broadcast %cst_69 : f32 to vector<1x16xf32>
    %187 = arith.maximumf %185, %186 : vector<1x16xf32>
    %188 = vector.broadcast %178 : vector<1x16xf32> to vector<64x16xf32>
    %189 = arith.subf %174, %188 : vector<64x16xf32>
    %cst_70 = arith.constant 9.99999974E-6 : f32
    %190 = vector.broadcast %cst_70 : f32 to vector<1x16xf32>
    %191 = arith.addf %187, %190 : vector<1x16xf32>
    %192 = math.rsqrt %191 : vector<1x16xf32>
    %193 = vector.broadcast %192 : vector<1x16xf32> to vector<64x16xf32>
    %194 = arith.mulf %189, %193 : vector<64x16xf32>
    %cst_71 = arith.constant 0.000000e+00 : f32
    %195 = vector.broadcast %cst_71 : f32 to vector<64x16xf32>
    %196 = arith.cmpf ogt, %194, %195 : vector<64x16xf32>
    %cst_72 = arith.constant 0.00999999977 : f32
    %197 = vector.broadcast %cst_72 : f32 to vector<64x16xf32>
    %198 = arith.mulf %197, %194 : vector<64x16xf32>
    %199 = arith.select %196, %194, %198 : vector<64x16xi1>, vector<64x16xf32>
    %200 = vector.shape_cast %199 : vector<64x16xf32> to vector<8x8x16xf32>
    %201 = arith.truncf %200 : vector<8x8x16xf32> to vector<8x8x16xbf16>
    %cst_73 = arith.constant 0.000000e+00 : bf16
    %202 = vector.broadcast %cst_73 : bf16 to vector<1x8x16xbf16>
    %203 = tpu.concatenate %202, %201, %202 in 0 : vector<1x8x16xbf16>, vector<8x8x16xbf16>, vector<1x8x16xbf16> -> vector<10x8x16xbf16>
    %cst_74 = arith.constant 0.000000e+00 : bf16
    %204 = vector.broadcast %cst_74 : bf16 to vector<10x1x16xbf16>
    %205 = tpu.concatenate %204, %203, %204 in 1 : vector<10x1x16xbf16>, vector<10x8x16xbf16>, vector<10x1x16xbf16> -> vector<10x10x16xbf16>
    %206 = vector.extract_strided_slice %205 {offsets = [0, 0, 0], sizes = [8, 8, 16], strides = [1, 1, 1]} : vector<10x10x16xbf16> to vector<8x8x16xbf16>
    %207 = vector.extract_strided_slice %205 {offsets = [0, 1, 0], sizes = [8, 8, 16], strides = [1, 1, 1]} : vector<10x10x16xbf16> to vector<8x8x16xbf16>
    %208 = vector.extract_strided_slice %205 {offsets = [0, 2, 0], sizes = [8, 8, 16], strides = [1, 1, 1]} : vector<10x10x16xbf16> to vector<8x8x16xbf16>
    %209 = tpu.concatenate %206, %207, %208 in 2 : vector<8x8x16xbf16>, vector<8x8x16xbf16>, vector<8x8x16xbf16> -> vector<8x8x48xbf16>
    %210 = vector.shape_cast %209 : vector<8x8x48xbf16> to vector<64x48xbf16>
    %c0_75 = arith.constant 0 : index
    %c0_76 = arith.constant 0 : index
    %211 = vector.load %arg8[%c0_75, %c0_76] : memref<144x16xbf16, #tpu.memory_space<vmem>>, vector<48x16xbf16>
    %cst_77 = arith.constant dense<0.000000e+00> : vector<64x16xf32>
    %212 = tpu.matmul %210, %211, %cst_77 {dimension_numbers = #tpu.dot_dimension_numbers<[1], [0], [0], [1], [0, 0, 1, 1], [], []>} : vector<64x48xbf16>, vector<48x16xbf16>, vector<64x16xf32> -> vector<64x16xf32>
    %213 = vector.extract_strided_slice %205 {offsets = [1, 0, 0], sizes = [8, 8, 16], strides = [1, 1, 1]} : vector<10x10x16xbf16> to vector<8x8x16xbf16>
    %214 = vector.extract_strided_slice %205 {offsets = [1, 1, 0], sizes = [8, 8, 16], strides = [1, 1, 1]} : vector<10x10x16xbf16> to vector<8x8x16xbf16>
    %215 = vector.extract_strided_slice %205 {offsets = [1, 2, 0], sizes = [8, 8, 16], strides = [1, 1, 1]} : vector<10x10x16xbf16> to vector<8x8x16xbf16>
    %216 = tpu.concatenate %213, %214, %215 in 2 : vector<8x8x16xbf16>, vector<8x8x16xbf16>, vector<8x8x16xbf16> -> vector<8x8x48xbf16>
    %217 = vector.shape_cast %216 : vector<8x8x48xbf16> to vector<64x48xbf16>
    %c48_78 = arith.constant 48 : index
    %c0_79 = arith.constant 0 : index
    %218 = vector.load %arg8[%c48_78, %c0_79] : memref<144x16xbf16, #tpu.memory_space<vmem>>, vector<48x16xbf16>
    %cst_80 = arith.constant dense<0.000000e+00> : vector<64x16xf32>
    %219 = tpu.matmul %217, %218, %cst_80 {dimension_numbers = #tpu.dot_dimension_numbers<[1], [0], [0], [1], [0, 0, 1, 1], [], []>} : vector<64x48xbf16>, vector<48x16xbf16>, vector<64x16xf32> -> vector<64x16xf32>
    %220 = arith.addf %212, %219 : vector<64x16xf32>
    %221 = vector.extract_strided_slice %205 {offsets = [2, 0, 0], sizes = [8, 8, 16], strides = [1, 1, 1]} : vector<10x10x16xbf16> to vector<8x8x16xbf16>
    %222 = vector.extract_strided_slice %205 {offsets = [2, 1, 0], sizes = [8, 8, 16], strides = [1, 1, 1]} : vector<10x10x16xbf16> to vector<8x8x16xbf16>
    %223 = vector.extract_strided_slice %205 {offsets = [2, 2, 0], sizes = [8, 8, 16], strides = [1, 1, 1]} : vector<10x10x16xbf16> to vector<8x8x16xbf16>
    %224 = tpu.concatenate %221, %222, %223 in 2 : vector<8x8x16xbf16>, vector<8x8x16xbf16>, vector<8x8x16xbf16> -> vector<8x8x48xbf16>
    %225 = vector.shape_cast %224 : vector<8x8x48xbf16> to vector<64x48xbf16>
    %c96_81 = arith.constant 96 : index
    %c0_82 = arith.constant 0 : index
    %226 = vector.load %arg8[%c96_81, %c0_82] : memref<144x16xbf16, #tpu.memory_space<vmem>>, vector<48x16xbf16>
    %cst_83 = arith.constant dense<0.000000e+00> : vector<64x16xf32>
    %227 = tpu.matmul %225, %226, %cst_83 {dimension_numbers = #tpu.dot_dimension_numbers<[1], [0], [0], [1], [0, 0, 1, 1], [], []>} : vector<64x48xbf16>, vector<48x16xbf16>, vector<64x16xf32> -> vector<64x16xf32>
    %228 = arith.addf %220, %227 : vector<64x16xf32>
    %cst_84 = arith.constant dense<0.000000e+00> : vector<16xf32>
    %229 = vector.multi_reduction <add>, %228, %cst_84 [0] : vector<64x16xf32> to vector<16xf32>
    %230 = vector.shape_cast %229 : vector<16xf32> to vector<1x16xf32>
    %cst_85 = arith.constant 6.400000e+01 : f32
    %231 = vector.broadcast %cst_85 : f32 to vector<1x16xf32>
    %232 = arith.divf %230, %231 : vector<1x16xf32>
    %233 = arith.mulf %228, %228 : vector<64x16xf32>
    %cst_86 = arith.constant dense<0.000000e+00> : vector<16xf32>
    %234 = vector.multi_reduction <add>, %233, %cst_86 [0] : vector<64x16xf32> to vector<16xf32>
    %235 = vector.shape_cast %234 : vector<16xf32> to vector<1x16xf32>
    %cst_87 = arith.constant 6.400000e+01 : f32
    %236 = vector.broadcast %cst_87 : f32 to vector<1x16xf32>
    %237 = arith.divf %235, %236 : vector<1x16xf32>
    %238 = arith.mulf %232, %232 : vector<1x16xf32>
    %239 = arith.subf %237, %238 : vector<1x16xf32>
    %cst_88 = arith.constant 0.000000e+00 : f32
    %240 = vector.broadcast %cst_88 : f32 to vector<1x16xf32>
    %241 = arith.maximumf %239, %240 : vector<1x16xf32>
    %242 = vector.broadcast %232 : vector<1x16xf32> to vector<64x16xf32>
    %243 = arith.subf %228, %242 : vector<64x16xf32>
    %cst_89 = arith.constant 9.99999974E-6 : f32
    %244 = vector.broadcast %cst_89 : f32 to vector<1x16xf32>
    %245 = arith.addf %241, %244 : vector<1x16xf32>
    %246 = math.rsqrt %245 : vector<1x16xf32>
    %247 = vector.broadcast %246 : vector<1x16xf32> to vector<64x16xf32>
    %248 = arith.mulf %243, %247 : vector<64x16xf32>
    %cst_90 = arith.constant 0.000000e+00 : f32
    %249 = vector.broadcast %cst_90 : f32 to vector<64x16xf32>
    %250 = arith.cmpf ogt, %248, %249 : vector<64x16xf32>
    %cst_91 = arith.constant 0.00999999977 : f32
    %251 = vector.broadcast %cst_91 : f32 to vector<64x16xf32>
    %252 = arith.mulf %251, %248 : vector<64x16xf32>
    %253 = arith.select %250, %248, %252 : vector<64x16xi1>, vector<64x16xf32>
    %254 = vector.shape_cast %253 : vector<64x16xf32> to vector<1x8x8x16xf32>
    %255 = arith.truncf %254 : vector<1x8x8x16xf32> to vector<1x8x8x16xbf16>
    %c0_92 = arith.constant 0 : index
    %c0_93 = arith.constant 0 : index
    %c0_94 = arith.constant 0 : index
    %c0_95 = arith.constant 0 : index
    %256 = vector.load %arg9[%c0_92, %c0_93, %c0_94, %c0_95] : memref<1x8x8x16xbf16, #tpu.memory_space<vmem>>, vector<1x8x8x16xbf16>
    tpu.vector_store %arg9[%c0_92, %c0_93, %c0_94, %c0_95], %255 {strides = array<i32>} : memref<1x8x8x16xbf16, #tpu.memory_space<vmem>>, vector<1x8x8x16xbf16>,
    return
  }
  func.func @transform_0(%arg0: i32) -> (i32, i32, i32, i32) {
    %c0_i32 = arith.constant 0 : i32
    %c0_i32_0 = arith.constant 0 : i32
    %c0_i32_1 = arith.constant 0 : i32
    %c0_i32_2 = arith.constant 0 : i32
    return %arg0, %c0_i32, %c0_i32_0, %c0_i32_1 : i32, i32, i32, i32
  }
  func.func @transform_1(%arg0: i32) -> (i32, i32, i32, i32) {
    %c0_i32 = arith.constant 0 : i32
    %c0_i32_0 = arith.constant 0 : i32
    %c0_i32_1 = arith.constant 0 : i32
    %c0_i32_2 = arith.constant 0 : i32
    return %arg0, %c0_i32, %c0_i32_0, %c0_i32_1 : i32, i32, i32, i32
  }
  func.func @transform_2(%arg0: i32) -> (i32, i32) {
    %c0_i32 = arith.constant 0 : i32
    %c0_i32_0 = arith.constant 0 : i32
    %c0_i32_1 = arith.constant 0 : i32
    return %c0_i32, %c0_i32_0 : i32, i32
  }
  func.func @transform_3(%arg0: i32) -> (i32, i32) {
    %c0_i32 = arith.constant 0 : i32
    %c0_i32_0 = arith.constant 0 : i32
    %c0_i32_1 = arith.constant 0 : i32
    return %c0_i32, %c0_i32_0 : i32, i32
  }
  func.func @transform_4(%arg0: i32) -> (i32, i32) {
    %c0_i32 = arith.constant 0 : i32
    %c0_i32_0 = arith.constant 0 : i32
    %c0_i32_1 = arith.constant 0 : i32
    return %c0_i32, %c0_i32_0 : i32, i32
  }
  func.func @transform_5(%arg0: i32) -> (i32, i32) {
    %c0_i32 = arith.constant 0 : i32
    %c0_i32_0 = arith.constant 0 : i32
    %c0_i32_1 = arith.constant 0 : i32
    return %c0_i32, %c0_i32_0 : i32, i32
  }
  func.func @transform_6(%arg0: i32) -> (i32, i32) {
    %c0_i32 = arith.constant 0 : i32
    %c0_i32_0 = arith.constant 0 : i32
    %c0_i32_1 = arith.constant 0 : i32
    return %c0_i32, %c0_i32_0 : i32, i32
  }
  func.func @transform_7(%arg0: i32) -> (i32, i32) {
    %c0_i32 = arith.constant 0 : i32
    %c0_i32_0 = arith.constant 0 : i32
    %c0_i32_1 = arith.constant 0 : i32
    return %c0_i32, %c0_i32_0 : i32, i32
  }
  func.func @transform_8(%arg0: i32) -> (i32, i32, i32, i32) {
    %c0_i32 = arith.constant 0 : i32
    %c0_i32_0 = arith.constant 0 : i32
    %c0_i32_1 = arith.constant 0 : i32
    %c0_i32_2 = arith.constant 0 : i32
    return %arg0, %c0_i32, %c0_i32_0, %c0_i32_1 : i32, i32, i32, i32
  }
}

</mosaic_0001>

<llo_original>
// kernel: tpu_custom_call.1
$region0: #{tpu_custom_call.1}
  #allocation0 [shape = 'u32[]', space=smem, size = 0x4, offset = 0x4, fixed_abs, tag = 'smem constant byte address 0x4 - core index']
  #allocation1 [shape = 'u32[144,128]{1,0:T(1,128)}', space=vmem, size = 0x12000, scoped, tag = 'internal scratch']
  %s0 = inlined_call_operand.vmem [shape: bf16[2,4,4,32], index: 0, kind: input, shape index: {}]
  %s1 = inlined_call_operand.vmem [shape: bf16[2,8,8,16], index: 1, kind: input, shape index: {}]
  %s2 = inlined_call_operand.vmem [shape: bf16[10,4], index: 2, kind: input, shape index: {}]
  %s3 = inlined_call_operand.vmem [shape: bf16[10,4], index: 3, kind: input, shape index: {}]
  %s4 = inlined_call_operand.vmem [shape: bf16[288,16], index: 4, kind: input, shape index: {}]
  %s5 = inlined_call_operand.vmem [shape: bf16[144,16], index: 5, kind: input, shape index: {}]
  %s6 = inlined_call_operand.vmem [shape: bf16[144,16], index: 6, kind: input, shape index: {}]
  %s7 = inlined_call_operand.vmem [shape: bf16[144,16], index: 7, kind: input, shape index: {}]
  %s8 = inlined_call_operand.hbm [shape: bf16[2,8,8,16], index: 8, kind: output, shape index: {}]
  %s9 = sld [smem:[#allocation0]]
  $region65: #{tpu_custom_call.1} parent=0
    _
  %s11 = ssub.s32 1, %s9
  %s12 = scalar_select 0, %s11, %s9
  $region1: #{tpu_custom_call.1} parent=0
    #allocation2 [shape = 'u8[32768]{0}', space=vmem, size = 0x8000, scoped, tag = 'output window, operand 0']
    #allocation3 [shape = 's32[2]{0}', space=sflag, size = 0x8, scoped, tag = 'scoped memory for tpu_custom_call.1']
    %13 = vsyncpa [#allocation3], 0
    %s14 = scalar_lea.sflag [#allocation3], 1
    %15 = vsyncpa %s14, 0
    loop: start=0, step=1, limit=4
    $region2: #{tpu_custom_call.1} parent=1 // loop_pre_header
      _
    $region3: #{tpu_custom_call.1} parent=1 // loop_header
      %s17 = sphi 0, %s21
      %p18 = scmp.ge.s32.totalorder %s17, 4
      %s27 = sphi 0, %s29
      %s30 = sphi 0, %s27
      %s31 = sphi 0, %s30
      %s47 = sphi 0, %s31
      %s53 = sphi 0, %s55
      %s56 = sphi 0, %s53
      %s57 = sphi 0, %s56
      %s73 = sphi 0, %s57
      %s77 = sphi 0, %s77
      %s79 = sphi 0, %s77
      %s80 = sphi 0, %s79
      %s94 = sphi 0, %s80
      %s98 = sphi 0, %s98
      %s100 = sphi 0, %s98
      %s101 = sphi 0, %s100
      %s115 = sphi 0, %s101
      %s119 = sphi 0, %s119
      %s121 = sphi 0, %s119
      %s122 = sphi 0, %s121
      %s136 = sphi 0, %s122
      %s140 = sphi 0, %s140
      %s142 = sphi 0, %s140
      %s143 = sphi 0, %s142
      %s157 = sphi 0, %s143
      %s161 = sphi 0, %s161
      %s163 = sphi 0, %s161
      %s164 = sphi 0, %s163
      %s178 = sphi 0, %s164
      %s182 = sphi 0, %s182
      %s184 = sphi 0, %s182
      %s185 = sphi 0, %s184
      %s199 = sphi 0, %s185
      %s205 = sphi 0, %s207
      %s208 = sphi 0, %s205
      %s209 = sphi 0, %s208
      %s225 = sphi 0, %s209
    $region4: #{tpu_custom_call.1} parent=1 // loop_header_branch
      %20 = sbr.rel (%p18) target = $region8
    $region5: #{tpu_custom_call.1} parent=1 // loop_body
      %s22 = ssub.s32 %s17, 1
      %s23 = ssub.s32 %s17, 2
      %s24 = sadd.s32 %s17, 1
      %s25 = ssub.s32 %s17, %s24
      %p26 = scmp.eq.s32.totalorder %s25, 0
      %s28 = sadd.s32 %s27, 1
      %s29 = scalar_select %p26, %s27, %s28
      %p32 = pneg %p26
      %p33 = scmp.eq.s32.totalorder %s17, 1
      %p34 = por %p32, %p33
      %p35 = scmp.ne.s32.totalorder %s27, %s30
      %p36 = scmp.eq.s32.totalorder %s17, 0
      %p37 = por %p35, %p36
      %p38 = scmp.ne.s32.totalorder %s27, %s30
      %p39 = scmp.eq.s32.totalorder %s22, 1
      %p40 = por %p38, %p39
      %p41 = scmp.ne.s32.totalorder %s30, %s31
      %p42 = scmp.eq.s32.totalorder %s22, 0
      %p43 = por %p41, %p42
      %p44 = scmp.ne.s32.totalorder %s30, %s31
      %p45 = scmp.eq.s32.totalorder %s23, 1
      %p46 = por %p44, %p45
      %p48 = scmp.ne.s32.totalorder %s31, %s47
      %p49 = scmp.eq.s32.totalorder %s23, 0
      %p50 = por %p48, %p49
      %s51 = ssub.s32 %s17, %s24
      %p52 = scmp.eq.s32.totalorder %s51, 0
      %s54 = sadd.s32 %s53, 1
      %s55 = scalar_select %p52, %s53, %s54
      %p58 = pneg %p52
      %p59 = scmp.eq.s32.totalorder %s17, 1
      %p60 = por %p58, %p59
      %p61 = scmp.ne.s32.totalorder %s53, %s56
      %p62 = scmp.eq.s32.totalorder %s17, 0
      %p63 = por %p61, %p62
      %p64 = scmp.ne.s32.totalorder %s53, %s56
      %p65 = scmp.eq.s32.totalorder %s22, 1
      %p66 = por %p64, %p65
      %p67 = scmp.ne.s32.totalorder %s56, %s57
      %p68 = scmp.eq.s32.totalorder %s22, 0
      %p69 = por %p67, %p68
      %p70 = scmp.ne.s32.totalorder %s56, %s57
      %p71 = scmp.eq.s32.totalorder %s23, 1
      %p72 = por %p70, %p71
      %p74 = scmp.ne.s32.totalorder %s57, %s73
      %p75 = scmp.eq.s32.totalorder %s23, 0
      %p76 = por %p74, %p75
      %s78 = sadd.s32 %s77, 1
      %p81 = scmp.eq.s32.totalorder %s17, 1
      %p82 = scmp.ne.s32.totalorder %s77, %s79
      %p83 = scmp.eq.s32.totalorder %s17, 0
      %p84 = por %p82, %p83
      %p85 = scmp.ne.s32.totalorder %s77, %s79
      %p86 = scmp.eq.s32.totalorder %s22, 1
      %p87 = por %p85, %p86
      %p88 = scmp.ne.s32.totalorder %s79, %s80
      %p89 = scmp.eq.s32.totalorder %s22, 0
      %p90 = por %p88, %p89
      %p91 = scmp.ne.s32.totalorder %s79, %s80
      %p92 = scmp.eq.s32.totalorder %s23, 1
      %p93 = por %p91, %p92
      %p95 = scmp.ne.s32.totalorder %s80, %s94
      %p96 = scmp.eq.s32.totalorder %s23, 0
      %p97 = por %p95, %p96
      %s99 = sadd.s32 %s98, 1
      %p102 = scmp.eq.s32.totalorder %s17, 1
      %p103 = scmp.ne.s32.totalorder %s98, %s100
      %p104 = scmp.eq.s32.totalorder %s17, 0
      %p105 = por %p103, %p104
      %p106 = scmp.ne.s32.totalorder %s98, %s100
      %p107 = scmp.eq.s32.totalorder %s22, 1
      %p108 = por %p106, %p107
      %p109 = scmp.ne.s32.totalorder %s100, %s101
      %p110 = scmp.eq.s32.totalorder %s22, 0
      %p111 = por %p109, %p110
      %p112 = scmp.ne.s32.totalorder %s100, %s101
      %p113 = scmp.eq.s32.totalorder %s23, 1
      %p114 = por %p112, %p113
      %p116 = scmp.ne.s32.totalorder %s101, %s115
      %p117 = scmp.eq.s32.totalorder %s23, 0
      %p118 = por %p116, %p117
      %s120 = sadd.s32 %s119, 1
      %p123 = scmp.eq.s32.totalorder %s17, 1
      %p124 = scmp.ne.s32.totalorder %s119, %s121
      %p125 = scmp.eq.s32.totalorder %s17, 0
      %p126 = por %p124, %p125
      %p127 = scmp.ne.s32.totalorder %s119, %s121
      %p128 = scmp.eq.s32.totalorder %s22, 1
      %p129 = por %p127, %p128
      %p130 = scmp.ne.s32.totalorder %s121, %s122
      %p131 = scmp.eq.s32.totalorder %s22, 0
      %p132 = por %p130, %p131
      %p133 = scmp.ne.s32.totalorder %s121, %s122
      %p134 = scmp.eq.s32.totalorder %s23, 1
      %p135 = por %p133, %p134
      %p137 = scmp.ne.s32.totalorder %s122, %s136
      %p138 = scmp.eq.s32.totalorder %s23, 0
      %p139 = por %p137, %p138
      %s141 = sadd.s32 %s140, 1
      %p144 = scmp.eq.s32.totalorder %s17, 1
      %p145 = scmp.ne.s32.totalorder %s140, %s142
      %p146 = scmp.eq.s32.totalorder %s17, 0
      %p147 = por %p145, %p146
      %p148 = scmp.ne.s32.totalorder %s140, %s142
      %p149 = scmp.eq.s32.totalorder %s22, 1
      %p150 = por %p148, %p149
      %p151 = scmp.ne.s32.totalorder %s142, %s143
      %p152 = scmp.eq.s32.totalorder %s22, 0
      %p153 = por %p151, %p152
      %p154 = scmp.ne.s32.totalorder %s142, %s143
      %p155 = scmp.eq.s32.totalorder %s23, 1
      %p156 = por %p154, %p155
      %p158 = scmp.ne.s32.totalorder %s143, %s157
      %p159 = scmp.eq.s32.totalorder %s23, 0
      %p160 = por %p158, %p159
      %s162 = sadd.s32 %s161, 1
      %p165 = scmp.eq.s32.totalorder %s17, 1
      %p166 = scmp.ne.s32.totalorder %s161, %s163
      %p167 = scmp.eq.s32.totalorder %s17, 0
      %p168 = por %p166, %p167
      %p169 = scmp.ne.s32.totalorder %s161, %s163
      %p170 = scmp.eq.s32.totalorder %s22, 1
      %p171 = por %p169, %p170
      %p172 = scmp.ne.s32.totalorder %s163, %s164
      %p173 = scmp.eq.s32.totalorder %s22, 0
      %p174 = por %p172, %p173
      %p175 = scmp.ne.s32.totalorder %s163, %s164
      %p176 = scmp.eq.s32.totalorder %s23, 1
      %p177 = por %p175, %p176
      %p179 = scmp.ne.s32.totalorder %s164, %s178
      %p180 = scmp.eq.s32.totalorder %s23, 0
      %p181 = por %p179, %p180
      %s183 = sadd.s32 %s182, 1
      %p186 = scmp.eq.s32.totalorder %s17, 1
      %p187 = scmp.ne.s32.totalorder %s182, %s184
      %p188 = scmp.eq.s32.totalorder %s17, 0
      %p189 = por %p187, %p188
      %p190 = scmp.ne.s32.totalorder %s182, %s184
      %p191 = scmp.eq.s32.totalorder %s22, 1
      %p192 = por %p190, %p191
      %p193 = scmp.ne.s32.totalorder %s184, %s185
      %p194 = scmp.eq.s32.totalorder %s22, 0
      %p195 = por %p193, %p194
      %p196 = scmp.ne.s32.totalorder %s184, %s185
      %p197 = scmp.eq.s32.totalorder %s23, 1
      %p198 = por %p196, %p197
      %p200 = scmp.ne.s32.totalorder %s185, %s199
      %p201 = scmp.eq.s32.totalorder %s23, 0
      %p202 = por %p200, %p201
      %s203 = ssub.s32 %s17, %s24
      %p204 = scmp.eq.s32.totalorder %s203, 0
      %s206 = sadd.s32 %s205, 1
      %s207 = scalar_select %p204, %s205, %s206
      %p210 = pneg %p204
      %p211 = scmp.eq.s32.totalorder %s17, 1
      %p212 = por %p210, %p211
      %p213 = scmp.ne.s32.totalorder %s205, %s208
      %p214 = scmp.eq.s32.totalorder %s17, 0
      %p215 = por %p213, %p214
      %p216 = scmp.ne.s32.totalorder %s205, %s208
      %p217 = scmp.eq.s32.totalorder %s22, 1
      %p218 = por %p216, %p217
      %p219 = scmp.ne.s32.totalorder %s208, %s209
      %p220 = scmp.eq.s32.totalorder %s22, 0
      %p221 = por %p219, %p220
      %p222 = scmp.ne.s32.totalorder %s208, %s209
      %p223 = scmp.eq.s32.totalorder %s23, 1
      %p224 = por %p222, %p223
      %p226 = scmp.ne.s32.totalorder %s209, %s225
      %p227 = scmp.eq.s32.totalorder %s23, 0
      %p228 = por %p226, %p227
      %p229 = scmp.le.s32.totalorder 1, %s17
      %p230 = scmp.lt.s32.totalorder %s17, 3
      %p231 = pnand %p229, %p230
      %p232 = pneg %p231
      // Predicated region
      $region9: #{tpu_custom_call.1} parent=5 // pred_check
        _
      $region10: #{tpu_custom_call.1} parent=5 // pred_check_branch
        %234 = sbr.rel (%p231) target = $region12
      $region11: #{tpu_custom_call.1} parent=5 // pred_region
        %s235 = ssub.s32 %s17, 1
        // Predicated region
        $region13: #{tpu_custom_call.1} parent=11 // pred_check
          %p236 = pneg %p90
        $region14: #{tpu_custom_call.1} parent=11 // pred_check_branch
          %238 = sbr.rel (%p236) target = $region16
        $region15: #{tpu_custom_call.1} parent=11 // pred_region
          _
        $region16: #{tpu_custom_call.1} parent=11 // pred_fallthru
          _
        // Predicated region
        $region17: #{tpu_custom_call.1} parent=11 // pred_check
          %p239 = pneg %p111
        $region18: #{tpu_custom_call.1} parent=11 // pred_check_branch
          %241 = sbr.rel (%p239) target = $region20
        $region19: #{tpu_custom_call.1} parent=11 // pred_region
          _
        $region20: #{tpu_custom_call.1} parent=11 // pred_fallthru
          _
        // Predicated region
        $region21: #{tpu_custom_call.1} parent=11 // pred_check
          %p242 = pneg %p132
        $region22: #{tpu_custom_call.1} parent=11 // pred_check_branch
          %244 = sbr.rel (%p242) target = $region24
        $region23: #{tpu_custom_call.1} parent=11 // pred_region
          _
        $region24: #{tpu_custom_call.1} parent=11 // pred_fallthru
          _
        // Predicated region
        $region25: #{tpu_custom_call.1} parent=11 // pred_check
          %p245 = pneg %p153
        $region26: #{tpu_custom_call.1} parent=11 // pred_check_branch
          %247 = sbr.rel (%p245) target = $region28
        $region27: #{tpu_custom_call.1} parent=11 // pred_region
          _
        $region28: #{tpu_custom_call.1} parent=11 // pred_fallthru
          _
        // Predicated region
        $region29: #{tpu_custom_call.1} parent=11 // pred_check
          %p248 = pneg %p174
        $region30: #{tpu_custom_call.1} parent=11 // pred_check_branch
          %250 = sbr.rel (%p248) target = $region32
        $region31: #{tpu_custom_call.1} parent=11 // pred_region
          _
        $region32: #{tpu_custom_call.1} parent=11 // pred_fallthru
          _
        // Predicated region
        $region33: #{tpu_custom_call.1} parent=11 // pred_check
          %p251 = pneg %p195
        $region34: #{tpu_custom_call.1} parent=11 // pred_check_branch
          %253 = sbr.rel (%p251) target = $region36
        $region35: #{tpu_custom_call.1} parent=11 // pred_region
          _
        $region36: #{tpu_custom_call.1} parent=11 // pred_fallthru
          _
      $region12: #{tpu_custom_call.1} parent=5 // pred_fallthru
        _
      %p254 = scmp.lt.s32.totalorder %s17, 2
      // Predicated region
      $region37: #{tpu_custom_call.1} parent=5 // pred_check
        %p255 = pneg %p254
      $region38: #{tpu_custom_call.1} parent=5 // pred_check_branch
        %257 = sbr.rel (%p255) target = $region40
      $region39: #{tpu_custom_call.1} parent=5 // pred_region
        // Predicated region
        $region41: #{tpu_custom_call.1} parent=39 // pred_check
          %p258 = pneg %p37
        $region42: #{tpu_custom_call.1} parent=39 // pred_check_branch
          %260 = sbr.rel (%p258) target = $region44
        $region43: #{tpu_custom_call.1} parent=39 // pred_region
          %p261 = scmp.lt.s32.totalorder %s17, 1
          %s262 = scalar_select %p261, %s17, 1
          %s263 = smul.addr %s262, 4
          %s264 = smul.addr %s263, 2
          %s265 = scalar_lea.vmem %s0, %s264
        $region44: #{tpu_custom_call.1} parent=39 // pred_fallthru
          _
        // Predicated region
        $region45: #{tpu_custom_call.1} parent=39 // pred_check
          %p266 = pneg %p63
        $region46: #{tpu_custom_call.1} parent=39 // pred_check_branch
          %268 = sbr.rel (%p266) target = $region48
        $region47: #{tpu_custom_call.1} parent=39 // pred_region
          %p269 = scmp.lt.s32.totalorder %s17, 1
          %s270 = scalar_select %p269, %s17, 1
          %s271 = smul.addr %s270, 8
          %s272 = smul.addr %s271, 4
          %s273 = scalar_lea.vmem %s1, %s272
        $region48: #{tpu_custom_call.1} parent=39 // pred_fallthru
          _
      $region40: #{tpu_custom_call.1} parent=5 // pred_fallthru
        _
      %p274 = scmp.le.s32.totalorder 1, %s17
      %p275 = scmp.lt.s32.totalorder %s17, 3
      %p276 = pnand %p274, %p275
      %p277 = pneg %p276
      // Predicated region
      $region49: #{tpu_custom_call.1} parent=5 // pred_check
        _
      $region50: #{tpu_custom_call.1} parent=5 // pred_check_branch
        %279 = sbr.rel (%p276) target = $region52
      $region51: #{tpu_custom_call.1} parent=5 // pred_region
        %s280 = ssub.s32 %s17, 1
        %p281 = scmp.lt.s32.totalorder %s22, 1
        %s282 = scalar_select %p281, %s22, 1
        %s283 = smul.addr %s282, 4
        %s284 = smul.addr %s283, 2
        %s285 = scalar_lea.vmem %s0, %s284
        %p286 = pneg %p43
        %p287 = pneg %p40
        %p288 = scmp.lt.s32.totalorder %s22, 1
        %s289 = scalar_select %p288, %s22, 1
        %s290 = smul.addr %s289, 8
        %s291 = smul.addr %s290, 4
        %s292 = scalar_lea.vmem %s1, %s291
        %p293 = pneg %p69
        %p294 = pneg %p66
        %p295 = pneg %p90
        %p296 = pneg %p87
        %p297 = pneg %p111
        %p298 = pneg %p108
        %p299 = pneg %p132
        %p300 = pneg %p129
        %p301 = pneg %p153
        %p302 = pneg %p150
        %p303 = pneg %p174
        %p304 = pneg %p171
        %p305 = pneg %p195
        %p306 = pneg %p192
        %p307 = pneg %p221
        %p308 = pneg %p218
        %s309 = sand.u32 %s208, 1
        %s310 = scalar_lea.sflag [#allocation3], %s309
        %s311 = sand.u32 %s208, 1
        %s312 = smul.addr %s311, 32
        %s313 = scalar_lea.vmem [#allocation2], %s312
        %p314 = scmp.lt.s32.totalorder %s22, 1
        %s315 = scalar_select %p314, %s22, 1
        %s316 = smul.addr %s315, 4
        %s317 = smul.addr %s316, 2
        %s318 = scalar_lea.vmem %s0, %s317
        %p319 = scmp.lt.s32.totalorder %s22, 1
        %s320 = scalar_select %p319, %s22, 1
        %s321 = smul.addr %s320, 8
        %s322 = smul.addr %s321, 4
        %s323 = scalar_lea.vmem %s1, %s322
        %v325 = vld [vmem:[%s318] sm:$0x3]
        %v326 = vld [vmem:[%s318 + $0x2] sm:$0x3]
        %v327 = vld [vmem:[%s318 + $0x4] sm:$0x3]
        %v328 = vld [vmem:[%s318 + $0x6] sm:$0x3]
        %v329 = vld [vmem:[%s3] sm:$0xf]
        %v330 = vld [vmem:[%s3 + $0x4] sm:$0x1]
        %v333 = vunpack.c.l.b16 %v329
        %v334 = vunpack.c.l.b16 %v330
        %v335 = vpack.c.b16 %v334, %v333
        %vm336 = vcmask 31744
        %v338 = vsel %vm336, %v335, 0
        %vm340 = vcmask 1041408
        %v342 = vsel %vm340, %v325, 0
        %344 = vmatprep.subr.bf16.mxu0 0
        %345 = vmatpush1.bf16.msra.mxu0 0
        %346 = vmatprep.subr.bf16.mxu0 0
        %347 = vmatpush1.bf16.msra.mxu0 0
        %348 = vmatprep.subr.bf16.mxu0 0
        %349 = vmatpush1.bf16.msra.mxu0 0
        %350 = vmatprep.subr.bf16.mxu0 0
        %351 = vmatpush1.bf16.msra.mxu0 0
        %352 = vmatprep.subr.bf16.mxu0 0
        %353 = vmatpush1.bf16.msra.mxu0 0
        %354 = vmatprep.subr.bf16.mxu0 0
        %355 = vmatpush1.bf16.msra.mxu0 0
        %356 = vmatprep.subr.bf16.mxu0 0
        %357 = vmatpush1.bf16.msra.mxu0 0
        %358 = vmatprep.subr.bf16.mxu0 0
        %359 = vmatpush1.bf16.msra.mxu0 %v342
        %360 = vmatprep.subr.bf16.mxu0 0
        %361 = vmatpush2.bf16.msra.mxu0 0
        %362 = vmatprep.subr.bf16.mxu0 0
        %363 = vmatpush2.bf16.msra.mxu0 0
        %364 = vmatprep.subr.bf16.mxu0 0
        %365 = vmatpush2.bf16.msra.mxu0 0
        %366 = vmatprep.subr.bf16.mxu0 0
        %367 = vmatpush2.bf16.msra.mxu0 0
        %368 = vmatprep.subr.bf16.mxu0 0
        %369 = vmatpush2.bf16.msra.mxu0 0
        %370 = vmatprep.subr.bf16.mxu0 0
        %371 = vmatpush2.bf16.msra.mxu0 0
        %372 = vmatprep.subr.bf16.mxu0 0
        %373 = vmatpush2.bf16.msra.mxu0 0
        %374 = vmatprep.subr.bf16.mxu0 0
        %375 = vmatpush2.bf16.msra.mxu0 0
        %376 = vmatprep.mubr.bf16.mxu0 0
        %377 = vmatmul.mubr.bf16.gmra.mxu0 %v338
        %v378 = vpop.f32.mrf.mxu0
        %v379 = vadd.f32 0.0, %v378
        %v380 = vpop.f32.mrf.mxu0
        %v381 = vpop.f32.mrf.mxu0
        %v382 = vadd.f32 0.0, %v381
        %v383 = vpop.f32.mrf.mxu0
        %384 = vdwg.mxu0
        %v386 = vsel %vm340, %v326, 0
        %388 = vmatprep.subr.bf16.mxu0 0
        %389 = vmatpush1.bf16.msra.mxu0 0
        %390 = vmatprep.subr.bf16.mxu0 0
        %391 = vmatpush1.bf16.msra.mxu0 0
        %392 = vmatprep.subr.bf16.mxu0 0
        %393 = vmatpush1.bf16.msra.mxu0 0
        %394 = vmatprep.subr.bf16.mxu0 0
        %395 = vmatpush1.bf16.msra.mxu0 0
        %396 = vmatprep.subr.bf16.mxu0 0
        %397 = vmatpush1.bf16.msra.mxu0 0
        %398 = vmatprep.subr.bf16.mxu0 0
        %399 = vmatpush1.bf16.msra.mxu0 0
        %400 = vmatprep.subr.bf16.mxu0 0
        %401 = vmatpush1.bf16.msra.mxu0 0
        %402 = vmatprep.subr.bf16.mxu0 0
        %403 = vmatpush1.bf16.msra.mxu0 %v386
        %404 = vmatprep.subr.bf16.mxu0 0
        %405 = vmatpush2.bf16.msra.mxu0 0
        %406 = vmatprep.subr.bf16.mxu0 0
        %407 = vmatpush2.bf16.msra.mxu0 0
        %408 = vmatprep.subr.bf16.mxu0 0
        %409 = vmatpush2.bf16.msra.mxu0 0
        %410 = vmatprep.subr.bf16.mxu0 0
        %411 = vmatpush2.bf16.msra.mxu0 0
        %412 = vmatprep.subr.bf16.mxu0 0
        %413 = vmatpush2.bf16.msra.mxu0 0
        %414 = vmatprep.subr.bf16.mxu0 0
        %415 = vmatpush2.bf16.msra.mxu0 0
        %416 = vmatprep.subr.bf16.mxu0 0
        %417 = vmatpush2.bf16.msra.mxu0 0
        %418 = vmatprep.subr.bf16.mxu0 0
        %419 = vmatpush2.bf16.msra.mxu0 0
        %420 = vmatprep.mubr.bf16.mxu0 0
        %421 = vmatmul.mubr.bf16.gmra.mxu0 %v338
        %v422 = vpop.f32.mrf.mxu0
        %v423 = vadd.f32 0.0, %v422
        %v424 = vpop.f32.mrf.mxu0
        %v425 = vpop.f32.mrf.mxu0
        %v426 = vadd.f32 0.0, %v425
        %v427 = vpop.f32.mrf.mxu0
        %428 = vdwg.mxu0
        %v430 = vsel %vm340, %v327, 0
        %432 = vmatprep.subr.bf16.mxu0 0
        %433 = vmatpush1.bf16.msra.mxu0 0
        %434 = vmatprep.subr.bf16.mxu0 0
        %435 = vmatpush1.bf16.msra.mxu0 0
        %436 = vmatprep.subr.bf16.mxu0 0
        %437 = vmatpush1.bf16.msra.mxu0 0
        %438 = vmatprep.subr.bf16.mxu0 0
        %439 = vmatpush1.bf16.msra.mxu0 0
        %440 = vmatprep.subr.bf16.mxu0 0
        %441 = vmatpush1.bf16.msra.mxu0 0
        %442 = vmatprep.subr.bf16.mxu0 0
        %443 = vmatpush1.bf16.msra.mxu0 0
        %444 = vmatprep.subr.bf16.mxu0 0
        %445 = vmatpush1.bf16.msra.mxu0 0
        %446 = vmatprep.subr.bf16.mxu0 0
        %447 = vmatpush1.bf16.msra.mxu0 %v430
        %448 = vmatprep.subr.bf16.mxu0 0
        %449 = vmatpush2.bf16.msra.mxu0 0
        %450 = vmatprep.subr.bf16.mxu0 0
        %451 = vmatpush2.bf16.msra.mxu0 0
        %452 = vmatprep.subr.bf16.mxu0 0
        %453 = vmatpush2.bf16.msra.mxu0 0
        %454 = vmatprep.subr.bf16.mxu0 0
        %455 = vmatpush2.bf16.msra.mxu0 0
        %456 = vmatprep.subr.bf16.mxu0 0
        %457 = vmatpush2.bf16.msra.mxu0 0
        %458 = vmatprep.subr.bf16.mxu0 0
        %459 = vmatpush2.bf16.msra.mxu0 0
        %460 = vmatprep.subr.bf16.mxu0 0
        %461 = vmatpush2.bf16.msra.mxu0 0
        %462 = vmatprep.subr.bf16.mxu0 0
        %463 = vmatpush2.bf16.msra.mxu0 0
        %464 = vmatprep.mubr.bf16.mxu0 0
        %465 = vmatmul.mubr.bf16.gmra.mxu0 %v338
        %v466 = vpop.f32.mrf.mxu0
        %v467 = vadd.f32 0.0, %v466
        %v468 = vpop.f32.mrf.mxu0
        %v469 = vpop.f32.mrf.mxu0
        %v470 = vadd.f32 0.0, %v469
        %v471 = vpop.f32.mrf.mxu0
        %472 = vdwg.mxu0
        %v474 = vsel %vm340, %v328, 0
        %476 = vmatprep.subr.bf16.mxu0 0
        %477 = vmatpush1.bf16.msra.mxu0 0
        %478 = vmatprep.subr.bf16.mxu0 0
        %479 = vmatpush1.bf16.msra.mxu0 0
        %480 = vmatprep.subr.bf16.mxu0 0
        %481 = vmatpush1.bf16.msra.mxu0 0
        %482 = vmatprep.subr.bf16.mxu0 0
        %483 = vmatpush1.bf16.msra.mxu0 0
        %484 = vmatprep.subr.bf16.mxu0 0
        %485 = vmatpush1.bf16.msra.mxu0 0
        %486 = vmatprep.subr.bf16.mxu0 0
        %487 = vmatpush1.bf16.msra.mxu0 0
        %488 = vmatprep.subr.bf16.mxu0 0
        %489 = vmatpush1.bf16.msra.mxu0 0
        %490 = vmatprep.subr.bf16.mxu0 0
        %491 = vmatpush1.bf16.msra.mxu0 %v474
        %492 = vmatprep.subr.bf16.mxu0 0
        %493 = vmatpush2.bf16.msra.mxu0 0
        %494 = vmatprep.subr.bf16.mxu0 0
        %495 = vmatpush2.bf16.msra.mxu0 0
        %496 = vmatprep.subr.bf16.mxu0 0
        %497 = vmatpush2.bf16.msra.mxu0 0
        %498 = vmatprep.subr.bf16.mxu0 0
        %499 = vmatpush2.bf16.msra.mxu0 0
        %500 = vmatprep.subr.bf16.mxu0 0
        %501 = vmatpush2.bf16.msra.mxu0 0
        %502 = vmatprep.subr.bf16.mxu0 0
        %503 = vmatpush2.bf16.msra.mxu0 0
        %504 = vmatprep.subr.bf16.mxu0 0
        %505 = vmatpush2.bf16.msra.mxu0 0
        %506 = vmatprep.subr.bf16.mxu0 0
        %507 = vmatpush2.bf16.msra.mxu0 0
        %508 = vmatprep.mubr.bf16.mxu0 0
        %509 = vmatmul.mubr.bf16.gmra.mxu0 %v338
        %v510 = vpop.f32.mrf.mxu0
        %v511 = vadd.f32 0.0, %v510
        %v512 = vpop.f32.mrf.mxu0
        %v513 = vpop.f32.mrf.mxu0
        %v514 = vadd.f32 0.0, %v513
        %v515 = vpop.f32.mrf.mxu0
        %516 = vdwg.mxu0
        %v517 = vmul.f32 %v423, 0.0
        %v518 = vmul.f32 %v426, 0.0
        %v519 = vadd.f32 %v379, %v517
        %v520 = vadd.f32 %v382, %v518
        %v521 = vmul.f32 %v379, 0.5714286
        %v522 = vmul.f32 %v382, 0.5714286
        %v523 = vmul.f32 %v423, 0.42857143
        %v524 = vmul.f32 %v426, 0.42857143
        %v525 = vadd.f32 %v521, %v523
        %v526 = vadd.f32 %v522, %v524
        %v527 = vmul.f32 %v379, 0.14285715
        %v528 = vmul.f32 %v382, 0.14285715
        %v529 = vmul.f32 %v423, 0.85714287
        %v530 = vmul.f32 %v426, 0.85714287
        %v531 = vadd.f32 %v527, %v529
        %v532 = vadd.f32 %v528, %v530
        %v533 = vmul.f32 %v423, 0.71428573
        %v534 = vmul.f32 %v426, 0.71428573
        %v535 = vmul.f32 %v467, 0.2857143
        %v536 = vmul.f32 %v470, 0.2857143
        %v537 = vadd.f32 %v533, %v535
        %v538 = vadd.f32 %v534, %v536
        %v539 = vmul.f32 %v423, 0.2857143
        %v540 = vmul.f32 %v426, 0.2857143
        %v541 = vmul.f32 %v467, 0.71428573
        %v542 = vmul.f32 %v470, 0.71428573
        %v543 = vadd.f32 %v539, %v541
        %v544 = vadd.f32 %v540, %v542
        %v545 = vmul.f32 %v467, 0.85714287
        %v546 = vmul.f32 %v470, 0.85714287
        %v547 = vmul.f32 %v511, 0.14285715
        %v548 = vmul.f32 %v514, 0.14285715
        %v549 = vadd.f32 %v545, %v547
        %v550 = vadd.f32 %v546, %v548
        %v551 = vmul.f32 %v467, 0.42857143
        %v552 = vmul.f32 %v470, 0.42857143
        %v553 = vmul.f32 %v511, 0.5714286
        %v554 = vmul.f32 %v514, 0.5714286
        %v555 = vadd.f32 %v551, %v553
        %v556 = vadd.f32 %v552, %v554
        %v557 = vmul.f32 %v511, 0.0
        %v558 = vmul.f32 %v514, 0.0
        %v559 = vadd.f32 %v511, %v557
        %v560 = vadd.f32 %v514, %v558
        %v561 = vpack.c.bf16 0.0, 0.0
        %v562 = vpack.c.bf16 %v520, %v519
        %v563 = vpack.c.bf16 %v526, %v525
        %v564 = vpack.c.bf16 %v532, %v531
        %v565 = vpack.c.bf16 %v538, %v537
        %v566 = vpack.c.bf16 %v544, %v543
        %v567 = vpack.c.bf16 %v550, %v549
        %v568 = vpack.c.bf16 %v556, %v555
        %v569 = vpack.c.bf16 %v560, %v559
        %v571 = vshrl.u32 %v561, 16
        %v573 = vshll.u32 %v561, 16
        %v575 = vrot.slane %v573, 1
        %v576 = vor.u32 %v571, %v575
        %v578 = vshrl.u32 %v562, 16
        %v580 = vshll.u32 %v562, 16
        %v582 = vrot.slane %v580, 1
        %v583 = vor.u32 %v578, %v582
        %v585 = vshrl.u32 %v563, 16
        %v587 = vshll.u32 %v563, 16
        %v589 = vrot.slane %v587, 1
        %v590 = vor.u32 %v585, %v589
        %v592 = vshrl.u32 %v564, 16
        %v594 = vshll.u32 %v564, 16
        %v596 = vrot.slane %v594, 1
        %v597 = vor.u32 %v592, %v596
        %v599 = vshrl.u32 %v565, 16
        %v601 = vshll.u32 %v565, 16
        %v603 = vrot.slane %v601, 1
        %v604 = vor.u32 %v599, %v603
        %v606 = vshrl.u32 %v566, 16
        %v608 = vshll.u32 %v566, 16
        %v610 = vrot.slane %v608, 1
        %v611 = vor.u32 %v606, %v610
        %v613 = vshrl.u32 %v567, 16
        %v615 = vshll.u32 %v567, 16
        %v617 = vrot.slane %v615, 1
        %v618 = vor.u32 %v613, %v617
        %v620 = vshrl.u32 %v568, 16
        %v622 = vshll.u32 %v568, 16
        %v624 = vrot.slane %v622, 1
        %v625 = vor.u32 %v620, %v624
        %626 = vrot.lane.b32.xlu0 %v576, 32
        %v627 = vpop.permute.xlu0 %626
        %628 = vrot.lane.b32.xlu0 %v583, 32
        %v629 = vpop.permute.xlu0 %628
        %630 = vrot.lane.b32.xlu0 %v590, 32
        %v631 = vpop.permute.xlu0 %630
        %632 = vrot.lane.b32.xlu0 %v597, 32
        %v633 = vpop.permute.xlu0 %632
        %634 = vrot.lane.b32.xlu0 %v604, 32
        %v635 = vpop.permute.xlu0 %634
        %636 = vrot.lane.b32.xlu0 %v611, 32
        %v637 = vpop.permute.xlu0 %636
        %638 = vrot.lane.b32.xlu0 %v618, 32
        %v639 = vpop.permute.xlu0 %638
        %640 = vrot.lane.b32.xlu0 %v625, 32
        %v641 = vpop.permute.xlu0 %640
        %v650 = vrot.slane %v561, 1
        %v651 = vrot.slane %v562, 1
        %v652 = vrot.slane %v563, 1
        %v653 = vrot.slane %v564, 1
        %v654 = vrot.slane %v565, 1
        %v655 = vrot.slane %v566, 1
        %v656 = vrot.slane %v567, 1
        %v657 = vrot.slane %v568, 1
        %658 = vrot.lane.b32.xlu0 %v650, 64
        %v659 = vpop.permute.xlu0 %658
        %660 = vrot.lane.b32.xlu0 %v651, 64
        %v661 = vpop.permute.xlu0 %660
        %662 = vrot.lane.b32.xlu0 %v652, 64
        %v663 = vpop.permute.xlu0 %662
        %664 = vrot.lane.b32.xlu0 %v653, 64
        %v665 = vpop.permute.xlu0 %664
        %666 = vrot.lane.b32.xlu0 %v654, 64
        %v667 = vpop.permute.xlu0 %666
        %668 = vrot.lane.b32.xlu0 %v655, 64
        %v669 = vpop.permute.xlu0 %668
        %670 = vrot.lane.b32.xlu0 %v656, 64
        %v671 = vpop.permute.xlu0 %670
        %672 = vrot.lane.b32.xlu0 %v657, 64
        %v673 = vpop.permute.xlu0 %672
        %vm674 = vcmask 261120
        %v676 = vsel %vm674, %v561, %v627
        %v678 = vsel %vm674, %v562, %v629
        %v680 = vsel %vm674, %v563, %v631
        %v682 = vsel %vm674, %v564, %v633
        %v684 = vsel %vm674, %v565, %v635
        %v686 = vsel %vm674, %v566, %v637
        %v688 = vsel %vm674, %v567, %v639
        %v690 = vsel %vm674, %v568, %v641
        %vm691 = vcmask 523264
        %v693 = vsel %vm691, %v676, %v659
        %v695 = vsel %vm691, %v678, %v661
        %v697 = vsel %vm691, %v680, %v663
        %v699 = vsel %vm691, %v682, %v665
        %v701 = vsel %vm691, %v684, %v667
        %v703 = vsel %vm691, %v686, %v669
        %v705 = vsel %vm691, %v688, %v671
        %v707 = vsel %vm691, %v690, %v673
        %v708 = vld [vmem:[%s4] sm:$0xf]
        %v709 = vld [vmem:[%s4 + $0x4] sm:$0xf]
        %v710 = vld [vmem:[%s4 + $0x8] sm:$0xf]
        %v711 = vld [vmem:[%s4 + $0xc] sm:$0xf]
        %v712 = vld [vmem:[%s4 + $0x10] sm:$0xf]
        %v713 = vld [vmem:[%s4 + $0x14] sm:$0xf]
        %v714 = vld [vmem:[%s4 + $0x18] sm:$0xf]
        %v715 = vld [vmem:[%s4 + $0x1c] sm:$0xf]
        %v716 = vld [vmem:[%s4 + $0x20] sm:$0xf]
        %v717 = vld [vmem:[%s4 + $0x24] sm:$0xf]
        %v718 = vld [vmem:[%s4 + $0x28] sm:$0xf]
        %v719 = vld [vmem:[%s4 + $0x2c] sm:$0xf]
        %v721 = vshrl.u32 %v569, 16
        %v723 = vshll.u32 %v569, 16
        %v725 = vrot.slane %v723, 1
        %v726 = vor.u32 %v721, %v725
        %727 = vrot.lane.b32.xlu0 %v726, 32
        %v728 = vpop.permute.xlu0 %727
        %v730 = vrot.slane %v569, 1
        %731 = vrot.lane.b32.xlu0 %v730, 64
        %v732 = vpop.permute.xlu0 %731
        %v734 = vsel %vm674, %v569, %v728
        %v736 = vsel %vm691, %v734, %v732
        %v737 = vld [vmem:[%s4 + $0x30] sm:$0xf]
        %v738 = vld [vmem:[%s4 + $0x34] sm:$0xf]
        %v739 = vld [vmem:[%s4 + $0x38] sm:$0xf]
        %v740 = vld [vmem:[%s4 + $0x3c] sm:$0xf]
        %v741 = vld [vmem:[%s4 + $0x40] sm:$0xf]
        %v742 = vld [vmem:[%s4 + $0x44] sm:$0xf]
        %v743 = vld [vmem:[%s4 + $0x48] sm:$0xf]
        %v744 = vld [vmem:[%s4 + $0x4c] sm:$0xf]
        %v745 = vld [vmem:[%s4 + $0x50] sm:$0xf]
        %v746 = vld [vmem:[%s4 + $0x54] sm:$0xf]
        %v747 = vld [vmem:[%s4 + $0x58] sm:$0xf]
        %v748 = vld [vmem:[%s4 + $0x5c] sm:$0xf]
        %v757 = vunpack.c.l.b16 %v695
        %v758 = vunpack.c.l.b16 %v697
        %v759 = vunpack.c.l.b16 %v699
        %v760 = vunpack.c.l.b16 %v701
        %v761 = vunpack.c.l.b16 %v703
        %v762 = vunpack.c.l.b16 %v705
        %v763 = vunpack.c.l.b16 %v707
        %v764 = vunpack.c.l.b16 %v736
        %v765 = vpack.c.b16 %v758, %v757
        %v766 = vpack.c.b16 %v760, %v759
        %v767 = vpack.c.b16 %v762, %v761
        %v768 = vpack.c.b16 %v764, %v763
        %v781 = vunpack.c.l.b16 %v737
        %v782 = vunpack.c.l.b16 %v738
        %v783 = vunpack.c.l.b16 %v739
        %v784 = vunpack.c.l.b16 %v740
        %v785 = vunpack.c.l.b16 %v741
        %v786 = vunpack.c.l.b16 %v742
        %v787 = vunpack.c.l.b16 %v743
        %v788 = vunpack.c.l.b16 %v744
        %v789 = vunpack.c.l.b16 %v745
        %v790 = vunpack.c.l.b16 %v746
        %v791 = vunpack.c.l.b16 %v747
        %v792 = vunpack.c.l.b16 %v748
        %v793 = vpack.c.b16 %v782, %v781
        %v794 = vpack.c.b16 %v784, %v783
        %v795 = vpack.c.b16 %v786, %v785
        %v796 = vpack.c.b16 %v788, %v787
        %v797 = vpack.c.b16 %v790, %v789
        %v798 = vpack.c.b16 %v792, %v791
        %vm805 = vcmask 785408
        %v807 = vsel %vm805, %v765, 0
        %v810 = vsel %vm805, %v766, 0
        %v813 = vsel %vm805, %v767, 0
        %v816 = vsel %vm805, %v768, 0
        %818 = vmatprep.subr.bf16.mxu0 0
        %819 = vmatpush1.bf16.msra.mxu0 0
        %820 = vmatprep.subr.bf16.mxu0 0
        %821 = vmatpush1.bf16.msra.mxu0 0
        %822 = vmatprep.subr.bf16.mxu0 0
        %823 = vmatpush1.bf16.msra.mxu0 %v798
        %824 = vmatprep.subr.bf16.mxu0 0
        %825 = vmatpush1.bf16.msra.mxu0 %v797
        %826 = vmatprep.subr.bf16.mxu0 0
        %827 = vmatpush1.bf16.msra.mxu0 %v796
        %828 = vmatprep.subr.bf16.mxu0 0
        %829 = vmatpush1.bf16.msra.mxu0 %v795
        %830 = vmatprep.subr.bf16.mxu0 0
        %831 = vmatpush1.bf16.msra.mxu0 %v794
        %832 = vmatprep.subr.bf16.mxu0 0
        %833 = vmatpush1.bf16.msra.mxu0 %v793
        %834 = vmatprep.subr.bf16.mxu0 0
        %835 = vmatpush2.bf16.msra.mxu0 0
        %836 = vmatprep.subr.bf16.mxu0 0
        %837 = vmatpush2.bf16.msra.mxu0 0
        %838 = vmatprep.subr.bf16.mxu0 0
        %839 = vmatpush2.bf16.msra.mxu0 0
        %840 = vmatprep.subr.bf16.mxu0 0
        %841 = vmatpush2.bf16.msra.mxu0 0
        %842 = vmatprep.subr.bf16.mxu0 0
        %843 = vmatpush2.bf16.msra.mxu0 0
        %844 = vmatprep.subr.bf16.mxu0 0
        %845 = vmatpush2.bf16.msra.mxu0 0
        %846 = vmatprep.subr.bf16.mxu0 0
        %847 = vmatpush2.bf16.msra.mxu0 0
        %848 = vmatprep.subr.bf16.mxu0 0
        %849 = vmatpush2.bf16.msra.mxu0 0
        %850 = vmatprep.mubr.bf16.mxu0 0
        %851 = vmatmul.mubr.bf16.gmra.mxu0 %v807
        %v852 = vpop.f32.mrf.mxu0
        %v853 = vadd.f32 0.0, %v852
        %v854 = vpop.f32.mrf.mxu0
        %v855 = vpop.f32.mrf.mxu0
        %v856 = vadd.f32 0.0, %v855
        %v857 = vpop.f32.mrf.mxu0
        %858 = vmatprep.mubr.bf16.mxu0 0
        %859 = vmatmul.mubr.bf16.gmra.mxu0 %v810
        %v860 = vpop.f32.mrf.mxu0
        %v861 = vadd.f32 0.0, %v860
        %v862 = vpop.f32.mrf.mxu0
        %v863 = vpop.f32.mrf.mxu0
        %v864 = vadd.f32 0.0, %v863
        %v865 = vpop.f32.mrf.mxu0
        %866 = vmatprep.mubr.bf16.mxu0 0
        %867 = vmatmul.mubr.bf16.gmra.mxu0 %v813
        %v868 = vpop.f32.mrf.mxu0
        %v869 = vadd.f32 0.0, %v868
        %v870 = vpop.f32.mrf.mxu0
        %v871 = vpop.f32.mrf.mxu0
        %v872 = vadd.f32 0.0, %v871
        %v873 = vpop.f32.mrf.mxu0
        %874 = vmatprep.mubr.bf16.mxu0 0
        %875 = vmatmul.mubr.bf16.gmra.mxu0 %v816
        %v876 = vpop.f32.mrf.mxu0
        %v877 = vadd.f32 0.0, %v876
        %v878 = vpop.f32.mrf.mxu0
        %v879 = vpop.f32.mrf.mxu0
        %v880 = vadd.f32 0.0, %v879
        %v881 = vpop.f32.mrf.mxu0
        %882 = vdwg.mxu0
        %v884 = vunpack.c.l.b16 %v693
        %v885 = vpack.c.b16 %v757, %v884
        %v886 = vpack.c.b16 %v759, %v758
        %v887 = vpack.c.b16 %v761, %v760
        %v888 = vpack.c.b16 %v763, %v762
        %v901 = vunpack.c.l.b16 %v708
        %v902 = vunpack.c.l.b16 %v709
        %v903 = vunpack.c.l.b16 %v710
        %v904 = vunpack.c.l.b16 %v711
        %v905 = vunpack.c.l.b16 %v712
        %v906 = vunpack.c.l.b16 %v713
        %v907 = vunpack.c.l.b16 %v714
        %v908 = vunpack.c.l.b16 %v715
        %v909 = vunpack.c.l.b16 %v716
        %v910 = vunpack.c.l.b16 %v717
        %v911 = vunpack.c.l.b16 %v718
        %v912 = vunpack.c.l.b16 %v719
        %v913 = vpack.c.b16 %v902, %v901
        %v914 = vpack.c.b16 %v904, %v903
        %v915 = vpack.c.b16 %v906, %v905
        %v916 = vpack.c.b16 %v908, %v907
        %v917 = vpack.c.b16 %v910, %v909
        %v918 = vpack.c.b16 %v912, %v911
        %v926 = vsel %vm805, %v885, 0
        %v929 = vsel %vm805, %v886, 0
        %v932 = vsel %vm805, %v887, 0
        %v935 = vsel %vm805, %v888, 0
        %937 = vmatprep.subr.bf16.mxu0 0
        %938 = vmatpush1.bf16.msra.mxu0 0
        %939 = vmatprep.subr.bf16.mxu0 0
        %940 = vmatpush1.bf16.msra.mxu0 0
        %941 = vmatprep.subr.bf16.mxu0 0
        %942 = vmatpush1.bf16.msra.mxu0 %v918
        %943 = vmatprep.subr.bf16.mxu0 0
        %944 = vmatpush1.bf16.msra.mxu0 %v917
        %945 = vmatprep.subr.bf16.mxu0 0
        %946 = vmatpush1.bf16.msra.mxu0 %v916
        %947 = vmatprep.subr.bf16.mxu0 0
        %948 = vmatpush1.bf16.msra.mxu0 %v915
        %949 = vmatprep.subr.bf16.mxu0 0
        %950 = vmatpush1.bf16.msra.mxu0 %v914
        %951 = vmatprep.subr.bf16.mxu0 0
        %952 = vmatpush1.bf16.msra.mxu0 %v913
        %953 = vmatprep.subr.bf16.mxu0 0
        %954 = vmatpush2.bf16.msra.mxu0 0
        %955 = vmatprep.subr.bf16.mxu0 0
        %956 = vmatpush2.bf16.msra.mxu0 0
        %957 = vmatprep.subr.bf16.mxu0 0
        %958 = vmatpush2.bf16.msra.mxu0 0
        %959 = vmatprep.subr.bf16.mxu0 0
        %960 = vmatpush2.bf16.msra.mxu0 0
        %961 = vmatprep.subr.bf16.mxu0 0
        %962 = vmatpush2.bf16.msra.mxu0 0
        %963 = vmatprep.subr.bf16.mxu0 0
        %964 = vmatpush2.bf16.msra.mxu0 0
        %965 = vmatprep.subr.bf16.mxu0 0
        %966 = vmatpush2.bf16.msra.mxu0 0
        %967 = vmatprep.subr.bf16.mxu0 0
        %968 = vmatpush2.bf16.msra.mxu0 0
        %969 = vmatprep.mubr.bf16.mxu0 0
        %970 = vmatmul.mubr.bf16.gmra.mxu0 %v926
        %v971 = vpop.f32.mrf.mxu0
        %v972 = vadd.f32 %v853, %v971
        %v973 = vpop.f32.mrf.mxu0
        %v974 = vpop.f32.mrf.mxu0
        %v975 = vadd.f32 %v856, %v974
        %v976 = vpop.f32.mrf.mxu0
        %977 = vmatprep.mubr.bf16.mxu0 0
        %978 = vmatmul.mubr.bf16.gmra.mxu0 %v929
        %v979 = vpop.f32.mrf.mxu0
        %v980 = vadd.f32 %v861, %v979
        %v981 = vpop.f32.mrf.mxu0
        %v982 = vpop.f32.mrf.mxu0
        %v983 = vadd.f32 %v864, %v982
        %v984 = vpop.f32.mrf.mxu0
        %985 = vmatprep.mubr.bf16.mxu0 0
        %986 = vmatmul.mubr.bf16.gmra.mxu0 %v932
        %v987 = vpop.f32.mrf.mxu0
        %v988 = vadd.f32 %v869, %v987
        %v989 = vpop.f32.mrf.mxu0
        %v990 = vpop.f32.mrf.mxu0
        %v991 = vadd.f32 %v872, %v990
        %v992 = vpop.f32.mrf.mxu0
        %993 = vmatprep.mubr.bf16.mxu0 0
        %994 = vmatmul.mubr.bf16.gmra.mxu0 %v935
        %v995 = vpop.f32.mrf.mxu0
        %v996 = vadd.f32 %v877, %v995
        %v997 = vpop.f32.mrf.mxu0
        %v998 = vpop.f32.mrf.mxu0
        %v999 = vadd.f32 %v880, %v998
        %v1000 = vpop.f32.mrf.mxu0
        %1001 = vdwg.mxu0
        %v1002 = vld [vmem:[%s4 + $0x60] sm:$0xf]
        %v1003 = vld [vmem:[%s4 + $0x64] sm:$0xf]
        %v1004 = vld [vmem:[%s4 + $0x68] sm:$0xf]
        %v1005 = vld [vmem:[%s4 + $0x6c] sm:$0xf]
        %v1006 = vld [vmem:[%s4 + $0x70] sm:$0xf]
        %v1007 = vld [vmem:[%s4 + $0x74] sm:$0xf]
        %v1008 = vld [vmem:[%s4 + $0x78] sm:$0xf]
        %v1009 = vld [vmem:[%s4 + $0x7c] sm:$0xf]
        %v1010 = vld [vmem:[%s4 + $0x80] sm:$0xf]
        %v1011 = vld [vmem:[%s4 + $0x84] sm:$0xf]
        %v1012 = vld [vmem:[%s4 + $0x88] sm:$0xf]
        %v1013 = vld [vmem:[%s4 + $0x8c] sm:$0xf]
        %v1014 = vpack.c.b16 %v884, %v764
        %v1027 = vunpack.c.l.b16 %v1002
        %v1028 = vunpack.c.l.b16 %v1003
        %v1029 = vunpack.c.l.b16 %v1004
        %v1030 = vunpack.c.l.b16 %v1005
        %v1031 = vunpack.c.l.b16 %v1006
        %v1032 = vunpack.c.l.b16 %v1007
        %v1033 = vunpack.c.l.b16 %v1008
        %v1034 = vunpack.c.l.b16 %v1009
        %v1035 = vunpack.c.l.b16 %v1010
        %v1036 = vunpack.c.l.b16 %v1011
        %v1037 = vunpack.c.l.b16 %v1012
        %v1038 = vunpack.c.l.b16 %v1013
        %v1039 = vpack.c.b16 %v1028, %v1027
        %v1040 = vpack.c.b16 %v1030, %v1029
        %v1041 = vpack.c.b16 %v1032, %v1031
        %v1042 = vpack.c.b16 %v1034, %v1033
        %v1043 = vpack.c.b16 %v1036, %v1035
        %v1044 = vpack.c.b16 %v1038, %v1037
        %v1052 = vsel %vm805, %v1014, 0
        %1054 = vmatprep.subr.bf16.mxu0 0
        %1055 = vmatpush1.bf16.msra.mxu0 0
        %1056 = vmatprep.subr.bf16.mxu0 0
        %1057 = vmatpush1.bf16.msra.mxu0 0
        %1058 = vmatprep.subr.bf16.mxu0 0
        %1059 = vmatpush1.bf16.msra.mxu0 %v1044
        %1060 = vmatprep.subr.bf16.mxu0 0
        %1061 = vmatpush1.bf16.msra.mxu0 %v1043
        %1062 = vmatprep.subr.bf16.mxu0 0
        %1063 = vmatpush1.bf16.msra.mxu0 %v1042
        %1064 = vmatprep.subr.bf16.mxu0 0
        %1065 = vmatpush1.bf16.msra.mxu0 %v1041
        %1066 = vmatprep.subr.bf16.mxu0 0
        %1067 = vmatpush1.bf16.msra.mxu0 %v1040
        %1068 = vmatprep.subr.bf16.mxu0 0
        %1069 = vmatpush1.bf16.msra.mxu0 %v1039
        %1070 = vmatprep.subr.bf16.mxu0 0
        %1071 = vmatpush2.bf16.msra.mxu0 0
        %1072 = vmatprep.subr.bf16.mxu0 0
        %1073 = vmatpush2.bf16.msra.mxu0 0
        %1074 = vmatprep.subr.bf16.mxu0 0
        %1075 = vmatpush2.bf16.msra.mxu0 0
        %1076 = vmatprep.subr.bf16.mxu0 0
        %1077 = vmatpush2.bf16.msra.mxu0 0
        %1078 = vmatprep.subr.bf16.mxu0 0
        %1079 = vmatpush2.bf16.msra.mxu0 0
        %1080 = vmatprep.subr.bf16.mxu0 0
        %1081 = vmatpush2.bf16.msra.mxu0 0
        %1082 = vmatprep.subr.bf16.mxu0 0
        %1083 = vmatpush2.bf16.msra.mxu0 0
        %1084 = vmatprep.subr.bf16.mxu0 0
        %1085 = vmatpush2.bf16.msra.mxu0 0
        %1086 = vmatprep.mubr.bf16.mxu0 0
        %1087 = vmatmul.mubr.bf16.gmra.mxu0 %v929
        %v1088 = vpop.f32.mrf.mxu0
        %v1089 = vadd.f32 0.0, %v1088
        %v1090 = vpop.f32.mrf.mxu0
        %v1091 = vpop.f32.mrf.mxu0
        %v1092 = vadd.f32 0.0, %v1091
        %v1093 = vpop.f32.mrf.mxu0
        %1094 = vmatprep.mubr.bf16.mxu0 0
        %1095 = vmatmul.mubr.bf16.gmra.mxu0 %v932
        %v1096 = vpop.f32.mrf.mxu0
        %v1097 = vadd.f32 0.0, %v1096
        %v1098 = vpop.f32.mrf.mxu0
        %v1099 = vpop.f32.mrf.mxu0
        %v1100 = vadd.f32 0.0, %v1099
        %v1101 = vpop.f32.mrf.mxu0
        %1102 = vmatprep.mubr.bf16.mxu0 0
        %1103 = vmatmul.mubr.bf16.gmra.mxu0 %v935
        %v1104 = vpop.f32.mrf.mxu0
        %v1105 = vadd.f32 0.0, %v1104
        %v1106 = vpop.f32.mrf.mxu0
        %v1107 = vpop.f32.mrf.mxu0
        %v1108 = vadd.f32 0.0, %v1107
        %v1109 = vpop.f32.mrf.mxu0
        %1110 = vmatprep.mubr.bf16.mxu0 0
        %1111 = vmatmul.mubr.bf16.gmra.mxu0 %v1052
        %v1112 = vpop.f32.mrf.mxu0
        %v1113 = vadd.f32 0.0, %v1112
        %v1114 = vpop.f32.mrf.mxu0
        %v1115 = vpop.f32.mrf.mxu0
        %v1116 = vadd.f32 0.0, %v1115
        %v1117 = vpop.f32.mrf.mxu0
        %1118 = vdwg.mxu0
        %v1119 = vadd.f32 %v972, %v1089
        %v1120 = vadd.f32 %v975, %v1092
        %v1121 = vadd.f32 %v980, %v1097
        %v1122 = vadd.f32 %v983, %v1100
        %v1123 = vadd.f32 %v988, %v1105
        %v1124 = vadd.f32 %v991, %v1108
        %v1125 = vadd.f32 %v996, %v1113
        %v1126 = vadd.f32 %v999, %v1116
        %vm1127 = vcmask 130048
        %v1128 = vsel %vm1127, %v1119, 0.0
        %v1129 = vsel %vm1127, %v1120, 0.0
        %v1130 = vadd.f32 %v1128, %v1129
        %v1131 = vsel %vm1127, %v1121, 0.0
        %v1132 = vadd.f32 %v1130, %v1131
        %v1133 = vsel %vm1127, %v1122, 0.0
        %v1134 = vadd.f32 %v1132, %v1133
        %v1135 = vsel %vm1127, %v1123, 0.0
        %v1136 = vadd.f32 %v1134, %v1135
        %v1137 = vsel %vm1127, %v1124, 0.0
        %v1138 = vadd.f32 %v1136, %v1137
        %v1139 = vsel %vm1127, %v1125, 0.0
        %v1140 = vadd.f32 %v1138, %v1139
        %v1141 = vsel %vm1127, %v1126, 0.0
        %v1142 = vadd.f32 %v1140, %v1141
        %v1143 = vrot.slane %v1142, 4
        %v1144 = vadd.f32 %v1142, %v1143
        %v1145 = vrot.slane %v1144, 2
        %v1146 = vadd.f32 %v1144, %v1145
        %v1147 = vrot.slane %v1146, 1
        %v1148 = vadd.f32 %v1146, %v1147
        %v1149 = vrcp.pop 64.0
        %v1150 = vmul.f32 %v1148, %v1149
        %v1151 = vmul.f32 %v1119, %v1119
        %v1152 = vmul.f32 %v1120, %v1120
        %v1153 = vmul.f32 %v1121, %v1121
        %v1154 = vmul.f32 %v1122, %v1122
        %v1155 = vmul.f32 %v1123, %v1123
        %v1156 = vmul.f32 %v1124, %v1124
        %v1157 = vmul.f32 %v1125, %v1125
        %v1158 = vmul.f32 %v1126, %v1126
        %v1159 = vsel %vm1127, %v1151, 0.0
        %v1160 = vsel %vm1127, %v1152, 0.0
        %v1161 = vadd.f32 %v1159, %v1160
        %v1162 = vsel %vm1127, %v1153, 0.0
        %v1163 = vadd.f32 %v1161, %v1162
        %v1164 = vsel %vm1127, %v1154, 0.0
        %v1165 = vadd.f32 %v1163, %v1164
        %v1166 = vsel %vm1127, %v1155, 0.0
        %v1167 = vadd.f32 %v1165, %v1166
        %v1168 = vsel %vm1127, %v1156, 0.0
        %v1169 = vadd.f32 %v1167, %v1168
        %v1170 = vsel %vm1127, %v1157, 0.0
        %v1171 = vadd.f32 %v1169, %v1170
        %v1172 = vsel %vm1127, %v1158, 0.0
        %v1173 = vadd.f32 %v1171, %v1172
        %v1174 = vrot.slane %v1173, 4
        %v1175 = vadd.f32 %v1173, %v1174
        %v1176 = vrot.slane %v1175, 2
        %v1177 = vadd.f32 %v1175, %v1176
        %v1178 = vrot.slane %v1177, 1
        %v1179 = vadd.f32 %v1177, %v1178
        %v1180 = vmul.f32 %v1179, %v1149
        %v1181 = vmul.f32 %v1150, %v1150
        %v1182 = vsub.f32 %v1180, %v1181
        %v1183 = vmax.f32 %v1182, 0.0
        %v1184 = vsub.f32 %v1119, %v1150
        %v1185 = vsub.f32 %v1120, %v1150
        %v1186 = vsub.f32 %v1121, %v1150
        %v1187 = vsub.f32 %v1122, %v1150
        %v1188 = vsub.f32 %v1123, %v1150
        %v1189 = vsub.f32 %v1124, %v1150
        %v1190 = vsub.f32 %v1125, %v1150
        %v1191 = vsub.f32 %v1126, %v1150
        %v1192 = vadd.f32 %v1183, 1e-05
        %v1193 = vrsqrt.pop %v1192
        %v1194 = vmul.f32 %v1184, %v1193
        %v1195 = vmul.f32 %v1185, %v1193
        %v1196 = vmul.f32 %v1186, %v1193
        %v1197 = vmul.f32 %v1187, %v1193
        %v1198 = vmul.f32 %v1188, %v1193
        %v1199 = vmul.f32 %v1189, %v1193
        %v1200 = vmul.f32 %v1190, %v1193
        %v1201 = vmul.f32 %v1191, %v1193
        %vm1202 = vcmp.gt.f32.partialorder %v1194, 0.0
        %vm1203 = vcmp.gt.f32.partialorder %v1195, 0.0
        %vm1204 = vcmp.gt.f32.partialorder %v1196, 0.0
        %vm1205 = vcmp.gt.f32.partialorder %v1197, 0.0
        %vm1206 = vcmp.gt.f32.partialorder %v1198, 0.0
        %vm1207 = vcmp.gt.f32.partialorder %v1199, 0.0
        %vm1208 = vcmp.gt.f32.partialorder %v1200, 0.0
        %vm1209 = vcmp.gt.f32.partialorder %v1201, 0.0
        %v1210 = vmul.f32 %v1194, 0.01
        %v1211 = vmul.f32 %v1195, 0.01
        %v1212 = vmul.f32 %v1196, 0.01
        %v1213 = vmul.f32 %v1197, 0.01
        %v1214 = vmul.f32 %v1198, 0.01
        %v1215 = vmul.f32 %v1199, 0.01
        %v1216 = vmul.f32 %v1200, 0.01
        %v1217 = vmul.f32 %v1201, 0.01
        %v1218 = vsel %vm1202, %v1194, %v1210
        %v1219 = vsel %vm1203, %v1195, %v1211
        %v1220 = vsel %vm1204, %v1196, %v1212
        %v1221 = vsel %vm1205, %v1197, %v1213
        %v1222 = vsel %vm1206, %v1198, %v1214
        %v1223 = vsel %vm1207, %v1199, %v1215
        %v1224 = vsel %vm1208, %v1200, %v1216
        %v1225 = vsel %vm1209, %v1201, %v1217
        %v1226 = vpack.c.bf16 %v1218, %v1218
        %v1227 = vpack.c.bf16 %v1219, %v1219
        %v1228 = vpack.c.bf16 %v1220, %v1220
        %v1229 = vpack.c.bf16 %v1221, %v1221
        %v1230 = vpack.c.bf16 %v1222, %v1222
        %v1231 = vpack.c.bf16 %v1223, %v1223
        %v1232 = vpack.c.bf16 %v1224, %v1224
        %v1233 = vpack.c.bf16 %v1225, %v1225
        %v1234 = vld [vmem:[%s323] sm:$0xf]
        %v1235 = vld [vmem:[%s323 + $0x4] sm:$0xf]
        %v1236 = vld [vmem:[%s323 + $0x8] sm:$0xf]
        %v1237 = vld [vmem:[%s323 + $0xc] sm:$0xf]
        %v1238 = vld [vmem:[%s323 + $0x10] sm:$0xf]
        %v1239 = vld [vmem:[%s323 + $0x14] sm:$0xf]
        %v1240 = vld [vmem:[%s323 + $0x18] sm:$0xf]
        %v1241 = vld [vmem:[%s323 + $0x1c] sm:$0xf]
        %v1243 = vshrl.u32 0, 16
        %v1245 = vrot.slane %v1243, 7
        %v1246 = vshll.u32 0, 16
        %v1248 = vor.u32 %v1245, %v1246
        %v1250 = vshrl.u32 %v1234, 16
        %v1252 = vrot.slane %v1250, 7
        %v1253 = vshll.u32 %v1234, 16
        %v1255 = vor.u32 %v1252, %v1253
        %v1257 = vshrl.u32 %v1235, 16
        %v1259 = vrot.slane %v1257, 7
        %v1260 = vshll.u32 %v1235, 16
        %v1262 = vor.u32 %v1259, %v1260
        %v1264 = vshrl.u32 %v1236, 16
        %v1266 = vrot.slane %v1264, 7
        %v1267 = vshll.u32 %v1236, 16
        %v1269 = vor.u32 %v1266, %v1267
        %v1271 = vshrl.u32 %v1237, 16
        %v1273 = vrot.slane %v1271, 7
        %v1274 = vshll.u32 %v1237, 16
        %v1276 = vor.u32 %v1273, %v1274
        %v1278 = vshrl.u32 %v1238, 16
        %v1280 = vrot.slane %v1278, 7
        %v1281 = vshll.u32 %v1238, 16
        %v1283 = vor.u32 %v1280, %v1281
        %v1285 = vshrl.u32 %v1239, 16
        %v1287 = vrot.slane %v1285, 7
        %v1288 = vshll.u32 %v1239, 16
        %v1290 = vor.u32 %v1287, %v1288
        %v1292 = vshrl.u32 %v1240, 16
        %v1294 = vrot.slane %v1292, 7
        %v1295 = vshll.u32 %v1240, 16
        %v1297 = vor.u32 %v1294, %v1295
        %v1299 = vshrl.u32 %v1241, 16
        %v1301 = vrot.slane %v1299, 7
        %v1302 = vshll.u32 %v1241, 16
        %v1304 = vor.u32 %v1301, %v1302
        %vm1314 = vcmask 1040384
        %vm1315 = vsmask.f32 256
        %vm1316 = vmand %vm1314, %vm1315
        %v1317 = vsel %vm1316, 0, %v1248
        %v1318 = vsel %vm1316, 0, %v1255
        %v1319 = vsel %vm1316, 0, %v1262
        %v1320 = vsel %vm1316, 0, %v1269
        %v1321 = vsel %vm1316, 0, %v1276
        %v1322 = vsel %vm1316, 0, %v1283
        %v1323 = vsel %vm1316, 0, %v1290
        %v1324 = vsel %vm1316, 0, %v1297
        %v1325 = vsel %vm1316, 0, %v1304
        %vm1326 = vcmask 1044480
        %vm1327 = vsmask.f32 4352
        %vm1328 = vmand %vm1326, %vm1327
        %v1329 = vsel %vm1328, %v1317, 0
        %v1330 = vsel %vm1328, %v1318, 0
        %v1331 = vsel %vm1328, %v1319, 0
        %v1332 = vsel %vm1328, %v1320, 0
        %v1333 = vsel %vm1328, %v1321, 0
        %v1334 = vsel %vm1328, %v1322, 0
        %v1335 = vsel %vm1328, %v1323, 0
        %v1336 = vsel %vm1328, %v1324, 0
        %v1337 = vsel %vm1328, %v1325, 0
        %v1339 = vshrl.u32 %v1329, 16
        %v1341 = vshll.u32 %v1329, 16
        %v1343 = vrot.slane %v1341, 1
        %v1344 = vor.u32 %v1339, %v1343
        %v1346 = vshrl.u32 %v1330, 16
        %v1348 = vshll.u32 %v1330, 16
        %v1350 = vrot.slane %v1348, 1
        %v1351 = vor.u32 %v1346, %v1350
        %v1353 = vshrl.u32 %v1331, 16
        %v1355 = vshll.u32 %v1331, 16
        %v1357 = vrot.slane %v1355, 1
        %v1358 = vor.u32 %v1353, %v1357
        %v1360 = vshrl.u32 %v1332, 16
        %v1362 = vshll.u32 %v1332, 16
        %v1364 = vrot.slane %v1362, 1
        %v1365 = vor.u32 %v1360, %v1364
        %v1367 = vshrl.u32 %v1333, 16
        %v1369 = vshll.u32 %v1333, 16
        %v1371 = vrot.slane %v1369, 1
        %v1372 = vor.u32 %v1367, %v1371
        %v1374 = vshrl.u32 %v1334, 16
        %v1376 = vshll.u32 %v1334, 16
        %v1378 = vrot.slane %v1376, 1
        %v1379 = vor.u32 %v1374, %v1378
        %v1381 = vshrl.u32 %v1335, 16
        %v1383 = vshll.u32 %v1335, 16
        %v1385 = vrot.slane %v1383, 1
        %v1386 = vor.u32 %v1381, %v1385
        %v1388 = vshrl.u32 %v1336, 16
        %v1390 = vshll.u32 %v1336, 16
        %v1392 = vrot.slane %v1390, 1
        %v1393 = vor.u32 %v1388, %v1392
        %1394 = vrot.lane.b32.xlu0 %v1344, 16
        %v1395 = vpop.permute.xlu0 %1394
        %1396 = vrot.lane.b32.xlu0 %v1351, 16
        %v1397 = vpop.permute.xlu0 %1396
        %1398 = vrot.lane.b32.xlu0 %v1358, 16
        %v1399 = vpop.permute.xlu0 %1398
        %1400 = vrot.lane.b32.xlu0 %v1365, 16
        %v1401 = vpop.permute.xlu0 %1400
        %1402 = vrot.lane.b32.xlu0 %v1372, 16
        %v1403 = vpop.permute.xlu0 %1402
        %1404 = vrot.lane.b32.xlu0 %v1379, 16
        %v1405 = vpop.permute.xlu0 %1404
        %1406 = vrot.lane.b32.xlu0 %v1386, 16
        %v1407 = vpop.permute.xlu0 %1406
        %1408 = vrot.lane.b32.xlu0 %v1393, 16
        %v1409 = vpop.permute.xlu0 %1408
        %v1418 = vrot.slane %v1329, 1
        %v1419 = vrot.slane %v1330, 1
        %v1420 = vrot.slane %v1331, 1
        %v1421 = vrot.slane %v1332, 1
        %v1422 = vrot.slane %v1333, 1
        %v1423 = vrot.slane %v1334, 1
        %v1424 = vrot.slane %v1335, 1
        %v1425 = vrot.slane %v1336, 1
        %1426 = vrot.lane.b32.xlu0 %v1418, 32
        %v1427 = vpop.permute.xlu0 %1426
        %1428 = vrot.lane.b32.xlu0 %v1419, 32
        %v1429 = vpop.permute.xlu0 %1428
        %1430 = vrot.lane.b32.xlu0 %v1420, 32
        %v1431 = vpop.permute.xlu0 %1430
        %1432 = vrot.lane.b32.xlu0 %v1421, 32
        %v1433 = vpop.permute.xlu0 %1432
        %1434 = vrot.lane.b32.xlu0 %v1422, 32
        %v1435 = vpop.permute.xlu0 %1434
        %1436 = vrot.lane.b32.xlu0 %v1423, 32
        %v1437 = vpop.permute.xlu0 %1436
        %1438 = vrot.lane.b32.xlu0 %v1424, 32
        %v1439 = vpop.permute.xlu0 %1438
        %1440 = vrot.lane.b32.xlu0 %v1425, 32
        %v1441 = vpop.permute.xlu0 %1440
        %v1443 = vsel %vm1127, %v1329, %v1395
        %v1445 = vsel %vm1127, %v1330, %v1397
        %v1447 = vsel %vm1127, %v1331, %v1399
        %v1449 = vsel %vm1127, %v1332, %v1401
        %v1451 = vsel %vm1127, %v1333, %v1403
        %v1453 = vsel %vm1127, %v1334, %v1405
        %v1455 = vsel %vm1127, %v1335, %v1407
        %v1457 = vsel %vm1127, %v1336, %v1409
        %v1459 = vsel %vm674, %v1443, %v1427
        %v1461 = vsel %vm674, %v1445, %v1429
        %v1463 = vsel %vm674, %v1447, %v1431
        %v1465 = vsel %vm674, %v1449, %v1433
        %v1467 = vsel %vm674, %v1451, %v1435
        %v1469 = vsel %vm674, %v1453, %v1437
        %v1471 = vsel %vm674, %v1455, %v1439
        %v1473 = vsel %vm674, %v1457, %v1441
        %v1474 = vld [vmem:[%s5] sm:$0xf]
        %v1475 = vld [vmem:[%s5 + $0x4] sm:$0xf]
        %v1476 = vld [vmem:[%s5 + $0x8] sm:$0xf]
        %v1477 = vld [vmem:[%s5 + $0xc] sm:$0xf]
        %v1478 = vld [vmem:[%s5 + $0x10] sm:$0xf]
        %v1479 = vld [vmem:[%s5 + $0x14] sm:$0xf]
        %v1481 = vshrl.u32 %v1337, 16
        %v1483 = vshll.u32 %v1337, 16
        %v1485 = vrot.slane %v1483, 1
        %v1486 = vor.u32 %v1481, %v1485
        %1487 = vrot.lane.b32.xlu0 %v1486, 16
        %v1488 = vpop.permute.xlu0 %1487
        %v1490 = vrot.slane %v1337, 1
        %1491 = vrot.lane.b32.xlu0 %v1490, 32
        %v1492 = vpop.permute.xlu0 %1491
        %v1494 = vsel %vm1127, %v1337, %v1488
        %v1496 = vsel %vm674, %v1494, %v1492
        %v1497 = vld [vmem:[%s5 + $0x18] sm:$0xf]
        %v1498 = vld [vmem:[%s5 + $0x1c] sm:$0xf]
        %v1499 = vld [vmem:[%s5 + $0x20] sm:$0xf]
        %v1500 = vld [vmem:[%s5 + $0x24] sm:$0xf]
        %v1501 = vld [vmem:[%s5 + $0x28] sm:$0xf]
        %v1502 = vld [vmem:[%s5 + $0x2c] sm:$0xf]
        %v1511 = vunpack.c.l.b16 %v1461
        %v1512 = vunpack.c.l.b16 %v1463
        %v1513 = vunpack.c.l.b16 %v1465
        %v1514 = vunpack.c.l.b16 %v1467
        %v1515 = vunpack.c.l.b16 %v1469
        %v1516 = vunpack.c.l.b16 %v1471
        %v1517 = vunpack.c.l.b16 %v1473
        %v1518 = vunpack.c.l.b16 %v1496
        %v1519 = vpack.c.b16 %v1512, %v1511
        %v1520 = vpack.c.b16 %v1514, %v1513
        %v1521 = vpack.c.b16 %v1516, %v1515
        %v1522 = vpack.c.b16 %v1518, %v1517
        %v1529 = vunpack.c.l.b16 %v1497
        %v1530 = vunpack.c.l.b16 %v1498
        %v1531 = vunpack.c.l.b16 %v1499
        %v1532 = vunpack.c.l.b16 %v1500
        %v1533 = vunpack.c.l.b16 %v1501
        %v1534 = vunpack.c.l.b16 %v1502
        %v1535 = vpack.c.b16 %v1530, %v1529
        %v1536 = vpack.c.b16 %v1532, %v1531
        %v1537 = vpack.c.b16 %v1534, %v1533
        %vm1541 = vcmask 392192
        %v1543 = vsel %vm1541, %v1519, 0
        %v1546 = vsel %vm1541, %v1520, 0
        %v1549 = vsel %vm1541, %v1521, 0
        %v1552 = vsel %vm1541, %v1522, 0
        %1554 = vmatprep.subr.bf16.mxu0 0
        %1555 = vmatpush1.bf16.msra.mxu0 0
        %1556 = vmatprep.subr.bf16.mxu0 0
        %1557 = vmatpush1.bf16.msra.mxu0 0
        %1558 = vmatprep.subr.bf16.mxu0 0
        %1559 = vmatpush1.bf16.msra.mxu0 0
        %1560 = vmatprep.subr.bf16.mxu0 0
        %1561 = vmatpush1.bf16.msra.mxu0 0
        %1562 = vmatprep.subr.bf16.mxu0 0
        %1563 = vmatpush1.bf16.msra.mxu0 0
        %1564 = vmatprep.subr.bf16.mxu0 0
        %1565 = vmatpush1.bf16.msra.mxu0 %v1537
        %1566 = vmatprep.subr.bf16.mxu0 0
        %1567 = vmatpush1.bf16.msra.mxu0 %v1536
        %1568 = vmatprep.subr.bf16.mxu0 0
        %1569 = vmatpush1.bf16.msra.mxu0 %v1535
        %1570 = vmatprep.subr.bf16.mxu0 0
        %1571 = vmatpush2.bf16.msra.mxu0 0
        %1572 = vmatprep.subr.bf16.mxu0 0
        %1573 = vmatpush2.bf16.msra.mxu0 0
        %1574 = vmatprep.subr.bf16.mxu0 0
        %1575 = vmatpush2.bf16.msra.mxu0 0
        %1576 = vmatprep.subr.bf16.mxu0 0
        %1577 = vmatpush2.bf16.msra.mxu0 0
        %1578 = vmatprep.subr.bf16.mxu0 0
        %1579 = vmatpush2.bf16.msra.mxu0 0
        %1580 = vmatprep.subr.bf16.mxu0 0
        %1581 = vmatpush2.bf16.msra.mxu0 0
        %1582 = vmatprep.subr.bf16.mxu0 0
        %1583 = vmatpush2.bf16.msra.mxu0 0
        %1584 = vmatprep.subr.bf16.mxu0 0
        %1585 = vmatpush2.bf16.msra.mxu0 0
        %1586 = vmatprep.mubr.bf16.mxu0 0
        %1587 = vmatmul.mubr.bf16.gmra.mxu0 %v1543
        %v1588 = vpop.f32.mrf.mxu0
        %v1589 = vadd.f32 0.0, %v1588
        %v1590 = vpop.f32.mrf.mxu0
        %v1591 = vpop.f32.mrf.mxu0
        %v1592 = vadd.f32 0.0, %v1591
        %v1593 = vpop.f32.mrf.mxu0
        %1594 = vmatprep.mubr.bf16.mxu0 0
        %1595 = vmatmul.mubr.bf16.gmra.mxu0 %v1546
        %v1596 = vpop.f32.mrf.mxu0
        %v1597 = vadd.f32 0.0, %v1596
        %v1598 = vpop.f32.mrf.mxu0
        %v1599 = vpop.f32.mrf.mxu0
        %v1600 = vadd.f32 0.0, %v1599
        %v1601 = vpop.f32.mrf.mxu0
        %1602 = vmatprep.mubr.bf16.mxu0 0
        %1603 = vmatmul.mubr.bf16.gmra.mxu0 %v1549
        %v1604 = vpop.f32.mrf.mxu0
        %v1605 = vadd.f32 0.0, %v1604
        %v1606 = vpop.f32.mrf.mxu0
        %v1607 = vpop.f32.mrf.mxu0
        %v1608 = vadd.f32 0.0, %v1607
        %v1609 = vpop.f32.mrf.mxu0
        %1610 = vmatprep.mubr.bf16.mxu0 0
        %1611 = vmatmul.mubr.bf16.gmra.mxu0 %v1552
        %v1612 = vpop.f32.mrf.mxu0
        %v1613 = vadd.f32 0.0, %v1612
        %v1614 = vpop.f32.mrf.mxu0
        %v1615 = vpop.f32.mrf.mxu0
        %v1616 = vadd.f32 0.0, %v1615
        %v1617 = vpop.f32.mrf.mxu0
        %1618 = vdwg.mxu0
        %v1620 = vunpack.c.l.b16 %v1459
        %v1621 = vpack.c.b16 %v1511, %v1620
        %v1622 = vpack.c.b16 %v1513, %v1512
        %v1623 = vpack.c.b16 %v1515, %v1514
        %v1624 = vpack.c.b16 %v1517, %v1516
        %v1631 = vunpack.c.l.b16 %v1474
        %v1632 = vunpack.c.l.b16 %v1475
        %v1633 = vunpack.c.l.b16 %v1476
        %v1634 = vunpack.c.l.b16 %v1477
        %v1635 = vunpack.c.l.b16 %v1478
        %v1636 = vunpack.c.l.b16 %v1479
        %v1637 = vpack.c.b16 %v1632, %v1631
        %v1638 = vpack.c.b16 %v1634, %v1633
        %v1639 = vpack.c.b16 %v1636, %v1635
        %v1644 = vsel %vm1541, %v1621, 0
        %v1647 = vsel %vm1541, %v1622, 0
        %v1650 = vsel %vm1541, %v1623, 0
        %v1653 = vsel %vm1541, %v1624, 0
        %1655 = vmatprep.subr.bf16.mxu0 0
        %1656 = vmatpush1.bf16.msra.mxu0 0
        %1657 = vmatprep.subr.bf16.mxu0 0
        %1658 = vmatpush1.bf16.msra.mxu0 0
        %1659 = vmatprep.subr.bf16.mxu0 0
        %1660 = vmatpush1.bf16.msra.mxu0 0
        %1661 = vmatprep.subr.bf16.mxu0 0
        %1662 = vmatpush1.bf16.msra.mxu0 0
        %1663 = vmatprep.subr.bf16.mxu0 0
        %1664 = vmatpush1.bf16.msra.mxu0 0
        %1665 = vmatprep.subr.bf16.mxu0 0
        %1666 = vmatpush1.bf16.msra.mxu0 %v1639
        %1667 = vmatprep.subr.bf16.mxu0 0
        %1668 = vmatpush1.bf16.msra.mxu0 %v1638
        %1669 = vmatprep.subr.bf16.mxu0 0
        %1670 = vmatpush1.bf16.msra.mxu0 %v1637
        %1671 = vmatprep.subr.bf16.mxu0 0
        %1672 = vmatpush2.bf16.msra.mxu0 0
        %1673 = vmatprep.subr.bf16.mxu0 0
        %1674 = vmatpush2.bf16.msra.mxu0 0
        %1675 = vmatprep.subr.bf16.mxu0 0
        %1676 = vmatpush2.bf16.msra.mxu0 0
        %1677 = vmatprep.subr.bf16.mxu0 0
        %1678 = vmatpush2.bf16.msra.mxu0 0
        %1679 = vmatprep.subr.bf16.mxu0 0
        %1680 = vmatpush2.bf16.msra.mxu0 0
        %1681 = vmatprep.subr.bf16.mxu0 0
        %1682 = vmatpush2.bf16.msra.mxu0 0
        %1683 = vmatprep.subr.bf16.mxu0 0
        %1684 = vmatpush2.bf16.msra.mxu0 0
        %1685 = vmatprep.subr.bf16.mxu0 0
        %1686 = vmatpush2.bf16.msra.mxu0 0
        %1687 = vmatprep.mubr.bf16.mxu0 0
        %1688 = vmatmul.mubr.bf16.gmra.mxu0 %v1644
        %v1689 = vpop.f32.mrf.mxu0
        %v1690 = vadd.f32 %v1589, %v1689
        %v1691 = vpop.f32.mrf.mxu0
        %v1692 = vpop.f32.mrf.mxu0
        %v1693 = vadd.f32 %v1592, %v1692
        %v1694 = vpop.f32.mrf.mxu0
        %1695 = vmatprep.mubr.bf16.mxu0 0
        %1696 = vmatmul.mubr.bf16.gmra.mxu0 %v1647
        %v1697 = vpop.f32.mrf.mxu0
        %v1698 = vadd.f32 %v1597, %v1697
        %v1699 = vpop.f32.mrf.mxu0
        %v1700 = vpop.f32.mrf.mxu0
        %v1701 = vadd.f32 %v1600, %v1700
        %v1702 = vpop.f32.mrf.mxu0
        %1703 = vmatprep.mubr.bf16.mxu0 0
        %1704 = vmatmul.mubr.bf16.gmra.mxu0 %v1650
        %v1705 = vpop.f32.mrf.mxu0
        %v1706 = vadd.f32 %v1605, %v1705
        %v1707 = vpop.f32.mrf.mxu0
        %v1708 = vpop.f32.mrf.mxu0
        %v1709 = vadd.f32 %v1608, %v1708
        %v1710 = vpop.f32.mrf.mxu0
        %1711 = vmatprep.mubr.bf16.mxu0 0
        %1712 = vmatmul.mubr.bf16.gmra.mxu0 %v1653
        %v1713 = vpop.f32.mrf.mxu0
        %v1714 = vadd.f32 %v1613, %v1713
        %v1715 = vpop.f32.mrf.mxu0
        %v1716 = vpop.f32.mrf.mxu0
        %v1717 = vadd.f32 %v1616, %v1716
        %v1718 = vpop.f32.mrf.mxu0
        %1719 = vdwg.mxu0
        %v1720 = vld [vmem:[%s5 + $0x30] sm:$0xf]
        %v1721 = vld [vmem:[%s5 + $0x34] sm:$0xf]
        %v1722 = vld [vmem:[%s5 + $0x38] sm:$0xf]
        %v1723 = vld [vmem:[%s5 + $0x3c] sm:$0xf]
        %v1724 = vld [vmem:[%s5 + $0x40] sm:$0xf]
        %v1725 = vld [vmem:[%s5 + $0x44] sm:$0xf]
        %v1726 = vpack.c.b16 %v1620, %v1518
        %v1733 = vunpack.c.l.b16 %v1720
        %v1734 = vunpack.c.l.b16 %v1721
        %v1735 = vunpack.c.l.b16 %v1722
        %v1736 = vunpack.c.l.b16 %v1723
        %v1737 = vunpack.c.l.b16 %v1724
        %v1738 = vunpack.c.l.b16 %v1725
        %v1739 = vpack.c.b16 %v1734, %v1733
        %v1740 = vpack.c.b16 %v1736, %v1735
        %v1741 = vpack.c.b16 %v1738, %v1737
        %v1746 = vsel %vm1541, %v1726, 0
        %1748 = vmatprep.subr.bf16.mxu0 0
        %1749 = vmatpush1.bf16.msra.mxu0 0
        %1750 = vmatprep.subr.bf16.mxu0 0
        %1751 = vmatpush1.bf16.msra.mxu0 0
        %1752 = vmatprep.subr.bf16.mxu0 0
        %1753 = vmatpush1.bf16.msra.mxu0 0
        %1754 = vmatprep.subr.bf16.mxu0 0
        %1755 = vmatpush1.bf16.msra.mxu0 0
        %1756 = vmatprep.subr.bf16.mxu0 0
        %1757 = vmatpush1.bf16.msra.mxu0 0
        %1758 = vmatprep.subr.bf16.mxu0 0
        %1759 = vmatpush1.bf16.msra.mxu0 %v1741
        %1760 = vmatprep.subr.bf16.mxu0 0
        %1761 = vmatpush1.bf16.msra.mxu0 %v1740
        %1762 = vmatprep.subr.bf16.mxu0 0
        %1763 = vmatpush1.bf16.msra.mxu0 %v1739
        %1764 = vmatprep.subr.bf16.mxu0 0
        %1765 = vmatpush2.bf16.msra.mxu0 0
        %1766 = vmatprep.subr.bf16.mxu0 0
        %1767 = vmatpush2.bf16.msra.mxu0 0
        %1768 = vmatprep.subr.bf16.mxu0 0
        %1769 = vmatpush2.bf16.msra.mxu0 0
        %1770 = vmatprep.subr.bf16.mxu0 0
        %1771 = vmatpush2.bf16.msra.mxu0 0
        %1772 = vmatprep.subr.bf16.mxu0 0
        %1773 = vmatpush2.bf16.msra.mxu0 0
        %1774 = vmatprep.subr.bf16.mxu0 0
        %1775 = vmatpush2.bf16.msra.mxu0 0
        %1776 = vmatprep.subr.bf16.mxu0 0
        %1777 = vmatpush2.bf16.msra.mxu0 0
        %1778 = vmatprep.subr.bf16.mxu0 0
        %1779 = vmatpush2.bf16.msra.mxu0 0
        %1780 = vmatprep.mubr.bf16.mxu0 0
        %1781 = vmatmul.mubr.bf16.gmra.mxu0 %v1647
        %v1782 = vpop.f32.mrf.mxu0
        %v1783 = vadd.f32 0.0, %v1782
        %v1784 = vpop.f32.mrf.mxu0
        %v1785 = vpop.f32.mrf.mxu0
        %v1786 = vadd.f32 0.0, %v1785
        %v1787 = vpop.f32.mrf.mxu0
        %1788 = vmatprep.mubr.bf16.mxu0 0
        %1789 = vmatmul.mubr.bf16.gmra.mxu0 %v1650
        %v1790 = vpop.f32.mrf.mxu0
        %v1791 = vadd.f32 0.0, %v1790
        %v1792 = vpop.f32.mrf.mxu0
        %v1793 = vpop.f32.mrf.mxu0
        %v1794 = vadd.f32 0.0, %v1793
        %v1795 = vpop.f32.mrf.mxu0
        %1796 = vmatprep.mubr.bf16.mxu0 0
        %1797 = vmatmul.mubr.bf16.gmra.mxu0 %v1653
        %v1798 = vpop.f32.mrf.mxu0
        %v1799 = vadd.f32 0.0, %v1798
        %v1800 = vpop.f32.mrf.mxu0
        %v1801 = vpop.f32.mrf.mxu0
        %v1802 = vadd.f32 0.0, %v1801
        %v1803 = vpop.f32.mrf.mxu0
        %1804 = vmatprep.mubr.bf16.mxu0 0
        %1805 = vmatmul.mubr.bf16.gmra.mxu0 %v1746
        %v1806 = vpop.f32.mrf.mxu0
        %v1807 = vadd.f32 0.0, %v1806
        %v1808 = vpop.f32.mrf.mxu0
        %v1809 = vpop.f32.mrf.mxu0
        %v1810 = vadd.f32 0.0, %v1809
        %v1811 = vpop.f32.mrf.mxu0
        %1812 = vdwg.mxu0
        %v1813 = vadd.f32 %v1690, %v1783
        %v1814 = vadd.f32 %v1693, %v1786
        %v1815 = vadd.f32 %v1698, %v1791
        %v1816 = vadd.f32 %v1701, %v1794
        %v1817 = vadd.f32 %v1706, %v1799
        %v1818 = vadd.f32 %v1709, %v1802
        %v1819 = vadd.f32 %v1714, %v1807
        %v1820 = vadd.f32 %v1717, %v1810
        %v1822 = vshrl.u32 %v1226, 16
        %v1824 = vrot.slane %v1822, 7
        %v1825 = vshll.u32 %v1226, 16
        %v1827 = vor.u32 %v1824, %v1825
        %v1829 = vshrl.u32 %v1227, 16
        %v1831 = vrot.slane %v1829, 7
        %v1832 = vshll.u32 %v1227, 16
        %v1834 = vor.u32 %v1831, %v1832
        %v1836 = vshrl.u32 %v1228, 16
        %v1838 = vrot.slane %v1836, 7
        %v1839 = vshll.u32 %v1228, 16
        %v1841 = vor.u32 %v1838, %v1839
        %v1843 = vshrl.u32 %v1229, 16
        %v1845 = vrot.slane %v1843, 7
        %v1846 = vshll.u32 %v1229, 16
        %v1848 = vor.u32 %v1845, %v1846
        %v1850 = vshrl.u32 %v1230, 16
        %v1852 = vrot.slane %v1850, 7
        %v1853 = vshll.u32 %v1230, 16
        %v1855 = vor.u32 %v1852, %v1853
        %v1857 = vshrl.u32 %v1231, 16
        %v1859 = vrot.slane %v1857, 7
        %v1860 = vshll.u32 %v1231, 16
        %v1862 = vor.u32 %v1859, %v1860
        %v1864 = vshrl.u32 %v1232, 16
        %v1866 = vrot.slane %v1864, 7
        %v1867 = vshll.u32 %v1232, 16
        %v1869 = vor.u32 %v1866, %v1867
        %v1871 = vshrl.u32 %v1233, 16
        %v1873 = vrot.slane %v1871, 7
        %v1874 = vshll.u32 %v1233, 16
        %v1876 = vor.u32 %v1873, %v1874
        %v1885 = vsel %vm1316, 0, %v1827
        %v1886 = vsel %vm1316, 0, %v1834
        %v1887 = vsel %vm1316, 0, %v1841
        %v1888 = vsel %vm1316, 0, %v1848
        %v1889 = vsel %vm1316, 0, %v1855
        %v1890 = vsel %vm1316, 0, %v1862
        %v1891 = vsel %vm1316, 0, %v1869
        %v1892 = vsel %vm1316, 0, %v1876
        %v1893 = vsel %vm1328, %v1885, 0
        %v1894 = vsel %vm1328, %v1886, 0
        %v1895 = vsel %vm1328, %v1887, 0
        %v1896 = vsel %vm1328, %v1888, 0
        %v1897 = vsel %vm1328, %v1889, 0
        %v1898 = vsel %vm1328, %v1890, 0
        %v1899 = vsel %vm1328, %v1891, 0
        %v1900 = vsel %vm1328, %v1892, 0
        %v1902 = vshrl.u32 %v1893, 16
        %v1904 = vshll.u32 %v1893, 16
        %v1906 = vrot.slane %v1904, 1
        %v1907 = vor.u32 %v1902, %v1906
        %v1909 = vshrl.u32 %v1894, 16
        %v1911 = vshll.u32 %v1894, 16
        %v1913 = vrot.slane %v1911, 1
        %v1914 = vor.u32 %v1909, %v1913
        %v1916 = vshrl.u32 %v1895, 16
        %v1918 = vshll.u32 %v1895, 16
        %v1920 = vrot.slane %v1918, 1
        %v1921 = vor.u32 %v1916, %v1920
        %v1923 = vshrl.u32 %v1896, 16
        %v1925 = vshll.u32 %v1896, 16
        %v1927 = vrot.slane %v1925, 1
        %v1928 = vor.u32 %v1923, %v1927
        %v1930 = vshrl.u32 %v1897, 16
        %v1932 = vshll.u32 %v1897, 16
        %v1934 = vrot.slane %v1932, 1
        %v1935 = vor.u32 %v1930, %v1934
        %v1937 = vshrl.u32 %v1898, 16
        %v1939 = vshll.u32 %v1898, 16
        %v1941 = vrot.slane %v1939, 1
        %v1942 = vor.u32 %v1937, %v1941
        %v1944 = vshrl.u32 %v1899, 16
        %v1946 = vshll.u32 %v1899, 16
        %v1948 = vrot.slane %v1946, 1
        %v1949 = vor.u32 %v1944, %v1948
        %1950 = vrot.lane.b32.xlu0 %v1907, 16
        %v1951 = vpop.permute.xlu0 %1950
        %1952 = vrot.lane.b32.xlu0 %v1914, 16
        %v1953 = vpop.permute.xlu0 %1952
        %1954 = vrot.lane.b32.xlu0 %v1921, 16
        %v1955 = vpop.permute.xlu0 %1954
        %1956 = vrot.lane.b32.xlu0 %v1928, 16
        %v1957 = vpop.permute.xlu0 %1956
        %1958 = vrot.lane.b32.xlu0 %v1935, 16
        %v1959 = vpop.permute.xlu0 %1958
        %1960 = vrot.lane.b32.xlu0 %v1942, 16
        %v1961 = vpop.permute.xlu0 %1960
        %1962 = vrot.lane.b32.xlu0 %v1949, 16
        %v1963 = vpop.permute.xlu0 %1962
        %v1971 = vrot.slane %v1893, 1
        %v1972 = vrot.slane %v1894, 1
        %v1973 = vrot.slane %v1895, 1
        %v1974 = vrot.slane %v1896, 1
        %v1975 = vrot.slane %v1897, 1
        %v1976 = vrot.slane %v1898, 1
        %v1977 = vrot.slane %v1899, 1
        %1978 = vrot.lane.b32.xlu0 %v1971, 32
        %v1979 = vpop.permute.xlu0 %1978
        %1980 = vrot.lane.b32.xlu0 %v1972, 32
        %v1981 = vpop.permute.xlu0 %1980
        %1982 = vrot.lane.b32.xlu0 %v1973, 32
        %v1983 = vpop.permute.xlu0 %1982
        %1984 = vrot.lane.b32.xlu0 %v1974, 32
        %v1985 = vpop.permute.xlu0 %1984
        %1986 = vrot.lane.b32.xlu0 %v1975, 32
        %v1987 = vpop.permute.xlu0 %1986
        %1988 = vrot.lane.b32.xlu0 %v1976, 32
        %v1989 = vpop.permute.xlu0 %1988
        %1990 = vrot.lane.b32.xlu0 %v1977, 32
        %v1991 = vpop.permute.xlu0 %1990
        %v1993 = vsel %vm1127, %v1893, %v1951
        %v1995 = vsel %vm1127, %v1894, %v1953
        %v1997 = vsel %vm1127, %v1895, %v1955
        %v1999 = vsel %vm1127, %v1896, %v1957
        %v2001 = vsel %vm1127, %v1897, %v1959
        %v2003 = vsel %vm1127, %v1898, %v1961
        %v2005 = vsel %vm1127, %v1899, %v1963
        %v2007 = vsel %vm674, %v1993, %v1979
        %v2009 = vsel %vm674, %v1995, %v1981
        %v2011 = vsel %vm674, %v1997, %v1983
        %v2013 = vsel %vm674, %v1999, %v1985
        %v2015 = vsel %vm674, %v2001, %v1987
        %v2017 = vsel %vm674, %v2003, %v1989
        %v2019 = vsel %vm674, %v2005, %v1991
        %v2020 = vld [vmem:[%s6] sm:$0xf]
        %v2021 = vld [vmem:[%s6 + $0x4] sm:$0xf]
        %v2022 = vld [vmem:[%s6 + $0x8] sm:$0xf]
        %v2023 = vld [vmem:[%s6 + $0xc] sm:$0xf]
        %v2024 = vld [vmem:[%s6 + $0x10] sm:$0xf]
        %v2025 = vld [vmem:[%s6 + $0x14] sm:$0xf]
        %v2027 = vshrl.u32 %v1900, 16
        %v2029 = vshll.u32 %v1900, 16
        %v2031 = vrot.slane %v2029, 1
        %v2032 = vor.u32 %v2027, %v2031
        %2033 = vrot.lane.b32.xlu0 %v2032, 16
        %v2034 = vpop.permute.xlu0 %2033
        %v2036 = vrot.slane %v1900, 1
        %2037 = vrot.lane.b32.xlu0 %v2036, 32
        %v2038 = vpop.permute.xlu0 %2037
        %v2040 = vsel %vm1127, %v1900, %v2034
        %v2042 = vsel %vm674, %v2040, %v2038
        %v2043 = vld [vmem:[%s6 + $0x18] sm:$0xf]
        %v2044 = vld [vmem:[%s6 + $0x1c] sm:$0xf]
        %v2045 = vld [vmem:[%s6 + $0x20] sm:$0xf]
        %v2046 = vld [vmem:[%s6 + $0x24] sm:$0xf]
        %v2047 = vld [vmem:[%s6 + $0x28] sm:$0xf]
        %v2048 = vld [vmem:[%s6 + $0x2c] sm:$0xf]
        %v2057 = vunpack.c.l.b16 %v2007
        %v2058 = vunpack.c.l.b16 %v2009
        %v2059 = vunpack.c.l.b16 %v2011
        %v2060 = vunpack.c.l.b16 %v2013
        %v2061 = vunpack.c.l.b16 %v2015
        %v2062 = vunpack.c.l.b16 %v2017
        %v2063 = vunpack.c.l.b16 %v2019
        %v2064 = vunpack.c.l.b16 %v2042
        %v2065 = vpack.c.b16 %v2058, %v2057
        %v2066 = vpack.c.b16 %v2060, %v2059
        %v2067 = vpack.c.b16 %v2062, %v2061
        %v2068 = vpack.c.b16 %v2064, %v2063
        %v2075 = vunpack.c.l.b16 %v2043
        %v2076 = vunpack.c.l.b16 %v2044
        %v2077 = vunpack.c.l.b16 %v2045
        %v2078 = vunpack.c.l.b16 %v2046
        %v2079 = vunpack.c.l.b16 %v2047
        %v2080 = vunpack.c.l.b16 %v2048
        %v2081 = vpack.c.b16 %v2076, %v2075
        %v2082 = vpack.c.b16 %v2078, %v2077
        %v2083 = vpack.c.b16 %v2080, %v2079
        %v2088 = vsel %vm1541, %v2065, 0
        %v2091 = vsel %vm1541, %v2066, 0
        %v2094 = vsel %vm1541, %v2067, 0
        %v2097 = vsel %vm1541, %v2068, 0
        %2099 = vmatprep.subr.bf16.mxu0 0
        %2100 = vmatpush1.bf16.msra.mxu0 0
        %2101 = vmatprep.subr.bf16.mxu0 0
        %2102 = vmatpush1.bf16.msra.mxu0 0
        %2103 = vmatprep.subr.bf16.mxu0 0
        %2104 = vmatpush1.bf16.msra.mxu0 0
        %2105 = vmatprep.subr.bf16.mxu0 0
        %2106 = vmatpush1.bf16.msra.mxu0 0
        %2107 = vmatprep.subr.bf16.mxu0 0
        %2108 = vmatpush1.bf16.msra.mxu0 0
        %2109 = vmatprep.subr.bf16.mxu0 0
        %2110 = vmatpush1.bf16.msra.mxu0 %v2083
        %2111 = vmatprep.subr.bf16.mxu0 0
        %2112 = vmatpush1.bf16.msra.mxu0 %v2082
        %2113 = vmatprep.subr.bf16.mxu0 0
        %2114 = vmatpush1.bf16.msra.mxu0 %v2081
        %2115 = vmatprep.subr.bf16.mxu0 0
        %2116 = vmatpush2.bf16.msra.mxu0 0
        %2117 = vmatprep.subr.bf16.mxu0 0
        %2118 = vmatpush2.bf16.msra.mxu0 0
        %2119 = vmatprep.subr.bf16.mxu0 0
        %2120 = vmatpush2.bf16.msra.mxu0 0
        %2121 = vmatprep.subr.bf16.mxu0 0
        %2122 = vmatpush2.bf16.msra.mxu0 0
        %2123 = vmatprep.subr.bf16.mxu0 0
        %2124 = vmatpush2.bf16.msra.mxu0 0
        %2125 = vmatprep.subr.bf16.mxu0 0
        %2126 = vmatpush2.bf16.msra.mxu0 0
        %2127 = vmatprep.subr.bf16.mxu0 0
        %2128 = vmatpush2.bf16.msra.mxu0 0
        %2129 = vmatprep.subr.bf16.mxu0 0
        %2130 = vmatpush2.bf16.msra.mxu0 0
        %2131 = vmatprep.mubr.bf16.mxu0 0
        %2132 = vmatmul.mubr.bf16.gmra.mxu0 %v2088
        %v2133 = vpop.f32.mrf.mxu0
        %v2134 = vadd.f32 0.0, %v2133
        %v2135 = vpop.f32.mrf.mxu0
        %v2136 = vpop.f32.mrf.mxu0
        %v2137 = vadd.f32 0.0, %v2136
        %v2138 = vpop.f32.mrf.mxu0
        %2139 = vmatprep.mubr.bf16.mxu0 0
        %2140 = vmatmul.mubr.bf16.gmra.mxu0 %v2091
        %v2141 = vpop.f32.mrf.mxu0
        %v2142 = vadd.f32 0.0, %v2141
        %v2143 = vpop.f32.mrf.mxu0
        %v2144 = vpop.f32.mrf.mxu0
        %v2145 = vadd.f32 0.0, %v2144
        %v2146 = vpop.f32.mrf.mxu0
        %2147 = vmatprep.mubr.bf16.mxu0 0
        %2148 = vmatmul.mubr.bf16.gmra.mxu0 %v2094
        %v2149 = vpop.f32.mrf.mxu0
        %v2150 = vadd.f32 0.0, %v2149
        %v2151 = vpop.f32.mrf.mxu0
        %v2152 = vpop.f32.mrf.mxu0
        %v2153 = vadd.f32 0.0, %v2152
        %v2154 = vpop.f32.mrf.mxu0
        %2155 = vmatprep.mubr.bf16.mxu0 0
        %2156 = vmatmul.mubr.bf16.gmra.mxu0 %v2097
        %v2157 = vpop.f32.mrf.mxu0
        %v2158 = vadd.f32 0.0, %v2157
        %v2159 = vpop.f32.mrf.mxu0
        %v2160 = vpop.f32.mrf.mxu0
        %v2161 = vadd.f32 0.0, %v2160
        %v2162 = vpop.f32.mrf.mxu0
        %2163 = vdwg.mxu0
        %v2164 = vpack.c.b16 %v2057, %v1620
        %v2165 = vpack.c.b16 %v2059, %v2058
        %v2166 = vpack.c.b16 %v2061, %v2060
        %v2167 = vpack.c.b16 %v2063, %v2062
        %v2174 = vunpack.c.l.b16 %v2020
        %v2175 = vunpack.c.l.b16 %v2021
        %v2176 = vunpack.c.l.b16 %v2022
        %v2177 = vunpack.c.l.b16 %v2023
        %v2178 = vunpack.c.l.b16 %v2024
        %v2179 = vunpack.c.l.b16 %v2025
        %v2180 = vpack.c.b16 %v2175, %v2174
        %v2181 = vpack.c.b16 %v2177, %v2176
        %v2182 = vpack.c.b16 %v2179, %v2178
        %v2187 = vsel %vm1541, %v2164, 0
        %v2190 = vsel %vm1541, %v2165, 0
        %v2193 = vsel %vm1541, %v2166, 0
        %v2196 = vsel %vm1541, %v2167, 0
        %2198 = vmatprep.subr.bf16.mxu0 0
        %2199 = vmatpush1.bf16.msra.mxu0 0
        %2200 = vmatprep.subr.bf16.mxu0 0
        %2201 = vmatpush1.bf16.msra.mxu0 0
        %2202 = vmatprep.subr.bf16.mxu0 0
        %2203 = vmatpush1.bf16.msra.mxu0 0
        %2204 = vmatprep.subr.bf16.mxu0 0
        %2205 = vmatpush1.bf16.msra.mxu0 0
        %2206 = vmatprep.subr.bf16.mxu0 0
        %2207 = vmatpush1.bf16.msra.mxu0 0
        %2208 = vmatprep.subr.bf16.mxu0 0
        %2209 = vmatpush1.bf16.msra.mxu0 %v2182
        %2210 = vmatprep.subr.bf16.mxu0 0
        %2211 = vmatpush1.bf16.msra.mxu0 %v2181
        %2212 = vmatprep.subr.bf16.mxu0 0
        %2213 = vmatpush1.bf16.msra.mxu0 %v2180
        %2214 = vmatprep.subr.bf16.mxu0 0
        %2215 = vmatpush2.bf16.msra.mxu0 0
        %2216 = vmatprep.subr.bf16.mxu0 0
        %2217 = vmatpush2.bf16.msra.mxu0 0
        %2218 = vmatprep.subr.bf16.mxu0 0
        %2219 = vmatpush2.bf16.msra.mxu0 0
        %2220 = vmatprep.subr.bf16.mxu0 0
        %2221 = vmatpush2.bf16.msra.mxu0 0
        %2222 = vmatprep.subr.bf16.mxu0 0
        %2223 = vmatpush2.bf16.msra.mxu0 0
        %2224 = vmatprep.subr.bf16.mxu0 0
        %2225 = vmatpush2.bf16.msra.mxu0 0
        %2226 = vmatprep.subr.bf16.mxu0 0
        %2227 = vmatpush2.bf16.msra.mxu0 0
        %2228 = vmatprep.subr.bf16.mxu0 0
        %2229 = vmatpush2.bf16.msra.mxu0 0
        %2230 = vmatprep.mubr.bf16.mxu0 0
        %2231 = vmatmul.mubr.bf16.gmra.mxu0 %v2187
        %v2232 = vpop.f32.mrf.mxu0
        %v2233 = vadd.f32 %v2134, %v2232
        %v2234 = vpop.f32.mrf.mxu0
        %v2235 = vpop.f32.mrf.mxu0
        %v2236 = vadd.f32 %v2137, %v2235
        %v2237 = vpop.f32.mrf.mxu0
        %2238 = vmatprep.mubr.bf16.mxu0 0
        %2239 = vmatmul.mubr.bf16.gmra.mxu0 %v2190
        %v2240 = vpop.f32.mrf.mxu0
        %v2241 = vadd.f32 %v2142, %v2240
        %v2242 = vpop.f32.mrf.mxu0
        %v2243 = vpop.f32.mrf.mxu0
        %v2244 = vadd.f32 %v2145, %v2243
        %v2245 = vpop.f32.mrf.mxu0
        %2246 = vmatprep.mubr.bf16.mxu0 0
        %2247 = vmatmul.mubr.bf16.gmra.mxu0 %v2193
        %v2248 = vpop.f32.mrf.mxu0
        %v2249 = vadd.f32 %v2150, %v2248
        %v2250 = vpop.f32.mrf.mxu0
        %v2251 = vpop.f32.mrf.mxu0
        %v2252 = vadd.f32 %v2153, %v2251
        %v2253 = vpop.f32.mrf.mxu0
        %2254 = vmatprep.mubr.bf16.mxu0 0
        %2255 = vmatmul.mubr.bf16.gmra.mxu0 %v2196
        %v2256 = vpop.f32.mrf.mxu0
        %v2257 = vadd.f32 %v2158, %v2256
        %v2258 = vpop.f32.mrf.mxu0
        %v2259 = vpop.f32.mrf.mxu0
        %v2260 = vadd.f32 %v2161, %v2259
        %v2261 = vpop.f32.mrf.mxu0
        %2262 = vdwg.mxu0
        %v2263 = vld [vmem:[%s6 + $0x30] sm:$0xf]
        %v2264 = vld [vmem:[%s6 + $0x34] sm:$0xf]
        %v2265 = vld [vmem:[%s6 + $0x38] sm:$0xf]
        %v2266 = vld [vmem:[%s6 + $0x3c] sm:$0xf]
        %v2267 = vld [vmem:[%s6 + $0x40] sm:$0xf]
        %v2268 = vld [vmem:[%s6 + $0x44] sm:$0xf]
        %v2269 = vpack.c.b16 %v1620, %v2064
        %v2276 = vunpack.c.l.b16 %v2263
        %v2277 = vunpack.c.l.b16 %v2264
        %v2278 = vunpack.c.l.b16 %v2265
        %v2279 = vunpack.c.l.b16 %v2266
        %v2280 = vunpack.c.l.b16 %v2267
        %v2281 = vunpack.c.l.b16 %v2268
        %v2282 = vpack.c.b16 %v2277, %v2276
        %v2283 = vpack.c.b16 %v2279, %v2278
        %v2284 = vpack.c.b16 %v2281, %v2280
        %v2289 = vsel %vm1541, %v2269, 0
        %2291 = vmatprep.subr.bf16.mxu0 0
        %2292 = vmatpush1.bf16.msra.mxu0 0
        %2293 = vmatprep.subr.bf16.mxu0 0
        %2294 = vmatpush1.bf16.msra.mxu0 0
        %2295 = vmatprep.subr.bf16.mxu0 0
        %2296 = vmatpush1.bf16.msra.mxu0 0
        %2297 = vmatprep.subr.bf16.mxu0 0
        %2298 = vmatpush1.bf16.msra.mxu0 0
        %2299 = vmatprep.subr.bf16.mxu0 0
        %2300 = vmatpush1.bf16.msra.mxu0 0
        %2301 = vmatprep.subr.bf16.mxu0 0
        %2302 = vmatpush1.bf16.msra.mxu0 %v2284
        %2303 = vmatprep.subr.bf16.mxu0 0
        %2304 = vmatpush1.bf16.msra.mxu0 %v2283
        %2305 = vmatprep.subr.bf16.mxu0 0
        %2306 = vmatpush1.bf16.msra.mxu0 %v2282
        %2307 = vmatprep.subr.bf16.mxu0 0
        %2308 = vmatpush2.bf16.msra.mxu0 0
        %2309 = vmatprep.subr.bf16.mxu0 0
        %2310 = vmatpush2.bf16.msra.mxu0 0
        %2311 = vmatprep.subr.bf16.mxu0 0
        %2312 = vmatpush2.bf16.msra.mxu0 0
        %2313 = vmatprep.subr.bf16.mxu0 0
        %2314 = vmatpush2.bf16.msra.mxu0 0
        %2315 = vmatprep.subr.bf16.mxu0 0
        %2316 = vmatpush2.bf16.msra.mxu0 0
        %2317 = vmatprep.subr.bf16.mxu0 0
        %2318 = vmatpush2.bf16.msra.mxu0 0
        %2319 = vmatprep.subr.bf16.mxu0 0
        %2320 = vmatpush2.bf16.msra.mxu0 0
        %2321 = vmatprep.subr.bf16.mxu0 0
        %2322 = vmatpush2.bf16.msra.mxu0 0
        %2323 = vmatprep.mubr.bf16.mxu0 0
        %2324 = vmatmul.mubr.bf16.gmra.mxu0 %v2190
        %v2325 = vpop.f32.mrf.mxu0
        %v2326 = vadd.f32 0.0, %v2325
        %v2327 = vpop.f32.mrf.mxu0
        %v2328 = vpop.f32.mrf.mxu0
        %v2329 = vadd.f32 0.0, %v2328
        %v2330 = vpop.f32.mrf.mxu0
        %2331 = vmatprep.mubr.bf16.mxu0 0
        %2332 = vmatmul.mubr.bf16.gmra.mxu0 %v2193
        %v2333 = vpop.f32.mrf.mxu0
        %v2334 = vadd.f32 0.0, %v2333
        %v2335 = vpop.f32.mrf.mxu0
        %v2336 = vpop.f32.mrf.mxu0
        %v2337 = vadd.f32 0.0, %v2336
        %v2338 = vpop.f32.mrf.mxu0
        %2339 = vmatprep.mubr.bf16.mxu0 0
        %2340 = vmatmul.mubr.bf16.gmra.mxu0 %v2196
        %v2341 = vpop.f32.mrf.mxu0
        %v2342 = vadd.f32 0.0, %v2341
        %v2343 = vpop.f32.mrf.mxu0
        %v2344 = vpop.f32.mrf.mxu0
        %v2345 = vadd.f32 0.0, %v2344
        %v2346 = vpop.f32.mrf.mxu0
        %2347 = vmatprep.mubr.bf16.mxu0 0
        %2348 = vmatmul.mubr.bf16.gmra.mxu0 %v2289
        %v2349 = vpop.f32.mrf.mxu0
        %v2350 = vadd.f32 0.0, %v2349
        %v2351 = vpop.f32.mrf.mxu0
        %v2352 = vpop.f32.mrf.mxu0
        %v2353 = vadd.f32 0.0, %v2352
        %v2354 = vpop.f32.mrf.mxu0
        %2355 = vdwg.mxu0
        %v2356 = vadd.f32 %v2233, %v2326
        %v2357 = vadd.f32 %v2236, %v2329
        %v2358 = vadd.f32 %v2241, %v2334
        %v2359 = vadd.f32 %v2244, %v2337
        %v2360 = vadd.f32 %v2249, %v2342
        %v2361 = vadd.f32 %v2252, %v2345
        %v2362 = vadd.f32 %v2257, %v2350
        %v2363 = vadd.f32 %v2260, %v2353
        %v2364 = vadd.f32 %v1813, %v2356
        %v2365 = vadd.f32 %v1814, %v2357
        %v2366 = vadd.f32 %v1815, %v2358
        %v2367 = vadd.f32 %v1816, %v2359
        %v2368 = vadd.f32 %v1817, %v2360
        %v2369 = vadd.f32 %v1818, %v2361
        %v2370 = vadd.f32 %v1819, %v2362
        %v2371 = vadd.f32 %v1820, %v2363
        %v2372 = vsel %vm1127, %v2364, 0.0
        %v2373 = vsel %vm1127, %v2365, 0.0
        %v2374 = vadd.f32 %v2372, %v2373
        %v2375 = vsel %vm1127, %v2366, 0.0
        %v2376 = vadd.f32 %v2374, %v2375
        %v2377 = vsel %vm1127, %v2367, 0.0
        %v2378 = vadd.f32 %v2376, %v2377
        %v2379 = vsel %vm1127, %v2368, 0.0
        %v2380 = vadd.f32 %v2378, %v2379
        %v2381 = vsel %vm1127, %v2369, 0.0
        %v2382 = vadd.f32 %v2380, %v2381
        %v2383 = vsel %vm1127, %v2370, 0.0
        %v2384 = vadd.f32 %v2382, %v2383
        %v2385 = vsel %vm1127, %v2371, 0.0
        %v2386 = vadd.f32 %v2384, %v2385
        %v2387 = vrot.slane %v2386, 4
        %v2388 = vadd.f32 %v2386, %v2387
        %v2389 = vrot.slane %v2388, 2
        %v2390 = vadd.f32 %v2388, %v2389
        %v2391 = vrot.slane %v2390, 1
        %v2392 = vadd.f32 %v2390, %v2391
        %v2393 = vmul.f32 %v2392, %v1149
        %v2394 = vmul.f32 %v2364, %v2364
        %v2395 = vmul.f32 %v2365, %v2365
        %v2396 = vmul.f32 %v2366, %v2366
        %v2397 = vmul.f32 %v2367, %v2367
        %v2398 = vmul.f32 %v2368, %v2368
        %v2399 = vmul.f32 %v2369, %v2369
        %v2400 = vmul.f32 %v2370, %v2370
        %v2401 = vmul.f32 %v2371, %v2371
        %v2402 = vsel %vm1127, %v2394, 0.0
        %v2403 = vsel %vm1127, %v2395, 0.0
        %v2404 = vadd.f32 %v2402, %v2403
        %v2405 = vsel %vm1127, %v2396, 0.0
        %v2406 = vadd.f32 %v2404, %v2405
        %v2407 = vsel %vm1127, %v2397, 0.0
        %v2408 = vadd.f32 %v2406, %v2407
        %v2409 = vsel %vm1127, %v2398, 0.0
        %v2410 = vadd.f32 %v2408, %v2409
        %v2411 = vsel %vm1127, %v2399, 0.0
        %v2412 = vadd.f32 %v2410, %v2411
        %v2413 = vsel %vm1127, %v2400, 0.0
        %v2414 = vadd.f32 %v2412, %v2413
        %v2415 = vsel %vm1127, %v2401, 0.0
        %v2416 = vadd.f32 %v2414, %v2415
        %v2417 = vrot.slane %v2416, 4
        %v2418 = vadd.f32 %v2416, %v2417
        %v2419 = vrot.slane %v2418, 2
        %v2420 = vadd.f32 %v2418, %v2419
        %v2421 = vrot.slane %v2420, 1
        %v2422 = vadd.f32 %v2420, %v2421
        %v2423 = vmul.f32 %v2422, %v1149
        %v2424 = vmul.f32 %v2393, %v2393
        %v2425 = vsub.f32 %v2423, %v2424
        %v2426 = vmax.f32 %v2425, 0.0
        %v2427 = vsub.f32 %v2364, %v2393
        %v2428 = vsub.f32 %v2365, %v2393
        %v2429 = vsub.f32 %v2366, %v2393
        %v2430 = vsub.f32 %v2367, %v2393
        %v2431 = vsub.f32 %v2368, %v2393
        %v2432 = vsub.f32 %v2369, %v2393
        %v2433 = vsub.f32 %v2370, %v2393
        %v2434 = vsub.f32 %v2371, %v2393
        %v2435 = vadd.f32 %v2426, 1e-05
        %v2436 = vrsqrt.pop %v2435
        %v2437 = vmul.f32 %v2427, %v2436
        %v2438 = vmul.f32 %v2428, %v2436
        %v2439 = vmul.f32 %v2429, %v2436
        %v2440 = vmul.f32 %v2430, %v2436
        %v2441 = vmul.f32 %v2431, %v2436
        %v2442 = vmul.f32 %v2432, %v2436
        %v2443 = vmul.f32 %v2433, %v2436
        %v2444 = vmul.f32 %v2434, %v2436
        %vm2445 = vcmp.gt.f32.partialorder %v2437, 0.0
        %vm2446 = vcmp.gt.f32.partialorder %v2438, 0.0
        %vm2447 = vcmp.gt.f32.partialorder %v2439, 0.0
        %vm2448 = vcmp.gt.f32.partialorder %v2440, 0.0
        %vm2449 = vcmp.gt.f32.partialorder %v2441, 0.0
        %vm2450 = vcmp.gt.f32.partialorder %v2442, 0.0
        %vm2451 = vcmp.gt.f32.partialorder %v2443, 0.0
        %vm2452 = vcmp.gt.f32.partialorder %v2444, 0.0
        %v2453 = vmul.f32 %v2437, 0.01
        %v2454 = vmul.f32 %v2438, 0.01
        %v2455 = vmul.f32 %v2439, 0.01
        %v2456 = vmul.f32 %v2440, 0.01
        %v2457 = vmul.f32 %v2441, 0.01
        %v2458 = vmul.f32 %v2442, 0.01
        %v2459 = vmul.f32 %v2443, 0.01
        %v2460 = vmul.f32 %v2444, 0.01
        %v2461 = vsel %vm2445, %v2437, %v2453
        %v2462 = vsel %vm2446, %v2438, %v2454
        %v2463 = vsel %vm2447, %v2439, %v2455
        %v2464 = vsel %vm2448, %v2440, %v2456
        %v2465 = vsel %vm2449, %v2441, %v2457
        %v2466 = vsel %vm2450, %v2442, %v2458
        %v2467 = vsel %vm2451, %v2443, %v2459
        %v2468 = vsel %vm2452, %v2444, %v2460
        %v2469 = vpack.c.bf16 %v2461, %v2461
        %v2470 = vpack.c.bf16 %v2462, %v2462
        %v2471 = vpack.c.bf16 %v2463, %v2463
        %v2472 = vpack.c.bf16 %v2464, %v2464
        %v2473 = vpack.c.bf16 %v2465, %v2465
        %v2474 = vpack.c.bf16 %v2466, %v2466
        %v2475 = vpack.c.bf16 %v2467, %v2467
        %v2476 = vpack.c.bf16 %v2468, %v2468
        %v2478 = vshrl.u32 %v2469, 16
        %v2480 = vrot.slane %v2478, 7
        %v2481 = vshll.u32 %v2469, 16
        %v2483 = vor.u32 %v2480, %v2481
        %v2485 = vshrl.u32 %v2470, 16
        %v2487 = vrot.slane %v2485, 7
        %v2488 = vshll.u32 %v2470, 16
        %v2490 = vor.u32 %v2487, %v2488
        %v2492 = vshrl.u32 %v2471, 16
        %v2494 = vrot.slane %v2492, 7
        %v2495 = vshll.u32 %v2471, 16
        %v2497 = vor.u32 %v2494, %v2495
        %v2499 = vshrl.u32 %v2472, 16
        %v2501 = vrot.slane %v2499, 7
        %v2502 = vshll.u32 %v2472, 16
        %v2504 = vor.u32 %v2501, %v2502
        %v2506 = vshrl.u32 %v2473, 16
        %v2508 = vrot.slane %v2506, 7
        %v2509 = vshll.u32 %v2473, 16
        %v2511 = vor.u32 %v2508, %v2509
        %v2513 = vshrl.u32 %v2474, 16
        %v2515 = vrot.slane %v2513, 7
        %v2516 = vshll.u32 %v2474, 16
        %v2518 = vor.u32 %v2515, %v2516
        %v2520 = vshrl.u32 %v2475, 16
        %v2522 = vrot.slane %v2520, 7
        %v2523 = vshll.u32 %v2475, 16
        %v2525 = vor.u32 %v2522, %v2523
        %v2527 = vshrl.u32 %v2476, 16
        %v2529 = vrot.slane %v2527, 7
        %v2530 = vshll.u32 %v2476, 16
        %v2532 = vor.u32 %v2529, %v2530
        %v2541 = vsel %vm1316, 0, %v2483
        %v2542 = vsel %vm1316, 0, %v2490
        %v2543 = vsel %vm1316, 0, %v2497
        %v2544 = vsel %vm1316, 0, %v2504
        %v2545 = vsel %vm1316, 0, %v2511
        %v2546 = vsel %vm1316, 0, %v2518
        %v2547 = vsel %vm1316, 0, %v2525
        %v2548 = vsel %vm1316, 0, %v2532
        %v2549 = vsel %vm1328, %v2541, 0
        %v2550 = vsel %vm1328, %v2542, 0
        %v2551 = vsel %vm1328, %v2543, 0
        %v2552 = vsel %vm1328, %v2544, 0
        %v2553 = vsel %vm1328, %v2545, 0
        %v2554 = vsel %vm1328, %v2546, 0
        %v2555 = vsel %vm1328, %v2547, 0
        %v2556 = vsel %vm1328, %v2548, 0
        %v2558 = vshrl.u32 %v2549, 16
        %v2560 = vshll.u32 %v2549, 16
        %v2562 = vrot.slane %v2560, 1
        %v2563 = vor.u32 %v2558, %v2562
        %v2565 = vshrl.u32 %v2550, 16
        %v2567 = vshll.u32 %v2550, 16
        %v2569 = vrot.slane %v2567, 1
        %v2570 = vor.u32 %v2565, %v2569
        %v2572 = vshrl.u32 %v2551, 16
        %v2574 = vshll.u32 %v2551, 16
        %v2576 = vrot.slane %v2574, 1
        %v2577 = vor.u32 %v2572, %v2576
        %v2579 = vshrl.u32 %v2552, 16
        %v2581 = vshll.u32 %v2552, 16
        %v2583 = vrot.slane %v2581, 1
        %v2584 = vor.u32 %v2579, %v2583
        %v2586 = vshrl.u32 %v2553, 16
        %v2588 = vshll.u32 %v2553, 16
        %v2590 = vrot.slane %v2588, 1
        %v2591 = vor.u32 %v2586, %v2590
        %v2593 = vshrl.u32 %v2554, 16
        %v2595 = vshll.u32 %v2554, 16
        %v2597 = vrot.slane %v2595, 1
        %v2598 = vor.u32 %v2593, %v2597
        %v2600 = vshrl.u32 %v2555, 16
        %v2602 = vshll.u32 %v2555, 16
        %v2604 = vrot.slane %v2602, 1
        %v2605 = vor.u32 %v2600, %v2604
        %2606 = vrot.lane.b32.xlu0 %v2563, 16
        %v2607 = vpop.permute.xlu0 %2606
        %2608 = vrot.lane.b32.xlu0 %v2570, 16
        %v2609 = vpop.permute.xlu0 %2608
        %2610 = vrot.lane.b32.xlu0 %v2577, 16
        %v2611 = vpop.permute.xlu0 %2610
        %2612 = vrot.lane.b32.xlu0 %v2584, 16
        %v2613 = vpop.permute.xlu0 %2612
        %2614 = vrot.lane.b32.xlu0 %v2591, 16
        %v2615 = vpop.permute.xlu0 %2614
        %2616 = vrot.lane.b32.xlu0 %v2598, 16
        %v2617 = vpop.permute.xlu0 %2616
        %2618 = vrot.lane.b32.xlu0 %v2605, 16
        %v2619 = vpop.permute.xlu0 %2618
        %v2627 = vrot.slane %v2549, 1
        %v2628 = vrot.slane %v2550, 1
        %v2629 = vrot.slane %v2551, 1
        %v2630 = vrot.slane %v2552, 1
        %v2631 = vrot.slane %v2553, 1
        %v2632 = vrot.slane %v2554, 1
        %v2633 = vrot.slane %v2555, 1
        %2634 = vrot.lane.b32.xlu0 %v2627, 32
        %v2635 = vpop.permute.xlu0 %2634
        %2636 = vrot.lane.b32.xlu0 %v2628, 32
        %v2637 = vpop.permute.xlu0 %2636
        %2638 = vrot.lane.b32.xlu0 %v2629, 32
        %v2639 = vpop.permute.xlu0 %2638
        %2640 = vrot.lane.b32.xlu0 %v2630, 32
        %v2641 = vpop.permute.xlu0 %2640
        %2642 = vrot.lane.b32.xlu0 %v2631, 32
        %v2643 = vpop.permute.xlu0 %2642
        %2644 = vrot.lane.b32.xlu0 %v2632, 32
        %v2645 = vpop.permute.xlu0 %2644
        %2646 = vrot.lane.b32.xlu0 %v2633, 32
        %v2647 = vpop.permute.xlu0 %2646
        %v2649 = vsel %vm1127, %v2549, %v2607
        %v2651 = vsel %vm1127, %v2550, %v2609
        %v2653 = vsel %vm1127, %v2551, %v2611
        %v2655 = vsel %vm1127, %v2552, %v2613
        %v2657 = vsel %vm1127, %v2553, %v2615
        %v2659 = vsel %vm1127, %v2554, %v2617
        %v2661 = vsel %vm1127, %v2555, %v2619
        %v2663 = vsel %vm674, %v2649, %v2635
        %v2665 = vsel %vm674, %v2651, %v2637
        %v2667 = vsel %vm674, %v2653, %v2639
        %v2669 = vsel %vm674, %v2655, %v2641
        %v2671 = vsel %vm674, %v2657, %v2643
        %v2673 = vsel %vm674, %v2659, %v2645
        %v2675 = vsel %vm674, %v2661, %v2647
        %v2676 = vld [vmem:[%s7] sm:$0xf]
        %v2677 = vld [vmem:[%s7 + $0x4] sm:$0xf]
        %v2678 = vld [vmem:[%s7 + $0x8] sm:$0xf]
        %v2679 = vld [vmem:[%s7 + $0xc] sm:$0xf]
        %v2680 = vld [vmem:[%s7 + $0x10] sm:$0xf]
        %v2681 = vld [vmem:[%s7 + $0x14] sm:$0xf]
        %v2683 = vshrl.u32 %v2556, 16
        %v2685 = vshll.u32 %v2556, 16
        %v2687 = vrot.slane %v2685, 1
        %v2688 = vor.u32 %v2683, %v2687
        %2689 = vrot.lane.b32.xlu0 %v2688, 16
        %v2690 = vpop.permute.xlu0 %2689
        %v2692 = vrot.slane %v2556, 1
        %2693 = vrot.lane.b32.xlu0 %v2692, 32
        %v2694 = vpop.permute.xlu0 %2693
        %v2696 = vsel %vm1127, %v2556, %v2690
        %v2698 = vsel %vm674, %v2696, %v2694
        %v2699 = vld [vmem:[%s7 + $0x18] sm:$0xf]
        %v2700 = vld [vmem:[%s7 + $0x1c] sm:$0xf]
        %v2701 = vld [vmem:[%s7 + $0x20] sm:$0xf]
        %v2702 = vld [vmem:[%s7 + $0x24] sm:$0xf]
        %v2703 = vld [vmem:[%s7 + $0x28] sm:$0xf]
        %v2704 = vld [vmem:[%s7 + $0x2c] sm:$0xf]
        %v2713 = vunpack.c.l.b16 %v2663
        %v2714 = vunpack.c.l.b16 %v2665
        %v2715 = vunpack.c.l.b16 %v2667
        %v2716 = vunpack.c.l.b16 %v2669
        %v2717 = vunpack.c.l.b16 %v2671
        %v2718 = vunpack.c.l.b16 %v2673
        %v2719 = vunpack.c.l.b16 %v2675
        %v2720 = vunpack.c.l.b16 %v2698
        %v2721 = vpack.c.b16 %v2714, %v2713
        %v2722 = vpack.c.b16 %v2716, %v2715
        %v2723 = vpack.c.b16 %v2718, %v2717
        %v2724 = vpack.c.b16 %v2720, %v2719
        %v2731 = vunpack.c.l.b16 %v2699
        %v2732 = vunpack.c.l.b16 %v2700
        %v2733 = vunpack.c.l.b16 %v2701
        %v2734 = vunpack.c.l.b16 %v2702
        %v2735 = vunpack.c.l.b16 %v2703
        %v2736 = vunpack.c.l.b16 %v2704
        %v2737 = vpack.c.b16 %v2732, %v2731
        %v2738 = vpack.c.b16 %v2734, %v2733
        %v2739 = vpack.c.b16 %v2736, %v2735
        %v2744 = vsel %vm1541, %v2721, 0
        %v2747 = vsel %vm1541, %v2722, 0
        %v2750 = vsel %vm1541, %v2723, 0
        %v2753 = vsel %vm1541, %v2724, 0
        %2755 = vmatprep.subr.bf16.mxu0 0
        %2756 = vmatpush1.bf16.msra.mxu0 0
        %2757 = vmatprep.subr.bf16.mxu0 0
        %2758 = vmatpush1.bf16.msra.mxu0 0
        %2759 = vmatprep.subr.bf16.mxu0 0
        %2760 = vmatpush1.bf16.msra.mxu0 0
        %2761 = vmatprep.subr.bf16.mxu0 0
        %2762 = vmatpush1.bf16.msra.mxu0 0
        %2763 = vmatprep.subr.bf16.mxu0 0
        %2764 = vmatpush1.bf16.msra.mxu0 0
        %2765 = vmatprep.subr.bf16.mxu0 0
        %2766 = vmatpush1.bf16.msra.mxu0 %v2739
        %2767 = vmatprep.subr.bf16.mxu0 0
        %2768 = vmatpush1.bf16.msra.mxu0 %v2738
        %2769 = vmatprep.subr.bf16.mxu0 0
        %2770 = vmatpush1.bf16.msra.mxu0 %v2737
        %2771 = vmatprep.subr.bf16.mxu0 0
        %2772 = vmatpush2.bf16.msra.mxu0 0
        %2773 = vmatprep.subr.bf16.mxu0 0
        %2774 = vmatpush2.bf16.msra.mxu0 0
        %2775 = vmatprep.subr.bf16.mxu0 0
        %2776 = vmatpush2.bf16.msra.mxu0 0
        %2777 = vmatprep.subr.bf16.mxu0 0
        %2778 = vmatpush2.bf16.msra.mxu0 0
        %2779 = vmatprep.subr.bf16.mxu0 0
        %2780 = vmatpush2.bf16.msra.mxu0 0
        %2781 = vmatprep.subr.bf16.mxu0 0
        %2782 = vmatpush2.bf16.msra.mxu0 0
        %2783 = vmatprep.subr.bf16.mxu0 0
        %2784 = vmatpush2.bf16.msra.mxu0 0
        %2785 = vmatprep.subr.bf16.mxu0 0
        %2786 = vmatpush2.bf16.msra.mxu0 0
        %2787 = vmatprep.mubr.bf16.mxu0 0
        %2788 = vmatmul.mubr.bf16.gmra.mxu0 %v2744
        %v2789 = vpop.f32.mrf.mxu0
        %v2790 = vadd.f32 0.0, %v2789
        %v2791 = vpop.f32.mrf.mxu0
        %v2792 = vpop.f32.mrf.mxu0
        %v2793 = vadd.f32 0.0, %v2792
        %v2794 = vpop.f32.mrf.mxu0
        %2795 = vmatprep.mubr.bf16.mxu0 0
        %2796 = vmatmul.mubr.bf16.gmra.mxu0 %v2747
        %v2797 = vpop.f32.mrf.mxu0
        %v2798 = vadd.f32 0.0, %v2797
        %v2799 = vpop.f32.mrf.mxu0
        %v2800 = vpop.f32.mrf.mxu0
        %v2801 = vadd.f32 0.0, %v2800
        %v2802 = vpop.f32.mrf.mxu0
        %2803 = vmatprep.mubr.bf16.mxu0 0
        %2804 = vmatmul.mubr.bf16.gmra.mxu0 %v2750
        %v2805 = vpop.f32.mrf.mxu0
        %v2806 = vadd.f32 0.0, %v2805
        %v2807 = vpop.f32.mrf.mxu0
        %v2808 = vpop.f32.mrf.mxu0
        %v2809 = vadd.f32 0.0, %v2808
        %v2810 = vpop.f32.mrf.mxu0
        %2811 = vmatprep.mubr.bf16.mxu0 0
        %2812 = vmatmul.mubr.bf16.gmra.mxu0 %v2753
        %v2813 = vpop.f32.mrf.mxu0
        %v2814 = vadd.f32 0.0, %v2813
        %v2815 = vpop.f32.mrf.mxu0
        %v2816 = vpop.f32.mrf.mxu0
        %v2817 = vadd.f32 0.0, %v2816
        %v2818 = vpop.f32.mrf.mxu0
        %2819 = vdwg.mxu0
        %v2820 = vpack.c.b16 %v2713, %v1620
        %v2821 = vpack.c.b16 %v2715, %v2714
        %v2822 = vpack.c.b16 %v2717, %v2716
        %v2823 = vpack.c.b16 %v2719, %v2718
        %v2830 = vunpack.c.l.b16 %v2676
        %v2831 = vunpack.c.l.b16 %v2677
        %v2832 = vunpack.c.l.b16 %v2678
        %v2833 = vunpack.c.l.b16 %v2679
        %v2834 = vunpack.c.l.b16 %v2680
        %v2835 = vunpack.c.l.b16 %v2681
        %v2836 = vpack.c.b16 %v2831, %v2830
        %v2837 = vpack.c.b16 %v2833, %v2832
        %v2838 = vpack.c.b16 %v2835, %v2834
        %v2843 = vsel %vm1541, %v2820, 0
        %v2846 = vsel %vm1541, %v2821, 0
        %v2849 = vsel %vm1541, %v2822, 0
        %v2852 = vsel %vm1541, %v2823, 0
        %2854 = vmatprep.subr.bf16.mxu0 0
        %2855 = vmatpush1.bf16.msra.mxu0 0
        %2856 = vmatprep.subr.bf16.mxu0 0
        %2857 = vmatpush1.bf16.msra.mxu0 0
        %2858 = vmatprep.subr.bf16.mxu0 0
        %2859 = vmatpush1.bf16.msra.mxu0 0
        %2860 = vmatprep.subr.bf16.mxu0 0
        %2861 = vmatpush1.bf16.msra.mxu0 0
        %2862 = vmatprep.subr.bf16.mxu0 0
        %2863 = vmatpush1.bf16.msra.mxu0 0
        %2864 = vmatprep.subr.bf16.mxu0 0
        %2865 = vmatpush1.bf16.msra.mxu0 %v2838
        %2866 = vmatprep.subr.bf16.mxu0 0
        %2867 = vmatpush1.bf16.msra.mxu0 %v2837
        %2868 = vmatprep.subr.bf16.mxu0 0
        %2869 = vmatpush1.bf16.msra.mxu0 %v2836
        %2870 = vmatprep.subr.bf16.mxu0 0
        %2871 = vmatpush2.bf16.msra.mxu0 0
        %2872 = vmatprep.subr.bf16.mxu0 0
        %2873 = vmatpush2.bf16.msra.mxu0 0
        %2874 = vmatprep.subr.bf16.mxu0 0
        %2875 = vmatpush2.bf16.msra.mxu0 0
        %2876 = vmatprep.subr.bf16.mxu0 0
        %2877 = vmatpush2.bf16.msra.mxu0 0
        %2878 = vmatprep.subr.bf16.mxu0 0
        %2879 = vmatpush2.bf16.msra.mxu0 0
        %2880 = vmatprep.subr.bf16.mxu0 0
        %2881 = vmatpush2.bf16.msra.mxu0 0
        %2882 = vmatprep.subr.bf16.mxu0 0
        %2883 = vmatpush2.bf16.msra.mxu0 0
        %2884 = vmatprep.subr.bf16.mxu0 0
        %2885 = vmatpush2.bf16.msra.mxu0 0
        %2886 = vmatprep.mubr.bf16.mxu0 0
        %2887 = vmatmul.mubr.bf16.gmra.mxu0 %v2843
        %v2888 = vpop.f32.mrf.mxu0
        %v2889 = vadd.f32 %v2790, %v2888
        %v2890 = vpop.f32.mrf.mxu0
        %v2891 = vpop.f32.mrf.mxu0
        %v2892 = vadd.f32 %v2793, %v2891
        %v2893 = vpop.f32.mrf.mxu0
        %2894 = vmatprep.mubr.bf16.mxu0 0
        %2895 = vmatmul.mubr.bf16.gmra.mxu0 %v2846
        %v2896 = vpop.f32.mrf.mxu0
        %v2897 = vadd.f32 %v2798, %v2896
        %v2898 = vpop.f32.mrf.mxu0
        %v2899 = vpop.f32.mrf.mxu0
        %v2900 = vadd.f32 %v2801, %v2899
        %v2901 = vpop.f32.mrf.mxu0
        %2902 = vmatprep.mubr.bf16.mxu0 0
        %2903 = vmatmul.mubr.bf16.gmra.mxu0 %v2849
        %v2904 = vpop.f32.mrf.mxu0
        %v2905 = vadd.f32 %v2806, %v2904
        %v2906 = vpop.f32.mrf.mxu0
        %v2907 = vpop.f32.mrf.mxu0
        %v2908 = vadd.f32 %v2809, %v2907
        %v2909 = vpop.f32.mrf.mxu0
        %2910 = vmatprep.mubr.bf16.mxu0 0
        %2911 = vmatmul.mubr.bf16.gmra.mxu0 %v2852
        %v2912 = vpop.f32.mrf.mxu0
        %v2913 = vadd.f32 %v2814, %v2912
        %v2914 = vpop.f32.mrf.mxu0
        %v2915 = vpop.f32.mrf.mxu0
        %v2916 = vadd.f32 %v2817, %v2915
        %v2917 = vpop.f32.mrf.mxu0
        %2918 = vdwg.mxu0
        %v2919 = vld [vmem:[%s7 + $0x30] sm:$0xf]
        %v2920 = vld [vmem:[%s7 + $0x34] sm:$0xf]
        %v2921 = vld [vmem:[%s7 + $0x38] sm:$0xf]
        %v2922 = vld [vmem:[%s7 + $0x3c] sm:$0xf]
        %v2923 = vld [vmem:[%s7 + $0x40] sm:$0xf]
        %v2924 = vld [vmem:[%s7 + $0x44] sm:$0xf]
        %v2925 = vpack.c.b16 %v1620, %v2720
        %v2932 = vunpack.c.l.b16 %v2919
        %v2933 = vunpack.c.l.b16 %v2920
        %v2934 = vunpack.c.l.b16 %v2921
        %v2935 = vunpack.c.l.b16 %v2922
        %v2936 = vunpack.c.l.b16 %v2923
        %v2937 = vunpack.c.l.b16 %v2924
        %v2938 = vpack.c.b16 %v2933, %v2932
        %v2939 = vpack.c.b16 %v2935, %v2934
        %v2940 = vpack.c.b16 %v2937, %v2936
        %v2945 = vsel %vm1541, %v2925, 0
        %2947 = vmatprep.subr.bf16.mxu0 0
        %2948 = vmatpush1.bf16.msra.mxu0 0
        %2949 = vmatprep.subr.bf16.mxu0 0
        %2950 = vmatpush1.bf16.msra.mxu0 0
        %2951 = vmatprep.subr.bf16.mxu0 0
        %2952 = vmatpush1.bf16.msra.mxu0 0
        %2953 = vmatprep.subr.bf16.mxu0 0
        %2954 = vmatpush1.bf16.msra.mxu0 0
        %2955 = vmatprep.subr.bf16.mxu0 0
        %2956 = vmatpush1.bf16.msra.mxu0 0
        %2957 = vmatprep.subr.bf16.mxu0 0
        %2958 = vmatpush1.bf16.msra.mxu0 %v2940
        %2959 = vmatprep.subr.bf16.mxu0 0
        %2960 = vmatpush1.bf16.msra.mxu0 %v2939
        %2961 = vmatprep.subr.bf16.mxu0 0
        %2962 = vmatpush1.bf16.msra.mxu0 %v2938
        %2963 = vmatprep.subr.bf16.mxu0 0
        %2964 = vmatpush2.bf16.msra.mxu0 0
        %2965 = vmatprep.subr.bf16.mxu0 0
        %2966 = vmatpush2.bf16.msra.mxu0 0
        %2967 = vmatprep.subr.bf16.mxu0 0
        %2968 = vmatpush2.bf16.msra.mxu0 0
        %2969 = vmatprep.subr.bf16.mxu0 0
        %2970 = vmatpush2.bf16.msra.mxu0 0
        %2971 = vmatprep.subr.bf16.mxu0 0
        %2972 = vmatpush2.bf16.msra.mxu0 0
        %2973 = vmatprep.subr.bf16.mxu0 0
        %2974 = vmatpush2.bf16.msra.mxu0 0
        %2975 = vmatprep.subr.bf16.mxu0 0
        %2976 = vmatpush2.bf16.msra.mxu0 0
        %2977 = vmatprep.subr.bf16.mxu0 0
        %2978 = vmatpush2.bf16.msra.mxu0 0
        %2979 = vmatprep.mubr.bf16.mxu0 0
        %2980 = vmatmul.mubr.bf16.gmra.mxu0 %v2846
        %v2981 = vpop.f32.mrf.mxu0
        %v2982 = vadd.f32 0.0, %v2981
        %v2983 = vpop.f32.mrf.mxu0
        %v2984 = vpop.f32.mrf.mxu0
        %v2985 = vadd.f32 0.0, %v2984
        %v2986 = vpop.f32.mrf.mxu0
        %2987 = vmatprep.mubr.bf16.mxu0 0
        %2988 = vmatmul.mubr.bf16.gmra.mxu0 %v2849
        %v2989 = vpop.f32.mrf.mxu0
        %v2990 = vadd.f32 0.0, %v2989
        %v2991 = vpop.f32.mrf.mxu0
        %v2992 = vpop.f32.mrf.mxu0
        %v2993 = vadd.f32 0.0, %v2992
        %v2994 = vpop.f32.mrf.mxu0
        %2995 = vmatprep.mubr.bf16.mxu0 0
        %2996 = vmatmul.mubr.bf16.gmra.mxu0 %v2852
        %v2997 = vpop.f32.mrf.mxu0
        %v2998 = vadd.f32 0.0, %v2997
        %v2999 = vpop.f32.mrf.mxu0
        %v3000 = vpop.f32.mrf.mxu0
        %v3001 = vadd.f32 0.0, %v3000
        %v3002 = vpop.f32.mrf.mxu0
        %3003 = vmatprep.mubr.bf16.mxu0 0
        %3004 = vmatmul.mubr.bf16.gmra.mxu0 %v2945
        %v3005 = vpop.f32.mrf.mxu0
        %v3006 = vadd.f32 0.0, %v3005
        %v3007 = vpop.f32.mrf.mxu0
        %v3008 = vpop.f32.mrf.mxu0
        %v3009 = vadd.f32 0.0, %v3008
        %v3010 = vpop.f32.mrf.mxu0
        %3011 = vdwg.mxu0
        %v3012 = vadd.f32 %v2889, %v2982
        %v3013 = vadd.f32 %v2892, %v2985
        %v3014 = vadd.f32 %v2897, %v2990
        %v3015 = vadd.f32 %v2900, %v2993
        %v3016 = vadd.f32 %v2905, %v2998
        %v3017 = vadd.f32 %v2908, %v3001
        %v3018 = vadd.f32 %v2913, %v3006
        %v3019 = vadd.f32 %v2916, %v3009
        %v3020 = vsel %vm1127, %v3012, 0.0
        %v3021 = vsel %vm1127, %v3013, 0.0
        %v3022 = vadd.f32 %v3020, %v3021
        %v3023 = vsel %vm1127, %v3014, 0.0
        %v3024 = vadd.f32 %v3022, %v3023
        %v3025 = vsel %vm1127, %v3015, 0.0
        %v3026 = vadd.f32 %v3024, %v3025
        %v3027 = vsel %vm1127, %v3016, 0.0
        %v3028 = vadd.f32 %v3026, %v3027
        %v3029 = vsel %vm1127, %v3017, 0.0
        %v3030 = vadd.f32 %v3028, %v3029
        %v3031 = vsel %vm1127, %v3018, 0.0
        %v3032 = vadd.f32 %v3030, %v3031
        %v3033 = vsel %vm1127, %v3019, 0.0
        %v3034 = vadd.f32 %v3032, %v3033
        %v3035 = vrot.slane %v3034, 4
        %v3036 = vadd.f32 %v3034, %v3035
        %v3037 = vrot.slane %v3036, 2
        %v3038 = vadd.f32 %v3036, %v3037
        %v3039 = vrot.slane %v3038, 1
        %v3040 = vadd.f32 %v3038, %v3039
        %v3041 = vmul.f32 %v3040, %v1149
        %v3042 = vmul.f32 %v3012, %v3012
        %v3043 = vmul.f32 %v3013, %v3013
        %v3044 = vmul.f32 %v3014, %v3014
        %v3045 = vmul.f32 %v3015, %v3015
        %v3046 = vmul.f32 %v3016, %v3016
        %v3047 = vmul.f32 %v3017, %v3017
        %v3048 = vmul.f32 %v3018, %v3018
        %v3049 = vmul.f32 %v3019, %v3019
        %v3050 = vsel %vm1127, %v3042, 0.0
        %v3051 = vsel %vm1127, %v3043, 0.0
        %v3052 = vadd.f32 %v3050, %v3051
        %v3053 = vsel %vm1127, %v3044, 0.0
        %v3054 = vadd.f32 %v3052, %v3053
        %v3055 = vsel %vm1127, %v3045, 0.0
        %v3056 = vadd.f32 %v3054, %v3055
        %v3057 = vsel %vm1127, %v3046, 0.0
        %v3058 = vadd.f32 %v3056, %v3057
        %v3059 = vsel %vm1127, %v3047, 0.0
        %v3060 = vadd.f32 %v3058, %v3059
        %v3061 = vsel %vm1127, %v3048, 0.0
        %v3062 = vadd.f32 %v3060, %v3061
        %v3063 = vsel %vm1127, %v3049, 0.0
        %v3064 = vadd.f32 %v3062, %v3063
        %v3065 = vrot.slane %v3064, 4
        %v3066 = vadd.f32 %v3064, %v3065
        %v3067 = vrot.slane %v3066, 2
        %v3068 = vadd.f32 %v3066, %v3067
        %v3069 = vrot.slane %v3068, 1
        %v3070 = vadd.f32 %v3068, %v3069
        %v3071 = vmul.f32 %v3070, %v1149
        %v3072 = vmul.f32 %v3041, %v3041
        %v3073 = vsub.f32 %v3071, %v3072
        %v3074 = vmax.f32 %v3073, 0.0
        %v3075 = vsub.f32 %v3012, %v3041
        %v3076 = vsub.f32 %v3013, %v3041
        %v3077 = vsub.f32 %v3014, %v3041
        %v3078 = vsub.f32 %v3015, %v3041
        %v3079 = vsub.f32 %v3016, %v3041
        %v3080 = vsub.f32 %v3017, %v3041
        %v3081 = vsub.f32 %v3018, %v3041
        %v3082 = vsub.f32 %v3019, %v3041
        %v3083 = vadd.f32 %v3074, 1e-05
        %v3084 = vrsqrt.pop %v3083
        %v3085 = vmul.f32 %v3075, %v3084
        %v3086 = vmul.f32 %v3076, %v3084
        %v3087 = vmul.f32 %v3077, %v3084
        %v3088 = vmul.f32 %v3078, %v3084
        %v3089 = vmul.f32 %v3079, %v3084
        %v3090 = vmul.f32 %v3080, %v3084
        %v3091 = vmul.f32 %v3081, %v3084
        %v3092 = vmul.f32 %v3082, %v3084
        %vm3093 = vcmp.gt.f32.partialorder %v3085, 0.0
        %vm3094 = vcmp.gt.f32.partialorder %v3086, 0.0
        %vm3095 = vcmp.gt.f32.partialorder %v3087, 0.0
        %vm3096 = vcmp.gt.f32.partialorder %v3088, 0.0
        %vm3097 = vcmp.gt.f32.partialorder %v3089, 0.0
        %vm3098 = vcmp.gt.f32.partialorder %v3090, 0.0
        %vm3099 = vcmp.gt.f32.partialorder %v3091, 0.0
        %vm3100 = vcmp.gt.f32.partialorder %v3092, 0.0
        %v3101 = vmul.f32 %v3085, 0.01
        %v3102 = vmul.f32 %v3086, 0.01
        %v3103 = vmul.f32 %v3087, 0.01
        %v3104 = vmul.f32 %v3088, 0.01
        %v3105 = vmul.f32 %v3089, 0.01
        %v3106 = vmul.f32 %v3090, 0.01
        %v3107 = vmul.f32 %v3091, 0.01
        %v3108 = vmul.f32 %v3092, 0.01
        %v3109 = vsel %vm3093, %v3085, %v3101
        %v3110 = vsel %vm3094, %v3086, %v3102
        %v3111 = vsel %vm3095, %v3087, %v3103
        %v3112 = vsel %vm3096, %v3088, %v3104
        %v3113 = vsel %vm3097, %v3089, %v3105
        %v3114 = vsel %vm3098, %v3090, %v3106
        %v3115 = vsel %vm3099, %v3091, %v3107
        %v3116 = vsel %vm3100, %v3092, %v3108
        %v3117 = vpack.c.bf16 %v3109, %v3109
        %v3118 = vpack.c.bf16 %v3110, %v3110
        %v3119 = vpack.c.bf16 %v3111, %v3111
        %v3120 = vpack.c.bf16 %v3112, %v3112
        %v3121 = vpack.c.bf16 %v3113, %v3113
        %v3122 = vpack.c.bf16 %v3114, %v3114
        %v3123 = vpack.c.bf16 %v3115, %v3115
        %v3124 = vpack.c.bf16 %v3116, %v3116
        %vm3125 = vcmask 125952
        %3126 = vst.msk [vmem:[%s313] sm:$0xf] %vm3125, %v3117
        %3127 = vst.msk [vmem:[%s313 + $0x4] sm:$0xf] %vm3125, %v3118
        %3128 = vst.msk [vmem:[%s313 + $0x8] sm:$0xf] %vm3125, %v3119
        %3129 = vst.msk [vmem:[%s313 + $0xc] sm:$0xf] %vm3125, %v3120
        %3130 = vst.msk [vmem:[%s313 + $0x10] sm:$0xf] %vm3125, %v3121
        %3131 = vst.msk [vmem:[%s313 + $0x14] sm:$0xf] %vm3125, %v3122
        %3132 = vst.msk [vmem:[%s313 + $0x18] sm:$0xf] %vm3125, %v3123
        %3133 = vst.msk [vmem:[%s313 + $0x1c] sm:$0xf] %vm3125, %v3124
        %s3134 = sand.u32 %s208, 1
        %s3135 = scalar_lea.sflag [#allocation3], %s3134
        %s3136 = sand.u32 %s208, 1
        %s3137 = smul.addr %s3136, 32
        %s3138 = scalar_lea.vmem [#allocation2], %s3137
        // Predicated region
        $region53: #{tpu_custom_call.1} parent=51 // pred_check
          %p3139 = pneg %p218
        $region54: #{tpu_custom_call.1} parent=51 // pred_check_branch
          %3141 = sbr.rel (%p3139) target = $region56
        $region55: #{tpu_custom_call.1} parent=51 // pred_region
          %s3143 = ssub.s32 512, 512
          %3144 = vsyncadd %s3135, %s3143
          %s3145 = smul.addr %s22, 8
          %s3146 = smul.addr %s3145, 64
          %s3147 = scalar_lea.hbm %s8, %s3146
          %s3148 = sshll.u32 %s3138, 4
          %s3149 = int_to_ptr.vmem [resolvable:$true] %s3148
          %3154 = dma.vmem_to_hbm [thread:$0]  %s3149, 512, %s3147, %s3135, 64, 64, 4
        $region56: #{tpu_custom_call.1} parent=51 // pred_fallthru
          _
      $region52: #{tpu_custom_call.1} parent=5 // pred_fallthru
        _
      %p3155 = scmp.le.s32.totalorder 2, %s17
      // Predicated region
      $region57: #{tpu_custom_call.1} parent=5 // pred_check
        %p3156 = pneg %p3155
      $region58: #{tpu_custom_call.1} parent=5 // pred_check_branch
        %3158 = sbr.rel (%p3156) target = $region60
      $region59: #{tpu_custom_call.1} parent=5 // pred_region
        %s3159 = ssub.s32 %s17, 2
        // Predicated region
        $region61: #{tpu_custom_call.1} parent=59 // pred_check
          %p3160 = pneg %p224
        $region62: #{tpu_custom_call.1} parent=59 // pred_check_branch
          %3162 = sbr.rel (%p3160) target = $region64
        $region63: #{tpu_custom_call.1} parent=59 // pred_region
          %s3163 = sand.u32 %s209, 1
          %s3164 = scalar_lea.sflag [#allocation3], %s3163
          %s3165 = sand.u32 %s209, 1
          %s3166 = smul.addr %s3165, 32
          %s3167 = scalar_lea.vmem [#allocation2], %s3166
          %3168 = dma.done %s3164, 512
        $region64: #{tpu_custom_call.1} parent=59 // pred_fallthru
          _
      $region60: #{tpu_custom_call.1} parent=5 // pred_fallthru
        _
    $region6: #{tpu_custom_call.1} parent=1 // loop_footer
      %s21 = sadd.s32 1, %s17
    $region7: #{tpu_custom_call.1} parent=1 // loop_footer_branch
      %16 = sbr.rel target = $region3
    $region8: #{tpu_custom_call.1} parent=1 // loop_exit
      _
    %3169 = vsyncpa [#allocation3], 1
    %s3170 = scalar_lea.sflag [#allocation3], 1
    %3171 = vsyncpa %s3170, 1

</llo_original>
